<compile_context>
chip_gen: v7x
topology: tpu7x:2x2x1
jax: 0.10.0
libtpu: 0.0.40
codegen_flags: <defaults>
</compile_context>

<pallas_src>
import functools
import math

import numpy as np

import jax
import jax.numpy as jnp
from jax.experimental import pallas as pl
from jax.experimental.pallas import tpu as pltpu

_HALO = 8  # halo fetch granularity in rows (sublane-aligned)


# ----------------------------------------------------------------------------
# Pallas kernel: one H-strip of a 'same' conv on lane-fused activations.
# ----------------------------------------------------------------------------
def _conv_strip_kernel(cur_ref, up_ref, dn_ref, w_ref, shift_ref, *rest,
                       kh, th, h_in, activation, has_residual):
    refs = list(rest)
    out_ref = refs.pop()                                   # output is always last
    alpha_ref = refs.pop(0) if activation == "prelu" else None
    res_ref = refs.pop(0) if has_residual else None

    ph = kh // 2
    i = pl.program_id(1)

    cur = cur_ref[0]                                       # (th, W*Cin) bf16
    if ph > 0:
        # 8-row halos above/below the strip.  Conv zero-padding at the image
        # border is applied by masking (no HBM-side jnp.pad round trip).
        up = up_ref[0]
        dn = dn_ref[0]
        up = jnp.where(i > 0, up, jnp.zeros_like(up))
        row = (i + 1) * th + jax.lax.broadcasted_iota(jnp.int32, dn.shape, 0)
        dn = jnp.where(row < h_in, dn, jnp.zeros_like(dn))
        slab = jnp.concatenate([up, cur, dn], axis=0)      # (th + 16, W*Cin), aligned
        base = _HALO - ph
    else:
        slab = cur
        base = 0

    # Per-dh accumulated matmuls against banded (Toeplitz) weight matrices.
    # LHS rows stay lane-fused (W*Cin lanes); the f32 result lands directly in
    # the lane-fused (th, W*Cout) output layout: no im2col, no epilogue relayout.
    lanes_out = out_ref.shape[-1]
    acc = jnp.zeros((th, lanes_out), jnp.float32)
    for dh in range(kh):
        acc = acc + jnp.dot(slab[base + dh:base + dh + th, :], w_ref[dh],
                            preferred_element_type=jnp.float32)

    y = acc + shift_ref[...]                # conv bias + folded BN shift, per column
    if activation == "prelu":
        a = alpha_ref[0, 0]                 # single shared alpha (nn.PReLU default)
        y = jnp.where(y >= 0.0, y, a * y)
    elif activation == "tanh":
        y = jnp.tanh(y)
    if has_residual:
        y = y + res_ref[0].astype(jnp.float32)

    out_ref[...] = y[None].astype(out_ref.dtype)           # lane-dense store


def conv2d_lanefused(x, wbig, shift, *, alpha=None, activation="none",
                     residual=None, shuffle_r=1, out_dtype=jnp.bfloat16,
                     tile_h=32):
    """One fused 'same' conv layer on lane-fused (N, H, W*Cin) activations.

    wbig  : (KH, W*Cin, W*Cout) banded weight (BN scale folded in, bf16); columns
            are pre-permuted when the layer fuses a PixelShuffle.
    shift : (1, W*Cout) f32 per-column additive term (conv bias + BN shift).
    Returns (N, H*shuffle_r, W*Cout // shuffle_r) activations.
    """
    n, h_in, lanes_in = x.shape
    kh, lin, lanes_out = wbig.shape
    assert lin == lanes_in, (lin, lanes_in)
    ph = kh // 2
    assert ph <= _HALO
    # TODO(synk): support H that is not a multiple of 8 (pad + in-kernel row mask).
    assert h_in % _HALO == 0 and h_in >= _HALO, h_in

    # H-strip size: a multiple of 8 that divides H; keep >= 2 total grid steps so
    # both v7x TensorCores get work even for batch-1 inputs.
    th = max(_HALO, min(tile_h - tile_h % _HALO, h_in))
    while h_in % th:
        th -= _HALO
    if n * (h_in // th) < 2:
        for cand in range(((h_in // 2) // _HALO) * _HALO, _HALO - 1, -_HALO):
            if h_in % cand == 0:
                th = cand
                break
    n_ht = h_in // th

    x = x.astype(jnp.bfloat16)
    inputs = [x, x, x, wbig, shift]
    in_specs = [
        pl.BlockSpec((1, th, lanes_in), lambda b, i: (b, i, 0)),
        pl.BlockSpec((1, _HALO, lanes_in),
                     lambda b, i: (b, jnp.maximum(i * (th // _HALO) - 1, 0), 0)),
        pl.BlockSpec((1, _HALO, lanes_in),
                     lambda b, i: (b, jnp.minimum((i + 1) * (th // _HALO),
                                                  h_in // _HALO - 1), 0)),
        pl.BlockSpec((kh, lanes_in, lanes_out), lambda b, i: (0, 0, 0)),  # resident
        pl.BlockSpec((1, lanes_out), lambda b, i: (0, 0)),                # resident
    ]
    if activation == "prelu":
        inputs.append(jnp.asarray(alpha, jnp.float32).reshape(1, 1))
        in_specs.append(pl.BlockSpec((1, 1), lambda b, i: (0, 0)))
    if residual is not None:
        assert residual.shape == (n, h_in, lanes_out)
        inputs.append(residual.astype(jnp.bfloat16))
        in_specs.append(pl.BlockSpec((1, th, lanes_out), lambda b, i: (b, i, 0)))

    kernel = functools.partial(_conv_strip_kernel, kh=kh, th=th, h_in=h_in,
                               activation=activation,
                               has_residual=residual is not None)

    # VMEM budget derived from the actual (double-buffered) blocks + in-kernel
    # temporaries instead of a fixed fraction of physical VMEM (v7x has 64 MiB/TC).
    out_isize = jnp.dtype(out_dtype).itemsize
    need = 2 * 2 * (th * lanes_in + 2 * _HALO * lanes_in)            # input blocks (bf16)
    need += 2 * kh * lanes_in * lanes_out + 4 * lanes_out            # weights + shift
    need += 2 * th * lanes_out * out_isize                           # output blocks
    if residual is not None:
        need += 2 * 2 * th * lanes_out
    need += 2 * 2 * (th + 2 * _HALO) * lanes_in                      # slab + dh slices
    need += 3 * 4 * th * lanes_out                                   # f32 acc / epilogue
    vmem_limit = int(min(32 * 1024 * 1024, max(16 * 1024 * 1024, 2 * need)))

    out = pl.pallas_call(
        kernel,
        out_shape=jax.ShapeDtypeStruct((n, h_in, lanes_out), out_dtype),
        grid=(n, n_ht),
        in_specs=in_specs,
        out_specs=pl.BlockSpec((1, th, lanes_out), lambda b, i: (b, i, 0)),
        compiler_params=pltpu.CompilerParams(
            dimension_semantics=("parallel", "parallel"),
            vmem_limit_bytes=vmem_limit),
    )(*inputs)

    if shuffle_r > 1:
        # Fused PixelShuffle: the lane permutation was folded into the weight
        # columns, so this reshape is a free (row-major bitcast) relabelling.
        out = out.reshape(n, h_in * shuffle_r, lanes_out // shuffle_r)
    return out


# ----------------------------------------------------------------------------
# Host-side weight preparation: banded (Toeplitz) layout, BN folding, optional
# PixelShuffle column permutation.
# ----------------------------------------------------------------------------
def _build_banded(w, bias, scale, width, shuffle_r=1):
    """w: (KH, KW, Cin, Cout); bias/scale: (Cout,).  Returns
    (KH, width*Cin, width*Cout) bf16 banded weights and (1, width*Cout) f32 shift.
    W-boundary zero padding is encoded by simply dropping out-of-range taps."""
    w = np.asarray(jax.device_get(w), np.float32)
    bias = np.asarray(jax.device_get(bias), np.float32)
    scale = np.asarray(jax.device_get(scale), np.float32)
    kh, kw, cin, cout = w.shape
    pw = kw // 2
    w = w * scale[None, None, None, :]          # fold BN scale into the weights
    lanes_out = width * cout

    def col_index(wc, co):
        if shuffle_r == 1:
            return wc * cout + co
        r = shuffle_r
        c_small = cout // (r * r)
        c, rem = divmod(co, r * r)              # co = c*r*r + a*r + b  (PixelShuffle)
        a, b = divmod(rem, r)
        return a * (width * r * c_small) + (wc * r + b) * c_small + c

    wbig = np.zeros((kh, width * cin, lanes_out), np.float32)
    shift = np.zeros((lanes_out,), np.float32)
    for wc in range(width):
        for co in range(cout):
            col = col_index(wc, co)
            shift[col] = bias[co]
            for dw in range(kw):
                u = wc + dw - pw
                if 0 <= u < width:
                    wbig[:, u * cin:(u + 1) * cin, col] = w[:, dw, :, co]
    return (jnp.asarray(wbig, jnp.bfloat16),
            jnp.asarray(shift[None, :], jnp.float32))


# ----------------------------------------------------------------------------
# Parameter init (PyTorch-shaped, synthetic values; BatchNorm in eval mode).
# ----------------------------------------------------------------------------
def _conv_params(key, kh, kw, cin, cout):
    k1, k2 = jax.random.split(key)
    bound = 1.0 / math.sqrt(cin * kh * kw)
    w = jax.random.uniform(k1, (kh, kw, cin, cout), jnp.float32, -bound, bound)
    b = jax.random.uniform(k2, (cout,), jnp.float32, -bound, bound)
    return w, b


def _bn_params(key, c):
    k1, k2, k3, k4 = jax.random.split(key, 4)
    gamma = 1.0 + 0.1 * jax.random.normal(k1, (c,), jnp.float32)
    beta = 0.1 * jax.random.normal(k2, (c,), jnp.float32)
    mean = 0.1 * jax.random.normal(k3, (c,), jnp.float32)
    var = 0.9 + 0.1 * jnp.abs(jax.random.normal(k4, (c,), jnp.float32))
    return gamma, beta, mean, var


def _fold_bn(b_conv, gamma, beta, mean, var, eps=1e-5):
    scale = gamma / jnp.sqrt(var + eps)
    shift = (b_conv - mean) * scale + beta
    return scale, shift


def init_sr_resnet(key, *, large_kernel_size, small_kernel_size, channels,
                   res_blocks, scaling_factor):
    keys = iter(jax.random.split(key, 16 + 4 * res_blocks))
    params = {}

    w, b = _conv_params(next(keys), large_kernel_size, large_kernel_size, 3, channels)
    s, sh = _fold_bn(b, *_bn_params(next(keys), channels))
    params["conv1"] = dict(w=w, scale=s, shift=sh, alpha=0.25)

    # Residual-block parameters are created for structural fidelity, but the
    # reference forward discards their output (y = conv2(x) overwrites it), so
    # they are never executed.
    rbs = []
    for _ in range(res_blocks):
        w1, b1 = _conv_params(next(keys), small_kernel_size, small_kernel_size,
                              channels, channels)
        s1, sh1 = _fold_bn(b1, *_bn_params(next(keys), channels))
        w2, b2 = _conv_params(next(keys), small_kernel_size, small_kernel_size,
                              channels, channels)
        s2, sh2 = _fold_bn(b2, *_bn_params(next(keys), channels))
        rbs.append(dict(w1=w1, scale1=s1, shift1=sh1,
                        w2=w2, scale2=s2, shift2=sh2, alpha=0.25))
    params["res_blocks"] = rbs

    # conv2: Conv(C->C, sk, padding=1) + BN   (sk == 3 in practice, so 'same')
    w, b = _conv_params(next(keys), small_kernel_size, small_kernel_size,
                        channels, channels)
    s, sh = _fold_bn(b, *_bn_params(next(keys), channels))
    params["conv2"] = dict(w=w, scale=s, shift=sh)

    n_subpix = int(math.log2(scaling_factor))
    sps = []
    for _ in range(n_subpix):
        cout = channels * scaling_factor ** 2
        w, b = _conv_params(next(keys), small_kernel_size, small_kernel_size,
                            channels, cout)
        sps.append(dict(w=w, scale=jnp.ones((cout,), jnp.float32), shift=b,
                        alpha=0.25, r=scaling_factor))
    params["subpix"] = sps

    w, b = _conv_params(next(keys), large_kernel_size, large_kernel_size, channels, 3)
    params["conv3"] = dict(w=w, scale=jnp.ones((3,), jnp.float32), shift=b)
    return params


def prepare_kernel_params(params, lr_width):
    """Build banded, lane-fused, BN-folded (and PixelShuffle-permuted) weights."""
    width = lr_width
    kp = {}
    c = params["conv1"]
    w, s = _build_banded(c["w"], c["shift"], c["scale"], width)
    kp["conv1"] = dict(w=w, shift=s, alpha=jnp.float32(c["alpha"]))
    c = params["conv2"]
    w, s = _build_banded(c["w"], c["shift"], c["scale"], width)
    kp["conv2"] = dict(w=w, shift=s)
    kp["subpix"] = []
    for sp in params["subpix"]:
        w, s = _build_banded(sp["w"], sp["shift"], sp["scale"], width,
                             shuffle_r=sp["r"])
        kp["subpix"].append(dict(w=w, shift=s, alpha=jnp.float32(sp["alpha"]),
                                 r=sp["r"]))
        width *= sp["r"]
    c = params["conv3"]
    w, s = _build_banded(c["w"], c["shift"], c["scale"], width)
    kp["conv3"] = dict(w=w, shift=s)
    return kp


# ----------------------------------------------------------------------------
# Forward pass, output-equivalent to the reference PyTorch SR_ResNet.forward.
# ----------------------------------------------------------------------------
def sr_resnet_forward(kparams, x_nchw):
    n, cin, h, w = x_nchw.shape
    x = jnp.transpose(x_nchw, (0, 2, 3, 1)).reshape(n, h, w * cin)   # lane-fused NHWC
    x = x.astype(jnp.bfloat16)

    p = kparams
    x = conv2d_lanefused(x, p["conv1"]["w"], p["conv1"]["shift"],
                         alpha=p["conv1"]["alpha"], activation="prelu")
    residual = x

    # NOTE: the reference forward computes y = self.residual_blocks(x) and then
    # immediately overwrites it with y = self.conv2(x); the residual-block chain
    # is dead code and is skipped (identical output).
    y = conv2d_lanefused(x, p["conv2"]["w"], p["conv2"]["shift"],
                         residual=residual)

    for sp in p["subpix"]:
        # PixelShuffle is folded into the conv (weight-column permutation + free
        # reshape); the fused PReLU uses a single shared alpha, so it commutes.
        y = conv2d_lanefused(y, sp["w"], sp["shift"], alpha=sp["alpha"],
                             activation="prelu", shuffle_r=sp["r"])

    y = conv2d_lanefused(y, p["conv3"]["w"], p["conv3"]["shift"],
                         activation="tanh", out_dtype=jnp.float32)

    hs, lanes = y.shape[1], y.shape[2]
    return jnp.transpose(y.reshape(n, hs, lanes // 3, 3), (0, 3, 1, 2))   # NCHW


# ----------------------------------------------------------------------------
# Pure-JAX reference (same bf16 quantization points) for a numerical self-check.
# ----------------------------------------------------------------------------
def reference_forward(params, x_nchw):
    def conv(z, w, scale, shift):
        wq = (w * scale[None, None, None, :]).astype(jnp.bfloat16)
        y = jax.lax.conv_general_dilated(
            z, wq, (1, 1), "SAME",
            dimension_numbers=("NHWC", "HWIO", "NHWC"),
            preferred_element_type=jnp.float32)
        return y + shift[None, None, None, :]

    def prelu(v, a):
        return jnp.where(v >= 0.0, v, a * v)

    def pixel_shuffle(v, r):
        n, hh, ww, crr = v.shape
        c = crr // (r * r)
        v = v.reshape(n, hh, ww, c, r, r)
        return jnp.transpose(v, (0, 1, 4, 2, 5, 3)).reshape(n, hh * r, ww * r, c)

    p = params
    x = jnp.transpose(x_nchw, (0, 2, 3, 1)).astype(jnp.bfloat16)
    x = prelu(conv(x, p["conv1"]["w"], p["conv1"]["scale"], p["conv1"]["shift"]),
              p["conv1"]["alpha"]).astype(jnp.bfloat16)
    residual = x
    y = (conv(x, p["conv2"]["w"], p["conv2"]["scale"], p["conv2"]["shift"])
         + residual.astype(jnp.float32)).astype(jnp.bfloat16)
    for sp in p["subpix"]:
        t = prelu(conv(y, sp["w"], sp["scale"], sp["shift"]), sp["alpha"])
        y = pixel_shuffle(t.astype(jnp.bfloat16), sp["r"])
    y = jnp.tanh(conv(y, p["conv3"]["w"], p["conv3"]["scale"], p["conv3"]["shift"]))
    return jnp.transpose(y, (0, 3, 1, 2))


if __name__ == "__main__":
    key = jax.random.PRNGKey(0)
    kparam, kx = jax.random.split(key)

    # SR_ResNet(large_kernel_size=5, small_kernel_size=3, channels=8,
    #           res_blocks=2, scaling_factor=2) at a small 16x16 LR input.
    params = init_sr_resnet(kparam, large_kernel_size=5, small_kernel_size=3,
                            channels=8, res_blocks=2, scaling_factor=2)
    x = jax.random.normal(kx, (2, 3, 16, 16), dtype=jnp.float32)        # NCHW

    kparams = prepare_kernel_params(params, lr_width=x.shape[-1])
    fwd = jax.jit(functools.partial(sr_resnet_forward, kparams))
    out = jax.block_until_ready(fwd(x))

    assert out.shape == (2, 3, 32, 32), out.shape
    assert bool(jnp.all(jnp.isfinite(out)))

    # Numerical self-check against a pure-JAX reference with matching precision.
    ref = jax.block_until_ready(
        jax.jit(functools.partial(reference_forward, params))(x))
    err = float(jnp.max(jnp.abs(out - ref)))
    assert err < 5e-2, err

    print("KERNEL_OK")
</pallas_src>

<mosaic_0001>
module attributes {stable_mosaic.version = 11 : i64} {
  func.func @_conv_strip_kernel(%arg0: i32, %arg1: i32, %arg2: memref<1x16x48xbf16, #tpu.memory_space<vmem>>, %arg3: memref<1x8x48xbf16, #tpu.memory_space<vmem>>, %arg4: memref<1x8x48xbf16, #tpu.memory_space<vmem>>, %arg5: memref<5x48x128xbf16, #tpu.memory_space<vmem>>, %arg6: memref<1x128xf32, #tpu.memory_space<vmem>>, %arg7: memref<1x1xf32, #tpu.memory_space<vmem>>, %arg8: memref<1x16x128xbf16, #tpu.memory_space<vmem>>) attributes {dimension_semantics = [#tpu.dimension_semantics<parallel>, #tpu.dimension_semantics<parallel>], iteration_bounds = array<i64: 2, 1>, scalar_prefetch = 0 : i64, scratch_operands = 0 : i64, tpu.core_type = #tpu.core_type<tc>, window_params = [{transform_indices = @transform_0, window_bounds = array<i64: 1, 16, 48>}, {transform_indices = @transform_1, window_bounds = array<i64: 1, 8, 48>}, {transform_indices = @transform_2, window_bounds = array<i64: 1, 8, 48>}, {pipeline_mode = #tpu.pipeline_mode<synchronous>, transform_indices = @transform_3, window_bounds = array<i64: 5, 48, 128>}, {pipeline_mode = #tpu.pipeline_mode<synchronous>, transform_indices = @transform_4, window_bounds = array<i64: 1, 128>}, {pipeline_mode = #tpu.pipeline_mode<synchronous>, transform_indices = @transform_5, window_bounds = array<i64: 1, 1>}, {transform_indices = @transform_6, window_bounds = array<i64: 1, 16, 128>}]} {
    %c0 = arith.constant 0 : index
    %c0_0 = arith.constant 0 : index
    %c0_1 = arith.constant 0 : index
    %0 = vector.load %arg2[%c0, %c0_0, %c0_1] : memref<1x16x48xbf16, #tpu.memory_space<vmem>>, vector<1x16x48xbf16>
    %1 = vector.shape_cast %0 : vector<1x16x48xbf16> to vector<16x48xbf16>
    %c0_2 = arith.constant 0 : index
    %c0_3 = arith.constant 0 : index
    %c0_4 = arith.constant 0 : index
    %2 = vector.load %arg3[%c0_2, %c0_3, %c0_4] : memref<1x8x48xbf16, #tpu.memory_space<vmem>>, vector<1x8x48xbf16>
    %3 = vector.shape_cast %2 : vector<1x8x48xbf16> to vector<8x48xbf16>
    %c0_5 = arith.constant 0 : index
    %c0_6 = arith.constant 0 : index
    %c0_7 = arith.constant 0 : index
    %4 = vector.load %arg4[%c0_5, %c0_6, %c0_7] : memref<1x8x48xbf16, #tpu.memory_space<vmem>>, vector<1x8x48xbf16>
    %5 = vector.shape_cast %4 : vector<1x8x48xbf16> to vector<8x48xbf16>
    %c0_i32 = arith.constant 0 : i32
    %6 = arith.cmpi sgt, %arg1, %c0_i32 : i32
    %cst = arith.constant 0.000000e+00 : bf16
    %7 = vector.broadcast %cst : bf16 to vector<8x48xbf16>
    %8 = arith.select %6, %3, %7 : vector<8x48xbf16>
    %c1_i32 = arith.constant 1 : i32
    %9 = arith.addi %arg1, %c1_i32 : i32
    %c16_i32 = arith.constant 16 : i32
    %10 = arith.muli %9, %c16_i32 : i32
    %11 = tpu.iota {dimensions = array<i32: 0>} : vector<8x48xi32>
    %12 = vector.broadcast %10 : i32 to vector<8x48xi32>
    %13 = arith.addi %12, %11 : vector<8x48xi32>
    %c16_i32_8 = arith.constant 16 : i32
    %14 = vector.broadcast %c16_i32_8 : i32 to vector<8x48xi32>
    %15 = arith.cmpi slt, %13, %14 : vector<8x48xi32>
    %cst_9 = arith.constant 0.000000e+00 : bf16
    %16 = vector.broadcast %cst_9 : bf16 to vector<8x48xbf16>
    %17 = arith.select %15, %5, %16 : vector<8x48xi1>, vector<8x48xbf16>
    %18 = tpu.concatenate %8, %1, %17 in 0 : vector<8x48xbf16>, vector<16x48xbf16>, vector<8x48xbf16> -> vector<32x48xbf16>
    %cst_10 = arith.constant 0.000000e+00 : f32
    %19 = vector.broadcast %cst_10 : f32 to vector<16x128xf32>
    %20 = vector.extract_strided_slice %18 {offsets = [6, 0], sizes = [16, 48], strides = [1, 1]} : vector<32x48xbf16> to vector<16x48xbf16>
    %c0_11 = arith.constant 0 : index
    %c0_12 = arith.constant 0 : index
    %c0_13 = arith.constant 0 : index
    %21 = vector.load %arg5[%c0_11, %c0_12, %c0_13] : memref<5x48x128xbf16, #tpu.memory_space<vmem>>, vector<1x48x128xbf16>
    %22 = vector.shape_cast %21 : vector<1x48x128xbf16> to vector<48x128xbf16>
    %cst_14 = arith.constant dense<0.000000e+00> : vector<16x128xf32>
    %23 = tpu.matmul %20, %22, %cst_14 {dimension_numbers = #tpu.dot_dimension_numbers<[1], [0], [0], [1], [0, 0, 1, 1], [], []>} : vector<16x48xbf16>, vector<48x128xbf16>, vector<16x128xf32> -> vector<16x128xf32>
    %24 = arith.addf %19, %23 : vector<16x128xf32>
    %25 = vector.extract_strided_slice %18 {offsets = [7, 0], sizes = [16, 48], strides = [1, 1]} : vector<32x48xbf16> to vector<16x48xbf16>
    %c1 = arith.constant 1 : index
    %c0_15 = arith.constant 0 : index
    %c0_16 = arith.constant 0 : index
    %26 = vector.load %arg5[%c1, %c0_15, %c0_16] : memref<5x48x128xbf16, #tpu.memory_space<vmem>>, vector<1x48x128xbf16>
    %27 = vector.shape_cast %26 : vector<1x48x128xbf16> to vector<48x128xbf16>
    %cst_17 = arith.constant dense<0.000000e+00> : vector<16x128xf32>
    %28 = tpu.matmul %25, %27, %cst_17 {dimension_numbers = #tpu.dot_dimension_numbers<[1], [0], [0], [1], [0, 0, 1, 1], [], []>} : vector<16x48xbf16>, vector<48x128xbf16>, vector<16x128xf32> -> vector<16x128xf32>
    %29 = arith.addf %24, %28 : vector<16x128xf32>
    %30 = vector.extract_strided_slice %18 {offsets = [8, 0], sizes = [16, 48], strides = [1, 1]} : vector<32x48xbf16> to vector<16x48xbf16>
    %c2 = arith.constant 2 : index
    %c0_18 = arith.constant 0 : index
    %c0_19 = arith.constant 0 : index
    %31 = vector.load %arg5[%c2, %c0_18, %c0_19] : memref<5x48x128xbf16, #tpu.memory_space<vmem>>, vector<1x48x128xbf16>
    %32 = vector.shape_cast %31 : vector<1x48x128xbf16> to vector<48x128xbf16>
    %cst_20 = arith.constant dense<0.000000e+00> : vector<16x128xf32>
    %33 = tpu.matmul %30, %32, %cst_20 {dimension_numbers = #tpu.dot_dimension_numbers<[1], [0], [0], [1], [0, 0, 1, 1], [], []>} : vector<16x48xbf16>, vector<48x128xbf16>, vector<16x128xf32> -> vector<16x128xf32>
    %34 = arith.addf %29, %33 : vector<16x128xf32>
    %35 = vector.extract_strided_slice %18 {offsets = [9, 0], sizes = [16, 48], strides = [1, 1]} : vector<32x48xbf16> to vector<16x48xbf16>
    %c3 = arith.constant 3 : index
    %c0_21 = arith.constant 0 : index
    %c0_22 = arith.constant 0 : index
    %36 = vector.load %arg5[%c3, %c0_21, %c0_22] : memref<5x48x128xbf16, #tpu.memory_space<vmem>>, vector<1x48x128xbf16>
    %37 = vector.shape_cast %36 : vector<1x48x128xbf16> to vector<48x128xbf16>
    %cst_23 = arith.constant dense<0.000000e+00> : vector<16x128xf32>
    %38 = tpu.matmul %35, %37, %cst_23 {dimension_numbers = #tpu.dot_dimension_numbers<[1], [0], [0], [1], [0, 0, 1, 1], [], []>} : vector<16x48xbf16>, vector<48x128xbf16>, vector<16x128xf32> -> vector<16x128xf32>
    %39 = arith.addf %34, %38 : vector<16x128xf32>
    %40 = vector.extract_strided_slice %18 {offsets = [10, 0], sizes = [16, 48], strides = [1, 1]} : vector<32x48xbf16> to vector<16x48xbf16>
    %c4 = arith.constant 4 : index
    %c0_24 = arith.constant 0 : index
    %c0_25 = arith.constant 0 : index
    %41 = vector.load %arg5[%c4, %c0_24, %c0_25] : memref<5x48x128xbf16, #tpu.memory_space<vmem>>, vector<1x48x128xbf16>
    %42 = vector.shape_cast %41 : vector<1x48x128xbf16> to vector<48x128xbf16>
    %cst_26 = arith.constant dense<0.000000e+00> : vector<16x128xf32>
    %43 = tpu.matmul %40, %42, %cst_26 {dimension_numbers = #tpu.dot_dimension_numbers<[1], [0], [0], [1], [0, 0, 1, 1], [], []>} : vector<16x48xbf16>, vector<48x128xbf16>, vector<16x128xf32> -> vector<16x128xf32>
    %44 = arith.addf %39, %43 : vector<16x128xf32>
    %c0_27 = arith.constant 0 : index
    %c0_28 = arith.constant 0 : index
    %45 = vector.load %arg6[%c0_27, %c0_28] : memref<1x128xf32, #tpu.memory_space<vmem>>, vector<1x128xf32>
    %46 = vector.broadcast %45 : vector<1x128xf32> to vector<16x128xf32>
    %47 = arith.addf %44, %46 : vector<16x128xf32>
    %c0_29 = arith.constant 0 : index
    %c0_30 = arith.constant 0 : index
    %48 = vector.load %arg7[%c0_29, %c0_30] : memref<1x1xf32, #tpu.memory_space<vmem>>, vector<1x1xf32>
    %49 = vector.extract %48[0, 0] : f32 from vector<1x1xf32>
    %cst_31 = arith.constant 0.000000e+00 : f32
    %50 = vector.broadcast %cst_31 : f32 to vector<16x128xf32>
    %51 = arith.cmpf oge, %47, %50 : vector<16x128xf32>
    %52 = vector.broadcast %49 : f32 to vector<16x128xf32>
    %53 = arith.mulf %52, %47 : vector<16x128xf32>
    %54 = arith.select %51, %47, %53 : vector<16x128xi1>, vector<16x128xf32>
    %55 = vector.shape_cast %54 : vector<16x128xf32> to vector<1x16x128xf32>
    %56 = arith.truncf %55 : vector<1x16x128xf32> to vector<1x16x128xbf16>
    %c0_32 = arith.constant 0 : index
    %c0_33 = arith.constant 0 : index
    %c0_34 = arith.constant 0 : index
    %57 = vector.load %arg8[%c0_32, %c0_33, %c0_34] : memref<1x16x128xbf16, #tpu.memory_space<vmem>>, vector<1x16x128xbf16>
    tpu.vector_store %arg8[%c0_32, %c0_33, %c0_34], %56 {strides = array<i32>} : memref<1x16x128xbf16, #tpu.memory_space<vmem>>, vector<1x16x128xbf16>,
    return
  }
  func.func @transform_0(%arg0: i32, %arg1: i32) -> (i32, i32, i32) {
    %c0_i32 = arith.constant 0 : i32
    %c0_i32_0 = arith.constant 0 : i32
    return %arg0, %arg1, %c0_i32 : i32, i32, i32
  }
  func.func @transform_1(%arg0: i32, %arg1: i32) -> (i32, i32, i32) {
    %c2_i32 = arith.constant 2 : i32
    %0 = arith.muli %arg1, %c2_i32 : i32
    %c1_i32 = arith.constant 1 : i32
    %1 = arith.subi %0, %c1_i32 : i32
    %c0_i32 = arith.constant 0 : i32
    %2 = arith.maxsi %1, %c0_i32 : i32
    %c0_i32_0 = arith.constant 0 : i32
    %c0_i32_1 = arith.constant 0 : i32
    return %arg0, %2, %c0_i32_0 : i32, i32, i32
  }
  func.func @transform_2(%arg0: i32, %arg1: i32) -> (i32, i32, i32) {
    %c1_i32 = arith.constant 1 : i32
    %0 = arith.addi %arg1, %c1_i32 : i32
    %c2_i32 = arith.constant 2 : i32
    %1 = arith.muli %0, %c2_i32 : i32
    %c1_i32_0 = arith.constant 1 : i32
    %2 = arith.minsi %1, %c1_i32_0 : i32
    %c0_i32 = arith.constant 0 : i32
    %c0_i32_1 = arith.constant 0 : i32
    return %arg0, %2, %c0_i32 : i32, i32, i32
  }
  func.func @transform_3(%arg0: i32, %arg1: i32) -> (i32, i32, i32) {
    %c0_i32 = arith.constant 0 : i32
    %c0_i32_0 = arith.constant 0 : i32
    %c0_i32_1 = arith.constant 0 : i32
    %c0_i32_2 = arith.constant 0 : i32
    return %c0_i32, %c0_i32_0, %c0_i32_1 : i32, i32, i32
  }
  func.func @transform_4(%arg0: i32, %arg1: i32) -> (i32, i32) {
    %c0_i32 = arith.constant 0 : i32
    %c0_i32_0 = arith.constant 0 : i32
    %c0_i32_1 = arith.constant 0 : i32
    return %c0_i32, %c0_i32_0 : i32, i32
  }
  func.func @transform_5(%arg0: i32, %arg1: i32) -> (i32, i32) {
    %c0_i32 = arith.constant 0 : i32
    %c0_i32_0 = arith.constant 0 : i32
    %c0_i32_1 = arith.constant 0 : i32
    return %c0_i32, %c0_i32_0 : i32, i32
  }
  func.func @transform_6(%arg0: i32, %arg1: i32) -> (i32, i32, i32) {
    %c0_i32 = arith.constant 0 : i32
    %c0_i32_0 = arith.constant 0 : i32
    return %arg0, %arg1, %c0_i32 : i32, i32, i32
  }
}

module attributes {stable_mosaic.version = 11 : i64} {
  func.func @_conv_strip_kernel(%arg0: i32, %arg1: i32, %arg2: memref<1x16x128xbf16, #tpu.memory_space<vmem>>, %arg3: memref<1x8x128xbf16, #tpu.memory_space<vmem>>, %arg4: memref<1x8x128xbf16, #tpu.memory_space<vmem>>, %arg5: memref<3x128x128xbf16, #tpu.memory_space<vmem>>, %arg6: memref<1x128xf32, #tpu.memory_space<vmem>>, %arg7: memref<1x16x128xbf16, #tpu.memory_space<vmem>>, %arg8: memref<1x16x128xbf16, #tpu.memory_space<vmem>>) attributes {dimension_semantics = [#tpu.dimension_semantics<parallel>, #tpu.dimension_semantics<parallel>], iteration_bounds = array<i64: 2, 1>, scalar_prefetch = 0 : i64, scratch_operands = 0 : i64, tpu.core_type = #tpu.core_type<tc>, window_params = [{transform_indices = @transform_0, window_bounds = array<i64: 1, 16, 128>}, {transform_indices = @transform_1, window_bounds = array<i64: 1, 8, 128>}, {transform_indices = @transform_2, window_bounds = array<i64: 1, 8, 128>}, {pipeline_mode = #tpu.pipeline_mode<synchronous>, transform_indices = @transform_3, window_bounds = array<i64: 3, 128, 128>}, {pipeline_mode = #tpu.pipeline_mode<synchronous>, transform_indices = @transform_4, window_bounds = array<i64: 1, 128>}, {transform_indices = @transform_5, window_bounds = array<i64: 1, 16, 128>}, {transform_indices = @transform_6, window_bounds = array<i64: 1, 16, 128>}]} {
    %c0 = arith.constant 0 : index
    %c0_0 = arith.constant 0 : index
    %c0_1 = arith.constant 0 : index
    %0 = vector.load %arg2[%c0, %c0_0, %c0_1] : memref<1x16x128xbf16, #tpu.memory_space<vmem>>, vector<1x16x128xbf16>
    %1 = vector.shape_cast %0 : vector<1x16x128xbf16> to vector<16x128xbf16>
    %c0_2 = arith.constant 0 : index
    %c0_3 = arith.constant 0 : index
    %c0_4 = arith.constant 0 : index
    %2 = vector.load %arg3[%c0_2, %c0_3, %c0_4] : memref<1x8x128xbf16, #tpu.memory_space<vmem>>, vector<1x8x128xbf16>
    %3 = vector.shape_cast %2 : vector<1x8x128xbf16> to vector<8x128xbf16>
    %c0_5 = arith.constant 0 : index
    %c0_6 = arith.constant 0 : index
    %c0_7 = arith.constant 0 : index
    %4 = vector.load %arg4[%c0_5, %c0_6, %c0_7] : memref<1x8x128xbf16, #tpu.memory_space<vmem>>, vector<1x8x128xbf16>
    %5 = vector.shape_cast %4 : vector<1x8x128xbf16> to vector<8x128xbf16>
    %c0_i32 = arith.constant 0 : i32
    %6 = arith.cmpi sgt, %arg1, %c0_i32 : i32
    %cst = arith.constant 0.000000e+00 : bf16
    %7 = vector.broadcast %cst : bf16 to vector<8x128xbf16>
    %8 = arith.select %6, %3, %7 : vector<8x128xbf16>
    %c1_i32 = arith.constant 1 : i32
    %9 = arith.addi %arg1, %c1_i32 : i32
    %c16_i32 = arith.constant 16 : i32
    %10 = arith.muli %9, %c16_i32 : i32
    %11 = tpu.iota {dimensions = array<i32: 0>} : vector<8x128xi32>
    %12 = vector.broadcast %10 : i32 to vector<8x128xi32>
    %13 = arith.addi %12, %11 : vector<8x128xi32>
    %c16_i32_8 = arith.constant 16 : i32
    %14 = vector.broadcast %c16_i32_8 : i32 to vector<8x128xi32>
    %15 = arith.cmpi slt, %13, %14 : vector<8x128xi32>
    %cst_9 = arith.constant 0.000000e+00 : bf16
    %16 = vector.broadcast %cst_9 : bf16 to vector<8x128xbf16>
    %17 = arith.select %15, %5, %16 : vector<8x128xi1>, vector<8x128xbf16>
    %18 = tpu.concatenate %8, %1, %17 in 0 : vector<8x128xbf16>, vector<16x128xbf16>, vector<8x128xbf16> -> vector<32x128xbf16>
    %cst_10 = arith.constant 0.000000e+00 : f32
    %19 = vector.broadcast %cst_10 : f32 to vector<16x128xf32>
    %20 = vector.extract_strided_slice %18 {offsets = [7, 0], sizes = [16, 128], strides = [1, 1]} : vector<32x128xbf16> to vector<16x128xbf16>
    %c0_11 = arith.constant 0 : index
    %c0_12 = arith.constant 0 : index
    %c0_13 = arith.constant 0 : index
    %21 = vector.load %arg5[%c0_11, %c0_12, %c0_13] : memref<3x128x128xbf16, #tpu.memory_space<vmem>>, vector<1x128x128xbf16>
    %22 = vector.shape_cast %21 : vector<1x128x128xbf16> to vector<128x128xbf16>
    %cst_14 = arith.constant dense<0.000000e+00> : vector<16x128xf32>
    %23 = tpu.matmul %20, %22, %cst_14 {dimension_numbers = #tpu.dot_dimension_numbers<[1], [0], [0], [1], [0, 0, 1, 1], [], []>} : vector<16x128xbf16>, vector<128x128xbf16>, vector<16x128xf32> -> vector<16x128xf32>
    %24 = arith.addf %19, %23 : vector<16x128xf32>
    %25 = vector.extract_strided_slice %18 {offsets = [8, 0], sizes = [16, 128], strides = [1, 1]} : vector<32x128xbf16> to vector<16x128xbf16>
    %c1 = arith.constant 1 : index
    %c0_15 = arith.constant 0 : index
    %c0_16 = arith.constant 0 : index
    %26 = vector.load %arg5[%c1, %c0_15, %c0_16] : memref<3x128x128xbf16, #tpu.memory_space<vmem>>, vector<1x128x128xbf16>
    %27 = vector.shape_cast %26 : vector<1x128x128xbf16> to vector<128x128xbf16>
    %cst_17 = arith.constant dense<0.000000e+00> : vector<16x128xf32>
    %28 = tpu.matmul %25, %27, %cst_17 {dimension_numbers = #tpu.dot_dimension_numbers<[1], [0], [0], [1], [0, 0, 1, 1], [], []>} : vector<16x128xbf16>, vector<128x128xbf16>, vector<16x128xf32> -> vector<16x128xf32>
    %29 = arith.addf %24, %28 : vector<16x128xf32>
    %30 = vector.extract_strided_slice %18 {offsets = [9, 0], sizes = [16, 128], strides = [1, 1]} : vector<32x128xbf16> to vector<16x128xbf16>
    %c2 = arith.constant 2 : index
    %c0_18 = arith.constant 0 : index
    %c0_19 = arith.constant 0 : index
    %31 = vector.load %arg5[%c2, %c0_18, %c0_19] : memref<3x128x128xbf16, #tpu.memory_space<vmem>>, vector<1x128x128xbf16>
    %32 = vector.shape_cast %31 : vector<1x128x128xbf16> to vector<128x128xbf16>
    %cst_20 = arith.constant dense<0.000000e+00> : vector<16x128xf32>
    %33 = tpu.matmul %30, %32, %cst_20 {dimension_numbers = #tpu.dot_dimension_numbers<[1], [0], [0], [1], [0, 0, 1, 1], [], []>} : vector<16x128xbf16>, vector<128x128xbf16>, vector<16x128xf32> -> vector<16x128xf32>
    %34 = arith.addf %29, %33 : vector<16x128xf32>
    %c0_21 = arith.constant 0 : index
    %c0_22 = arith.constant 0 : index
    %35 = vector.load %arg6[%c0_21, %c0_22] : memref<1x128xf32, #tpu.memory_space<vmem>>, vector<1x128xf32>
    %36 = vector.broadcast %35 : vector<1x128xf32> to vector<16x128xf32>
    %37 = arith.addf %34, %36 : vector<16x128xf32>
    %c0_23 = arith.constant 0 : index
    %c0_24 = arith.constant 0 : index
    %c0_25 = arith.constant 0 : index
    %38 = vector.load %arg7[%c0_23, %c0_24, %c0_25] : memref<1x16x128xbf16, #tpu.memory_space<vmem>>, vector<1x16x128xbf16>
    %39 = vector.shape_cast %38 : vector<1x16x128xbf16> to vector<16x128xbf16>
    %40 = arith.extf %39 : vector<16x128xbf16> to vector<16x128xf32>
    %41 = arith.addf %37, %40 : vector<16x128xf32>
    %42 = vector.shape_cast %41 : vector<16x128xf32> to vector<1x16x128xf32>
    %43 = arith.truncf %42 : vector<1x16x128xf32> to vector<1x16x128xbf16>
    %c0_26 = arith.constant 0 : index
    %c0_27 = arith.constant 0 : index
    %c0_28 = arith.constant 0 : index
    %44 = vector.load %arg8[%c0_26, %c0_27, %c0_28] : memref<1x16x128xbf16, #tpu.memory_space<vmem>>, vector<1x16x128xbf16>
    tpu.vector_store %arg8[%c0_26, %c0_27, %c0_28], %43 {strides = array<i32>} : memref<1x16x128xbf16, #tpu.memory_space<vmem>>, vector<1x16x128xbf16>,
    return
  }
  func.func @transform_0(%arg0: i32, %arg1: i32) -> (i32, i32, i32) {
    %c0_i32 = arith.constant 0 : i32
    %c0_i32_0 = arith.constant 0 : i32
    return %arg0, %arg1, %c0_i32 : i32, i32, i32
  }
  func.func @transform_1(%arg0: i32, %arg1: i32) -> (i32, i32, i32) {
    %c2_i32 = arith.constant 2 : i32
    %0 = arith.muli %arg1, %c2_i32 : i32
    %c1_i32 = arith.constant 1 : i32
    %1 = arith.subi %0, %c1_i32 : i32
    %c0_i32 = arith.constant 0 : i32
    %2 = arith.maxsi %1, %c0_i32 : i32
    %c0_i32_0 = arith.constant 0 : i32
    %c0_i32_1 = arith.constant 0 : i32
    return %arg0, %2, %c0_i32_0 : i32, i32, i32
  }
  func.func @transform_2(%arg0: i32, %arg1: i32) -> (i32, i32, i32) {
    %c1_i32 = arith.constant 1 : i32
    %0 = arith.addi %arg1, %c1_i32 : i32
    %c2_i32 = arith.constant 2 : i32
    %1 = arith.muli %0, %c2_i32 : i32
    %c1_i32_0 = arith.constant 1 : i32
    %2 = arith.minsi %1, %c1_i32_0 : i32
    %c0_i32 = arith.constant 0 : i32
    %c0_i32_1 = arith.constant 0 : i32
    return %arg0, %2, %c0_i32 : i32, i32, i32
  }
  func.func @transform_3(%arg0: i32, %arg1: i32) -> (i32, i32, i32) {
    %c0_i32 = arith.constant 0 : i32
    %c0_i32_0 = arith.constant 0 : i32
    %c0_i32_1 = arith.constant 0 : i32
    %c0_i32_2 = arith.constant 0 : i32
    return %c0_i32, %c0_i32_0, %c0_i32_1 : i32, i32, i32
  }
  func.func @transform_4(%arg0: i32, %arg1: i32) -> (i32, i32) {
    %c0_i32 = arith.constant 0 : i32
    %c0_i32_0 = arith.constant 0 : i32
    %c0_i32_1 = arith.constant 0 : i32
    return %c0_i32, %c0_i32_0 : i32, i32
  }
  func.func @transform_5(%arg0: i32, %arg1: i32) -> (i32, i32, i32) {
    %c0_i32 = arith.constant 0 : i32
    %c0_i32_0 = arith.constant 0 : i32
    return %arg0, %arg1, %c0_i32 : i32, i32, i32
  }
  func.func @transform_6(%arg0: i32, %arg1: i32) -> (i32, i32, i32) {
    %c0_i32 = arith.constant 0 : i32
    %c0_i32_0 = arith.constant 0 : i32
    return %arg0, %arg1, %c0_i32 : i32, i32, i32
  }
}

module attributes {stable_mosaic.version = 11 : i64} {
  func.func @_conv_strip_kernel(%arg0: i32, %arg1: i32, %arg2: memref<1x16x128xbf16, #tpu.memory_space<vmem>>, %arg3: memref<1x8x128xbf16, #tpu.memory_space<vmem>>, %arg4: memref<1x8x128xbf16, #tpu.memory_space<vmem>>, %arg5: memref<3x128x512xbf16, #tpu.memory_space<vmem>>, %arg6: memref<1x512xf32, #tpu.memory_space<vmem>>, %arg7: memref<1x1xf32, #tpu.memory_space<vmem>>, %arg8: memref<1x16x512xbf16, #tpu.memory_space<vmem>>) attributes {dimension_semantics = [#tpu.dimension_semantics<parallel>, #tpu.dimension_semantics<parallel>], iteration_bounds = array<i64: 2, 1>, scalar_prefetch = 0 : i64, scratch_operands = 0 : i64, tpu.core_type = #tpu.core_type<tc>, window_params = [{transform_indices = @transform_0, window_bounds = array<i64: 1, 16, 128>}, {transform_indices = @transform_1, window_bounds = array<i64: 1, 8, 128>}, {transform_indices = @transform_2, window_bounds = array<i64: 1, 8, 128>}, {pipeline_mode = #tpu.pipeline_mode<synchronous>, transform_indices = @transform_3, window_bounds = array<i64: 3, 128, 512>}, {pipeline_mode = #tpu.pipeline_mode<synchronous>, transform_indices = @transform_4, window_bounds = array<i64: 1, 512>}, {pipeline_mode = #tpu.pipeline_mode<synchronous>, transform_indices = @transform_5, window_bounds = array<i64: 1, 1>}, {transform_indices = @transform_6, window_bounds = array<i64: 1, 16, 512>}]} {
    %c0 = arith.constant 0 : index
    %c0_0 = arith.constant 0 : index
    %c0_1 = arith.constant 0 : index
    %0 = vector.load %arg2[%c0, %c0_0, %c0_1] : memref<1x16x128xbf16, #tpu.memory_space<vmem>>, vector<1x16x128xbf16>
    %1 = vector.shape_cast %0 : vector<1x16x128xbf16> to vector<16x128xbf16>
    %c0_2 = arith.constant 0 : index
    %c0_3 = arith.constant 0 : index
    %c0_4 = arith.constant 0 : index
    %2 = vector.load %arg3[%c0_2, %c0_3, %c0_4] : memref<1x8x128xbf16, #tpu.memory_space<vmem>>, vector<1x8x128xbf16>
    %3 = vector.shape_cast %2 : vector<1x8x128xbf16> to vector<8x128xbf16>
    %c0_5 = arith.constant 0 : index
    %c0_6 = arith.constant 0 : index
    %c0_7 = arith.constant 0 : index
    %4 = vector.load %arg4[%c0_5, %c0_6, %c0_7] : memref<1x8x128xbf16, #tpu.memory_space<vmem>>, vector<1x8x128xbf16>
    %5 = vector.shape_cast %4 : vector<1x8x128xbf16> to vector<8x128xbf16>
    %c0_i32 = arith.constant 0 : i32
    %6 = arith.cmpi sgt, %arg1, %c0_i32 : i32
    %cst = arith.constant 0.000000e+00 : bf16
    %7 = vector.broadcast %cst : bf16 to vector<8x128xbf16>
    %8 = arith.select %6, %3, %7 : vector<8x128xbf16>
    %c1_i32 = arith.constant 1 : i32
    %9 = arith.addi %arg1, %c1_i32 : i32
    %c16_i32 = arith.constant 16 : i32
    %10 = arith.muli %9, %c16_i32 : i32
    %11 = tpu.iota {dimensions = array<i32: 0>} : vector<8x128xi32>
    %12 = vector.broadcast %10 : i32 to vector<8x128xi32>
    %13 = arith.addi %12, %11 : vector<8x128xi32>
    %c16_i32_8 = arith.constant 16 : i32
    %14 = vector.broadcast %c16_i32_8 : i32 to vector<8x128xi32>
    %15 = arith.cmpi slt, %13, %14 : vector<8x128xi32>
    %cst_9 = arith.constant 0.000000e+00 : bf16
    %16 = vector.broadcast %cst_9 : bf16 to vector<8x128xbf16>
    %17 = arith.select %15, %5, %16 : vector<8x128xi1>, vector<8x128xbf16>
    %18 = tpu.concatenate %8, %1, %17 in 0 : vector<8x128xbf16>, vector<16x128xbf16>, vector<8x128xbf16> -> vector<32x128xbf16>
    %cst_10 = arith.constant 0.000000e+00 : f32
    %19 = vector.broadcast %cst_10 : f32 to vector<16x512xf32>
    %20 = vector.extract_strided_slice %18 {offsets = [7, 0], sizes = [16, 128], strides = [1, 1]} : vector<32x128xbf16> to vector<16x128xbf16>
    %c0_11 = arith.constant 0 : index
    %c0_12 = arith.constant 0 : index
    %c0_13 = arith.constant 0 : index
    %21 = vector.load %arg5[%c0_11, %c0_12, %c0_13] : memref<3x128x512xbf16, #tpu.memory_space<vmem>>, vector<1x128x512xbf16>
    %22 = vector.shape_cast %21 : vector<1x128x512xbf16> to vector<128x512xbf16>
    %cst_14 = arith.constant dense<0.000000e+00> : vector<16x512xf32>
    %23 = tpu.matmul %20, %22, %cst_14 {dimension_numbers = #tpu.dot_dimension_numbers<[1], [0], [0], [1], [0, 0, 1, 1], [], []>} : vector<16x128xbf16>, vector<128x512xbf16>, vector<16x512xf32> -> vector<16x512xf32>
    %24 = arith.addf %19, %23 : vector<16x512xf32>
    %25 = vector.extract_strided_slice %18 {offsets = [8, 0], sizes = [16, 128], strides = [1, 1]} : vector<32x128xbf16> to vector<16x128xbf16>
    %c1 = arith.constant 1 : index
    %c0_15 = arith.constant 0 : index
    %c0_16 = arith.constant 0 : index
    %26 = vector.load %arg5[%c1, %c0_15, %c0_16] : memref<3x128x512xbf16, #tpu.memory_space<vmem>>, vector<1x128x512xbf16>
    %27 = vector.shape_cast %26 : vector<1x128x512xbf16> to vector<128x512xbf16>
    %cst_17 = arith.constant dense<0.000000e+00> : vector<16x512xf32>
    %28 = tpu.matmul %25, %27, %cst_17 {dimension_numbers = #tpu.dot_dimension_numbers<[1], [0], [0], [1], [0, 0, 1, 1], [], []>} : vector<16x128xbf16>, vector<128x512xbf16>, vector<16x512xf32> -> vector<16x512xf32>
    %29 = arith.addf %24, %28 : vector<16x512xf32>
    %30 = vector.extract_strided_slice %18 {offsets = [9, 0], sizes = [16, 128], strides = [1, 1]} : vector<32x128xbf16> to vector<16x128xbf16>
    %c2 = arith.constant 2 : index
    %c0_18 = arith.constant 0 : index
    %c0_19 = arith.constant 0 : index
    %31 = vector.load %arg5[%c2, %c0_18, %c0_19] : memref<3x128x512xbf16, #tpu.memory_space<vmem>>, vector<1x128x512xbf16>
    %32 = vector.shape_cast %31 : vector<1x128x512xbf16> to vector<128x512xbf16>
    %cst_20 = arith.constant dense<0.000000e+00> : vector<16x512xf32>
    %33 = tpu.matmul %30, %32, %cst_20 {dimension_numbers = #tpu.dot_dimension_numbers<[1], [0], [0], [1], [0, 0, 1, 1], [], []>} : vector<16x128xbf16>, vector<128x512xbf16>, vector<16x512xf32> -> vector<16x512xf32>
    %34 = arith.addf %29, %33 : vector<16x512xf32>
    %c0_21 = arith.constant 0 : index
    %c0_22 = arith.constant 0 : index
    %35 = vector.load %arg6[%c0_21, %c0_22] : memref<1x512xf32, #tpu.memory_space<vmem>>, vector<1x512xf32>
    %36 = vector.broadcast %35 : vector<1x512xf32> to vector<16x512xf32>
    %37 = arith.addf %34, %36 : vector<16x512xf32>
    %c0_23 = arith.constant 0 : index
    %c0_24 = arith.constant 0 : index
    %38 = vector.load %arg7[%c0_23, %c0_24] : memref<1x1xf32, #tpu.memory_space<vmem>>, vector<1x1xf32>
    %39 = vector.extract %38[0, 0] : f32 from vector<1x1xf32>
    %cst_25 = arith.constant 0.000000e+00 : f32
    %40 = vector.broadcast %cst_25 : f32 to vector<16x512xf32>
    %41 = arith.cmpf oge, %37, %40 : vector<16x512xf32>
    %42 = vector.broadcast %39 : f32 to vector<16x512xf32>
    %43 = arith.mulf %42, %37 : vector<16x512xf32>
    %44 = arith.select %41, %37, %43 : vector<16x512xi1>, vector<16x512xf32>
    %45 = vector.shape_cast %44 : vector<16x512xf32> to vector<1x16x512xf32>
    %46 = arith.truncf %45 : vector<1x16x512xf32> to vector<1x16x512xbf16>
    %c0_26 = arith.constant 0 : index
    %c0_27 = arith.constant 0 : index
    %c0_28 = arith.constant 0 : index
    %47 = vector.load %arg8[%c0_26, %c0_27, %c0_28] : memref<1x16x512xbf16, #tpu.memory_space<vmem>>, vector<1x16x512xbf16>
    tpu.vector_store %arg8[%c0_26, %c0_27, %c0_28], %46 {strides = array<i32>} : memref<1x16x512xbf16, #tpu.memory_space<vmem>>, vector<1x16x512xbf16>,
    return
  }
  func.func @transform_0(%arg0: i32, %arg1: i32) -> (i32, i32, i32) {
    %c0_i32 = arith.constant 0 : i32
    %c0_i32_0 = arith.constant 0 : i32
    return %arg0, %arg1, %c0_i32 : i32, i32, i32
  }
  func.func @transform_1(%arg0: i32, %arg1: i32) -> (i32, i32, i32) {
    %c2_i32 = arith.constant 2 : i32
    %0 = arith.muli %arg1, %c2_i32 : i32
    %c1_i32 = arith.constant 1 : i32
    %1 = arith.subi %0, %c1_i32 : i32
    %c0_i32 = arith.constant 0 : i32
    %2 = arith.maxsi %1, %c0_i32 : i32
    %c0_i32_0 = arith.constant 0 : i32
    %c0_i32_1 = arith.constant 0 : i32
    return %arg0, %2, %c0_i32_0 : i32, i32, i32
  }
  func.func @transform_2(%arg0: i32, %arg1: i32) -> (i32, i32, i32) {
    %c1_i32 = arith.constant 1 : i32
    %0 = arith.addi %arg1, %c1_i32 : i32
    %c2_i32 = arith.constant 2 : i32
    %1 = arith.muli %0, %c2_i32 : i32
    %c1_i32_0 = arith.constant 1 : i32
    %2 = arith.minsi %1, %c1_i32_0 : i32
    %c0_i32 = arith.constant 0 : i32
    %c0_i32_1 = arith.constant 0 : i32
    return %arg0, %2, %c0_i32 : i32, i32, i32
  }
  func.func @transform_3(%arg0: i32, %arg1: i32) -> (i32, i32, i32) {
    %c0_i32 = arith.constant 0 : i32
    %c0_i32_0 = arith.constant 0 : i32
    %c0_i32_1 = arith.constant 0 : i32
    %c0_i32_2 = arith.constant 0 : i32
    return %c0_i32, %c0_i32_0, %c0_i32_1 : i32, i32, i32
  }
  func.func @transform_4(%arg0: i32, %arg1: i32) -> (i32, i32) {
    %c0_i32 = arith.constant 0 : i32
    %c0_i32_0 = arith.constant 0 : i32
    %c0_i32_1 = arith.constant 0 : i32
    return %c0_i32, %c0_i32_0 : i32, i32
  }
  func.func @transform_5(%arg0: i32, %arg1: i32) -> (i32, i32) {
    %c0_i32 = arith.constant 0 : i32
    %c0_i32_0 = arith.constant 0 : i32
    %c0_i32_1 = arith.constant 0 : i32
    return %c0_i32, %c0_i32_0 : i32, i32
  }
  func.func @transform_6(%arg0: i32, %arg1: i32) -> (i32, i32, i32) {
    %c0_i32 = arith.constant 0 : i32
    %c0_i32_0 = arith.constant 0 : i32
    return %arg0, %arg1, %c0_i32 : i32, i32, i32
  }
}

module attributes {stable_mosaic.version = 11 : i64} {
  func.func @_conv_strip_kernel(%arg0: i32, %arg1: i32, %arg2: memref<1x32x256xbf16, #tpu.memory_space<vmem>>, %arg3: memref<1x8x256xbf16, #tpu.memory_space<vmem>>, %arg4: memref<1x8x256xbf16, #tpu.memory_space<vmem>>, %arg5: memref<5x256x96xbf16, #tpu.memory_space<vmem>>, %arg6: memref<1x96xf32, #tpu.memory_space<vmem>>, %arg7: memref<1x32x96xf32, #tpu.memory_space<vmem>>) attributes {dimension_semantics = [#tpu.dimension_semantics<parallel>, #tpu.dimension_semantics<parallel>], iteration_bounds = array<i64: 2, 1>, scalar_prefetch = 0 : i64, scratch_operands = 0 : i64, tpu.core_type = #tpu.core_type<tc>, window_params = [{transform_indices = @transform_0, window_bounds = array<i64: 1, 32, 256>}, {transform_indices = @transform_1, window_bounds = array<i64: 1, 8, 256>}, {transform_indices = @transform_2, window_bounds = array<i64: 1, 8, 256>}, {pipeline_mode = #tpu.pipeline_mode<synchronous>, transform_indices = @transform_3, window_bounds = array<i64: 5, 256, 96>}, {pipeline_mode = #tpu.pipeline_mode<synchronous>, transform_indices = @transform_4, window_bounds = array<i64: 1, 96>}, {transform_indices = @transform_5, window_bounds = array<i64: 1, 32, 96>}]} {
    %c0 = arith.constant 0 : index
    %c0_0 = arith.constant 0 : index
    %c0_1 = arith.constant 0 : index
    %0 = vector.load %arg2[%c0, %c0_0, %c0_1] : memref<1x32x256xbf16, #tpu.memory_space<vmem>>, vector<1x32x256xbf16>
    %1 = vector.shape_cast %0 : vector<1x32x256xbf16> to vector<32x256xbf16>
    %c0_2 = arith.constant 0 : index
    %c0_3 = arith.constant 0 : index
    %c0_4 = arith.constant 0 : index
    %2 = vector.load %arg3[%c0_2, %c0_3, %c0_4] : memref<1x8x256xbf16, #tpu.memory_space<vmem>>, vector<1x8x256xbf16>
    %3 = vector.shape_cast %2 : vector<1x8x256xbf16> to vector<8x256xbf16>
    %c0_5 = arith.constant 0 : index
    %c0_6 = arith.constant 0 : index
    %c0_7 = arith.constant 0 : index
    %4 = vector.load %arg4[%c0_5, %c0_6, %c0_7] : memref<1x8x256xbf16, #tpu.memory_space<vmem>>, vector<1x8x256xbf16>
    %5 = vector.shape_cast %4 : vector<1x8x256xbf16> to vector<8x256xbf16>
    %c0_i32 = arith.constant 0 : i32
    %6 = arith.cmpi sgt, %arg1, %c0_i32 : i32
    %cst = arith.constant 0.000000e+00 : bf16
    %7 = vector.broadcast %cst : bf16 to vector<8x256xbf16>
    %8 = arith.select %6, %3, %7 : vector<8x256xbf16>
    %c1_i32 = arith.constant 1 : i32
    %9 = arith.addi %arg1, %c1_i32 : i32
    %c32_i32 = arith.constant 32 : i32
    %10 = arith.muli %9, %c32_i32 : i32
    %11 = tpu.iota {dimensions = array<i32: 0>} : vector<8x256xi32>
    %12 = vector.broadcast %10 : i32 to vector<8x256xi32>
    %13 = arith.addi %12, %11 : vector<8x256xi32>
    %c32_i32_8 = arith.constant 32 : i32
    %14 = vector.broadcast %c32_i32_8 : i32 to vector<8x256xi32>
    %15 = arith.cmpi slt, %13, %14 : vector<8x256xi32>
    %cst_9 = arith.constant 0.000000e+00 : bf16
    %16 = vector.broadcast %cst_9 : bf16 to vector<8x256xbf16>
    %17 = arith.select %15, %5, %16 : vector<8x256xi1>, vector<8x256xbf16>
    %18 = tpu.concatenate %8, %1, %17 in 0 : vector<8x256xbf16>, vector<32x256xbf16>, vector<8x256xbf16> -> vector<48x256xbf16>
    %cst_10 = arith.constant 0.000000e+00 : f32
    %19 = vector.broadcast %cst_10 : f32 to vector<32x96xf32>
    %20 = vector.extract_strided_slice %18 {offsets = [6, 0], sizes = [32, 256], strides = [1, 1]} : vector<48x256xbf16> to vector<32x256xbf16>
    %c0_11 = arith.constant 0 : index
    %c0_12 = arith.constant 0 : index
    %c0_13 = arith.constant 0 : index
    %21 = vector.load %arg5[%c0_11, %c0_12, %c0_13] : memref<5x256x96xbf16, #tpu.memory_space<vmem>>, vector<1x256x96xbf16>
    %22 = vector.shape_cast %21 : vector<1x256x96xbf16> to vector<256x96xbf16>
    %cst_14 = arith.constant dense<0.000000e+00> : vector<32x96xf32>
    %23 = tpu.matmul %20, %22, %cst_14 {dimension_numbers = #tpu.dot_dimension_numbers<[1], [0], [0], [1], [0, 0, 1, 1], [], []>} : vector<32x256xbf16>, vector<256x96xbf16>, vector<32x96xf32> -> vector<32x96xf32>
    %24 = arith.addf %19, %23 : vector<32x96xf32>
    %25 = vector.extract_strided_slice %18 {offsets = [7, 0], sizes = [32, 256], strides = [1, 1]} : vector<48x256xbf16> to vector<32x256xbf16>
    %c1 = arith.constant 1 : index
    %c0_15 = arith.constant 0 : index
    %c0_16 = arith.constant 0 : index
    %26 = vector.load %arg5[%c1, %c0_15, %c0_16] : memref<5x256x96xbf16, #tpu.memory_space<vmem>>, vector<1x256x96xbf16>
    %27 = vector.shape_cast %26 : vector<1x256x96xbf16> to vector<256x96xbf16>
    %cst_17 = arith.constant dense<0.000000e+00> : vector<32x96xf32>
    %28 = tpu.matmul %25, %27, %cst_17 {dimension_numbers = #tpu.dot_dimension_numbers<[1], [0], [0], [1], [0, 0, 1, 1], [], []>} : vector<32x256xbf16>, vector<256x96xbf16>, vector<32x96xf32> -> vector<32x96xf32>
    %29 = arith.addf %24, %28 : vector<32x96xf32>
    %30 = vector.extract_strided_slice %18 {offsets = [8, 0], sizes = [32, 256], strides = [1, 1]} : vector<48x256xbf16> to vector<32x256xbf16>
    %c2 = arith.constant 2 : index
    %c0_18 = arith.constant 0 : index
    %c0_19 = arith.constant 0 : index
    %31 = vector.load %arg5[%c2, %c0_18, %c0_19] : memref<5x256x96xbf16, #tpu.memory_space<vmem>>, vector<1x256x96xbf16>
    %32 = vector.shape_cast %31 : vector<1x256x96xbf16> to vector<256x96xbf16>
    %cst_20 = arith.constant dense<0.000000e+00> : vector<32x96xf32>
    %33 = tpu.matmul %30, %32, %cst_20 {dimension_numbers = #tpu.dot_dimension_numbers<[1], [0], [0], [1], [0, 0, 1, 1], [], []>} : vector<32x256xbf16>, vector<256x96xbf16>, vector<32x96xf32> -> vector<32x96xf32>
    %34 = arith.addf %29, %33 : vector<32x96xf32>
    %35 = vector.extract_strided_slice %18 {offsets = [9, 0], sizes = [32, 256], strides = [1, 1]} : vector<48x256xbf16> to vector<32x256xbf16>
    %c3 = arith.constant 3 : index
    %c0_21 = arith.constant 0 : index
    %c0_22 = arith.constant 0 : index
    %36 = vector.load %arg5[%c3, %c0_21, %c0_22] : memref<5x256x96xbf16, #tpu.memory_space<vmem>>, vector<1x256x96xbf16>
    %37 = vector.shape_cast %36 : vector<1x256x96xbf16> to vector<256x96xbf16>
    %cst_23 = arith.constant dense<0.000000e+00> : vector<32x96xf32>
    %38 = tpu.matmul %35, %37, %cst_23 {dimension_numbers = #tpu.dot_dimension_numbers<[1], [0], [0], [1], [0, 0, 1, 1], [], []>} : vector<32x256xbf16>, vector<256x96xbf16>, vector<32x96xf32> -> vector<32x96xf32>
    %39 = arith.addf %34, %38 : vector<32x96xf32>
    %40 = vector.extract_strided_slice %18 {offsets = [10, 0], sizes = [32, 256], strides = [1, 1]} : vector<48x256xbf16> to vector<32x256xbf16>
    %c4 = arith.constant 4 : index
    %c0_24 = arith.constant 0 : index
    %c0_25 = arith.constant 0 : index
    %41 = vector.load %arg5[%c4, %c0_24, %c0_25] : memref<5x256x96xbf16, #tpu.memory_space<vmem>>, vector<1x256x96xbf16>
    %42 = vector.shape_cast %41 : vector<1x256x96xbf16> to vector<256x96xbf16>
    %cst_26 = arith.constant dense<0.000000e+00> : vector<32x96xf32>
    %43 = tpu.matmul %40, %42, %cst_26 {dimension_numbers = #tpu.dot_dimension_numbers<[1], [0], [0], [1], [0, 0, 1, 1], [], []>} : vector<32x256xbf16>, vector<256x96xbf16>, vector<32x96xf32> -> vector<32x96xf32>
    %44 = arith.addf %39, %43 : vector<32x96xf32>
    %c0_27 = arith.constant 0 : index
    %c0_28 = arith.constant 0 : index
    %45 = vector.load %arg6[%c0_27, %c0_28] : memref<1x96xf32, #tpu.memory_space<vmem>>, vector<1x96xf32>
    %46 = vector.broadcast %45 : vector<1x96xf32> to vector<32x96xf32>
    %47 = arith.addf %44, %46 : vector<32x96xf32>
    %48 = math.tanh %47 : vector<32x96xf32>
    %49 = vector.shape_cast %48 : vector<32x96xf32> to vector<1x32x96xf32>
    %c0_29 = arith.constant 0 : index
    %c0_30 = arith.constant 0 : index
    %c0_31 = arith.constant 0 : index
    %50 = vector.load %arg7[%c0_29, %c0_30, %c0_31] : memref<1x32x96xf32, #tpu.memory_space<vmem>>, vector<1x32x96xf32>
    tpu.vector_store %arg7[%c0_29, %c0_30, %c0_31], %49 {strides = array<i32>} : memref<1x32x96xf32, #tpu.memory_space<vmem>>, vector<1x32x96xf32>,
    return
  }
  func.func @transform_0(%arg0: i32, %arg1: i32) -> (i32, i32, i32) {
    %c0_i32 = arith.constant 0 : i32
    %c0_i32_0 = arith.constant 0 : i32
    return %arg0, %arg1, %c0_i32 : i32, i32, i32
  }
  func.func @transform_1(%arg0: i32, %arg1: i32) -> (i32, i32, i32) {
    %c4_i32 = arith.constant 4 : i32
    %0 = arith.muli %arg1, %c4_i32 : i32
    %c1_i32 = arith.constant 1 : i32
    %1 = arith.subi %0, %c1_i32 : i32
    %c0_i32 = arith.constant 0 : i32
    %2 = arith.maxsi %1, %c0_i32 : i32
    %c0_i32_0 = arith.constant 0 : i32
    %c0_i32_1 = arith.constant 0 : i32
    return %arg0, %2, %c0_i32_0 : i32, i32, i32
  }
  func.func @transform_2(%arg0: i32, %arg1: i32) -> (i32, i32, i32) {
    %c1_i32 = arith.constant 1 : i32
    %0 = arith.addi %arg1, %c1_i32 : i32
    %c4_i32 = arith.constant 4 : i32
    %1 = arith.muli %0, %c4_i32 : i32
    %c3_i32 = arith.constant 3 : i32
    %2 = arith.minsi %1, %c3_i32 : i32
    %c0_i32 = arith.constant 0 : i32
    %c0_i32_0 = arith.constant 0 : i32
    return %arg0, %2, %c0_i32 : i32, i32, i32
  }
  func.func @transform_3(%arg0: i32, %arg1: i32) -> (i32, i32, i32) {
    %c0_i32 = arith.constant 0 : i32
    %c0_i32_0 = arith.constant 0 : i32
    %c0_i32_1 = arith.constant 0 : i32
    %c0_i32_2 = arith.constant 0 : i32
    return %c0_i32, %c0_i32_0, %c0_i32_1 : i32, i32, i32
  }
  func.func @transform_4(%arg0: i32, %arg1: i32) -> (i32, i32) {
    %c0_i32 = arith.constant 0 : i32
    %c0_i32_0 = arith.constant 0 : i32
    %c0_i32_1 = arith.constant 0 : i32
    return %c0_i32, %c0_i32_0 : i32, i32
  }
  func.func @transform_5(%arg0: i32, %arg1: i32) -> (i32, i32, i32) {
    %c0_i32 = arith.constant 0 : i32
    %c0_i32_0 = arith.constant 0 : i32
    return %arg0, %arg1, %c0_i32 : i32, i32, i32
  }
}

</mosaic_0001>

<llo_original>
// kernel: sr_resnet_forward.4
$region0: #{sr_resnet_forward.4}
  #allocation0 [shape = 'u32[]', space=smem, size = 0x4, offset = 0x4, fixed_abs, tag = 'smem constant byte address 0x4 - core index']
  #allocation1 [shape = 'u32[144,128]{1,0:T(1,128)}', space=vmem, size = 0x12000, scoped, tag = 'internal scratch']
  #allocation2 [shape = 'f32[1,1]{1,0:T(1,128)S(1)}', space=vmem, size = 0x200, scoped, tag = 'scoped memory for sr_resnet_forward.4']
  %s0 = inlined_call_operand.vmem [shape: bf16[2,16,48], index: 0, kind: input, shape index: {}, may-alias: {0,1,2}]
  %s1 = inlined_call_operand.vmem [shape: bf16[2,16,48], index: 1, kind: input, shape index: {}, may-alias: {0,1,2}]
  %s2 = inlined_call_operand.vmem [shape: bf16[2,16,48], index: 2, kind: input, shape index: {}, may-alias: {0,1,2}]
  %s3 = inlined_call_operand.hbm [shape: bf16[5,48,128], index: 3, kind: input, shape index: {}]
  %s4 = inlined_call_operand.vmem [shape: f32[1,128], index: 4, kind: input, shape index: {}]
  %s5 = inlined_call_operand.<no memory space> [shape: f32[1,1], index: 5, kind: input, shape index: {}]
  %s6 = inlined_call_operand.vmem [shape: bf16[2,16,128], index: 6, kind: output, shape index: {}]
  %s7 = sld [smem:[#allocation0]]
  $region61: #{sr_resnet_forward.4} parent=0
    _
  %s9 = ssub.s32 1, %s7
  %s10 = scalar_select 0, %s9, %s7
  %v11 = vstv %s5
  %12 = vst [vmem:[#allocation2] sm:$0x1] %v11
  $region1: #{sr_resnet_forward.4} parent=0
    #allocation3 [shape = 'u8[61440]{0}', space=vmem, size = 0xf000, scoped, tag = 'input window, operand 3, single buffered']
    #allocation4 [shape = 's32[2]{0}', space=sflag, size = 0x8, scoped, tag = 'scoped memory for sr_resnet_forward.4']
    %13 = vsyncpa [#allocation4], 0
    loop: start=0, step=1, limit=4
    $region2: #{sr_resnet_forward.4} parent=1 // loop_pre_header
      _
    $region3: #{sr_resnet_forward.4} parent=1 // loop_header
      %s15 = sphi 0, %s19
      %p16 = scmp.ge.s32.totalorder %s15, 4
      %s22 = sphi 0, %s34
      %s23 = sphi 0, %s30
      %s24 = sphi 0, %s22
      %s25 = sphi 0, %s23
      %s26 = sphi 0, %s24
      %s27 = sphi 0, %s25
      %s39 = sphi 0, %s41
      %s42 = sphi 0, %s39
      %s43 = sphi 0, %s42
      %s59 = sphi 0, %s43
      %s75 = sphi 0, %s77
      %s78 = sphi 0, %s75
      %s79 = sphi 0, %s78
      %s95 = sphi 0, %s79
      %s111 = sphi 0, %s113
      %s114 = sphi 0, %s111
      %s115 = sphi 0, %s114
      %s131 = sphi 0, %s115
      %s135 = sphi 0, %s135
      %s137 = sphi 0, %s135
      %s138 = sphi 0, %s137
      %s152 = sphi 0, %s138
      %s156 = sphi 0, %s156
      %s158 = sphi 0, %s156
      %s159 = sphi 0, %s158
      %s173 = sphi 0, %s159
      %s177 = sphi 0, %s177
      %s179 = sphi 0, %s177
      %s180 = sphi 0, %s179
      %s194 = sphi 0, %s180
      %s202 = sphi 0, %s204
      %s205 = sphi 0, %s202
      %s206 = sphi 0, %s205
      %s222 = sphi 0, %s206
    $region4: #{sr_resnet_forward.4} parent=1 // loop_header_branch
      %18 = sbr.rel (%p16) target = $region8
    $region5: #{sr_resnet_forward.4} parent=1 // loop_body
      %s20 = ssub.s32 %s15, 1
      %s21 = ssub.s32 %s15, 2
      %s28 = sadd.s32 1, %s23
      %p29 = scmp.ge.s32.totalorder %s28, 1
      %s30 = scalar_select %p29, 0, %s28
      %s31 = sadd.s32 1, %s22
      %s32 = scalar_select %p29, %s31, %s22
      %p33 = scmp.ge.s32.totalorder %s32, 2
      %s34 = scalar_select %p33, 0, %s32
      %s35 = ssub.s32 %s22, %s34
      %s36 = ssub.s32 %s23, %s30
      %s37 = sor.u32 %s35, %s36
      %p38 = scmp.eq.s32.totalorder %s37, 0
      %s40 = sadd.s32 %s39, 1
      %s41 = scalar_select %p38, %s39, %s40
      %p44 = pneg %p38
      %p45 = scmp.eq.s32.totalorder %s15, 1
      %p46 = por %p44, %p45
      %p47 = scmp.ne.s32.totalorder %s39, %s42
      %p48 = scmp.eq.s32.totalorder %s15, 0
      %p49 = por %p47, %p48
      %p50 = scmp.ne.s32.totalorder %s39, %s42
      %p51 = scmp.eq.s32.totalorder %s20, 1
      %p52 = por %p50, %p51
      %p53 = scmp.ne.s32.totalorder %s42, %s43
      %p54 = scmp.eq.s32.totalorder %s20, 0
      %p55 = por %p53, %p54
      %p56 = scmp.ne.s32.totalorder %s42, %s43
      %p57 = scmp.eq.s32.totalorder %s21, 1
      %p58 = por %p56, %p57
      %p60 = scmp.ne.s32.totalorder %s43, %s59
      %p61 = scmp.eq.s32.totalorder %s21, 0
      %p62 = por %p60, %p61
      %s63 = smul.u32 %s23, 2
      %s64 = ssub.s32 %s63, 1
      %p65 = scmp.gt.s32.totalorder %s64, 0
      %s66 = scalar_select %p65, %s64, 0
      %s67 = smul.u32 %s30, 2
      %s68 = ssub.s32 %s67, 1
      %p69 = scmp.gt.s32.totalorder %s68, 0
      %s70 = scalar_select %p69, %s68, 0
      %s71 = ssub.s32 %s22, %s34
      %s72 = ssub.s32 %s66, %s70
      %s73 = sor.u32 %s71, %s72
      %p74 = scmp.eq.s32.totalorder %s73, 0
      %s76 = sadd.s32 %s75, 1
      %s77 = scalar_select %p74, %s75, %s76
      %p80 = pneg %p74
      %p81 = scmp.eq.s32.totalorder %s15, 1
      %p82 = por %p80, %p81
      %p83 = scmp.ne.s32.totalorder %s75, %s78
      %p84 = scmp.eq.s32.totalorder %s15, 0
      %p85 = por %p83, %p84
      %p86 = scmp.ne.s32.totalorder %s75, %s78
      %p87 = scmp.eq.s32.totalorder %s20, 1
      %p88 = por %p86, %p87
      %p89 = scmp.ne.s32.totalorder %s78, %s79
      %p90 = scmp.eq.s32.totalorder %s20, 0
      %p91 = por %p89, %p90
      %p92 = scmp.ne.s32.totalorder %s78, %s79
      %p93 = scmp.eq.s32.totalorder %s21, 1
      %p94 = por %p92, %p93
      %p96 = scmp.ne.s32.totalorder %s79, %s95
      %p97 = scmp.eq.s32.totalorder %s21, 0
      %p98 = por %p96, %p97
      %s99 = sadd.s32 %s23, 1
      %s100 = smul.u32 %s99, 2
      %p101 = scmp.lt.s32.totalorder %s100, 1
      %s102 = scalar_select %p101, %s100, 1
      %s103 = sadd.s32 %s30, 1
      %s104 = smul.u32 %s103, 2
      %p105 = scmp.lt.s32.totalorder %s104, 1
      %s106 = scalar_select %p105, %s104, 1
      %s107 = ssub.s32 %s22, %s34
      %s108 = ssub.s32 %s102, %s106
      %s109 = sor.u32 %s107, %s108
      %p110 = scmp.eq.s32.totalorder %s109, 0
      %s112 = sadd.s32 %s111, 1
      %s113 = scalar_select %p110, %s111, %s112
      %p116 = pneg %p110
      %p117 = scmp.eq.s32.totalorder %s15, 1
      %p118 = por %p116, %p117
      %p119 = scmp.ne.s32.totalorder %s111, %s114
      %p120 = scmp.eq.s32.totalorder %s15, 0
      %p121 = por %p119, %p120
      %p122 = scmp.ne.s32.totalorder %s111, %s114
      %p123 = scmp.eq.s32.totalorder %s20, 1
      %p124 = por %p122, %p123
      %p125 = scmp.ne.s32.totalorder %s114, %s115
      %p126 = scmp.eq.s32.totalorder %s20, 0
      %p127 = por %p125, %p126
      %p128 = scmp.ne.s32.totalorder %s114, %s115
      %p129 = scmp.eq.s32.totalorder %s21, 1
      %p130 = por %p128, %p129
      %p132 = scmp.ne.s32.totalorder %s115, %s131
      %p133 = scmp.eq.s32.totalorder %s21, 0
      %p134 = por %p132, %p133
      %s136 = sadd.s32 %s135, 1
      %p139 = scmp.eq.s32.totalorder %s15, 1
      %p140 = scmp.ne.s32.totalorder %s135, %s137
      %p141 = scmp.eq.s32.totalorder %s15, 0
      %p142 = por %p140, %p141
      %p143 = scmp.ne.s32.totalorder %s135, %s137
      %p144 = scmp.eq.s32.totalorder %s20, 1
      %p145 = por %p143, %p144
      %p146 = scmp.ne.s32.totalorder %s137, %s138
      %p147 = scmp.eq.s32.totalorder %s20, 0
      %p148 = por %p146, %p147
      %p149 = scmp.ne.s32.totalorder %s137, %s138
      %p150 = scmp.eq.s32.totalorder %s21, 1
      %p151 = por %p149, %p150
      %p153 = scmp.ne.s32.totalorder %s138, %s152
      %p154 = scmp.eq.s32.totalorder %s21, 0
      %p155 = por %p153, %p154
      %s157 = sadd.s32 %s156, 1
      %p160 = scmp.eq.s32.totalorder %s15, 1
      %p161 = scmp.ne.s32.totalorder %s156, %s158
      %p162 = scmp.eq.s32.totalorder %s15, 0
      %p163 = por %p161, %p162
      %p164 = scmp.ne.s32.totalorder %s156, %s158
      %p165 = scmp.eq.s32.totalorder %s20, 1
      %p166 = por %p164, %p165
      %p167 = scmp.ne.s32.totalorder %s158, %s159
      %p168 = scmp.eq.s32.totalorder %s20, 0
      %p169 = por %p167, %p168
      %p170 = scmp.ne.s32.totalorder %s158, %s159
      %p171 = scmp.eq.s32.totalorder %s21, 1
      %p172 = por %p170, %p171
      %p174 = scmp.ne.s32.totalorder %s159, %s173
      %p175 = scmp.eq.s32.totalorder %s21, 0
      %p176 = por %p174, %p175
      %s178 = sadd.s32 %s177, 1
      %p181 = scmp.eq.s32.totalorder %s15, 1
      %p182 = scmp.ne.s32.totalorder %s177, %s179
      %p183 = scmp.eq.s32.totalorder %s15, 0
      %p184 = por %p182, %p183
      %p185 = scmp.ne.s32.totalorder %s177, %s179
      %p186 = scmp.eq.s32.totalorder %s20, 1
      %p187 = por %p185, %p186
      %p188 = scmp.ne.s32.totalorder %s179, %s180
      %p189 = scmp.eq.s32.totalorder %s20, 0
      %p190 = por %p188, %p189
      %p191 = scmp.ne.s32.totalorder %s179, %s180
      %p192 = scmp.eq.s32.totalorder %s21, 1
      %p193 = por %p191, %p192
      %p195 = scmp.ne.s32.totalorder %s180, %s194
      %p196 = scmp.eq.s32.totalorder %s21, 0
      %p197 = por %p195, %p196
      %s198 = ssub.s32 %s22, %s34
      %s199 = ssub.s32 %s23, %s30
      %s200 = sor.u32 %s198, %s199
      %p201 = scmp.eq.s32.totalorder %s200, 0
      %s203 = sadd.s32 %s202, 1
      %s204 = scalar_select %p201, %s202, %s203
      %p207 = pneg %p201
      %p208 = scmp.eq.s32.totalorder %s15, 1
      %p209 = por %p207, %p208
      %p210 = scmp.ne.s32.totalorder %s202, %s205
      %p211 = scmp.eq.s32.totalorder %s15, 0
      %p212 = por %p210, %p211
      %p213 = scmp.ne.s32.totalorder %s202, %s205
      %p214 = scmp.eq.s32.totalorder %s20, 1
      %p215 = por %p213, %p214
      %p216 = scmp.ne.s32.totalorder %s205, %s206
      %p217 = scmp.eq.s32.totalorder %s20, 0
      %p218 = por %p216, %p217
      %p219 = scmp.ne.s32.totalorder %s205, %s206
      %p220 = scmp.eq.s32.totalorder %s21, 1
      %p221 = por %p219, %p220
      %p223 = scmp.ne.s32.totalorder %s206, %s222
      %p224 = scmp.eq.s32.totalorder %s21, 0
      %p225 = por %p223, %p224
      %p226 = scmp.le.s32.totalorder 1, %s15
      %p227 = scmp.lt.s32.totalorder %s15, 3
      %p228 = pnand %p226, %p227
      %p229 = pneg %p228
      // Predicated region
      $region9: #{sr_resnet_forward.4} parent=5 // pred_check
        _
      $region10: #{sr_resnet_forward.4} parent=5 // pred_check_branch
        %231 = sbr.rel (%p228) target = $region12
      $region11: #{sr_resnet_forward.4} parent=5 // pred_region
        %s232 = ssub.s32 %s15, 1
        // Predicated region
        $region13: #{sr_resnet_forward.4} parent=11 // pred_check
          %p233 = pneg %p148
        $region14: #{sr_resnet_forward.4} parent=11 // pred_check_branch
          %235 = sbr.rel (%p233) target = $region16
        $region15: #{sr_resnet_forward.4} parent=11 // pred_region
          %s237 = ssub.s32 1920, 1920
          %238 = vsyncadd [#allocation4], %s237
          %s239 = sshll.u32 [#allocation3], 4
          %s240 = int_to_ptr.vmem [resolvable:$true] %s239
          %245 = dma.hbm_to_vmem [thread:$0]  %s3, 1920, %s240, [#allocation4], 64, 64, 4
        $region16: #{sr_resnet_forward.4} parent=11 // pred_fallthru
          _
        // Predicated region
        $region17: #{sr_resnet_forward.4} parent=11 // pred_check
          %p246 = pneg %p169
        $region18: #{sr_resnet_forward.4} parent=11 // pred_check_branch
          %248 = sbr.rel (%p246) target = $region20
        $region19: #{sr_resnet_forward.4} parent=11 // pred_region
          _
        $region20: #{sr_resnet_forward.4} parent=11 // pred_fallthru
          _
        // Predicated region
        $region21: #{sr_resnet_forward.4} parent=11 // pred_check
          %p249 = pneg %p190
        $region22: #{sr_resnet_forward.4} parent=11 // pred_check_branch
          %251 = sbr.rel (%p249) target = $region24
        $region23: #{sr_resnet_forward.4} parent=11 // pred_region
          _
        $region24: #{sr_resnet_forward.4} parent=11 // pred_fallthru
          _
      $region12: #{sr_resnet_forward.4} parent=5 // pred_fallthru
        _
      %p252 = scmp.lt.s32.totalorder %s15, 2
      // Predicated region
      $region25: #{sr_resnet_forward.4} parent=5 // pred_check
        %p253 = pneg %p252
      $region26: #{sr_resnet_forward.4} parent=5 // pred_check_branch
        %255 = sbr.rel (%p253) target = $region28
      $region27: #{sr_resnet_forward.4} parent=5 // pred_region
        // Predicated region
        $region29: #{sr_resnet_forward.4} parent=27 // pred_check
          %p256 = pneg %p49
        $region30: #{sr_resnet_forward.4} parent=27 // pred_check_branch
          %258 = sbr.rel (%p256) target = $region32
        $region31: #{sr_resnet_forward.4} parent=27 // pred_region
          %s259 = smul.u32 2, %s23
          %p260 = scmp.lt.s32.totalorder %s22, 1
          %s261 = scalar_select %p260, %s22, 1
          %p262 = scmp.lt.s32.totalorder %s259, 1
          %s263 = scalar_select %p262, %s259, 1
          %s264 = smul.addr %s261, 2
          %s265 = sadd.s32 %s263, %s264
          %s266 = smul.addr %s265, 4
          %s267 = scalar_lea.vmem %s0, %s266
          %s268 = smul.u32 2, %s23
        $region32: #{sr_resnet_forward.4} parent=27 // pred_fallthru
          _
        // Predicated region
        $region33: #{sr_resnet_forward.4} parent=27 // pred_check
          %p269 = pneg %p85
        $region34: #{sr_resnet_forward.4} parent=27 // pred_check_branch
          %271 = sbr.rel (%p269) target = $region36
        $region35: #{sr_resnet_forward.4} parent=27 // pred_region
          %s272 = smul.u32 %s23, 2
          %s273 = ssub.s32 %s272, 1
          %p274 = scmp.gt.s32.totalorder %s273, 0
          %s275 = scalar_select %p274, %s273, 0
          %p276 = scmp.lt.s32.totalorder %s22, 1
          %s277 = scalar_select %p276, %s22, 1
          %p278 = scmp.lt.s32.totalorder %s275, 1
          %s279 = scalar_select %p278, %s275, 1
          %s280 = smul.addr %s277, 2
          %s281 = sadd.s32 %s279, %s280
          %s282 = smul.addr %s281, 4
          %s283 = scalar_lea.vmem %s1, %s282
          %s284 = smul.u32 %s23, 2
          %s285 = ssub.s32 %s284, 1
          %p286 = scmp.gt.s32.totalorder %s285, 0
          %s287 = scalar_select %p286, %s285, 0
        $region36: #{sr_resnet_forward.4} parent=27 // pred_fallthru
          _
        // Predicated region
        $region37: #{sr_resnet_forward.4} parent=27 // pred_check
          %p288 = pneg %p121
        $region38: #{sr_resnet_forward.4} parent=27 // pred_check_branch
          %290 = sbr.rel (%p288) target = $region40
        $region39: #{sr_resnet_forward.4} parent=27 // pred_region
          %s291 = sadd.s32 %s23, 1
          %s292 = smul.u32 %s291, 2
          %p293 = scmp.lt.s32.totalorder %s292, 1
          %s294 = scalar_select %p293, %s292, 1
          %p295 = scmp.lt.s32.totalorder %s22, 1
          %s296 = scalar_select %p295, %s22, 1
          %p297 = scmp.lt.s32.totalorder %s294, 1
          %s298 = scalar_select %p297, %s294, 1
          %s299 = smul.addr %s296, 2
          %s300 = sadd.s32 %s298, %s299
          %s301 = smul.addr %s300, 4
          %s302 = scalar_lea.vmem %s2, %s301
          %s303 = sadd.s32 %s23, 1
          %s304 = smul.u32 %s303, 2
          %p305 = scmp.lt.s32.totalorder %s304, 1
          %s306 = scalar_select %p305, %s304, 1
        $region40: #{sr_resnet_forward.4} parent=27 // pred_fallthru
          _
      $region28: #{sr_resnet_forward.4} parent=5 // pred_fallthru
        _
      %p307 = scmp.le.s32.totalorder 1, %s15
      %p308 = scmp.lt.s32.totalorder %s15, 3
      %p309 = pnand %p307, %p308
      %p310 = pneg %p309
      // Predicated region
      $region41: #{sr_resnet_forward.4} parent=5 // pred_check
        _
      $region42: #{sr_resnet_forward.4} parent=5 // pred_check_branch
        %312 = sbr.rel (%p309) target = $region44
      $region43: #{sr_resnet_forward.4} parent=5 // pred_region
        %s313 = ssub.s32 %s15, 1
        // Predicated region
        $region45: #{sr_resnet_forward.4} parent=43 // pred_check
          %p314 = pneg %p148
        $region46: #{sr_resnet_forward.4} parent=43 // pred_check_branch
          %316 = sbr.rel (%p314) target = $region48
        $region47: #{sr_resnet_forward.4} parent=43 // pred_region
          %317 = dma.done [#allocation4], 1920
        $region48: #{sr_resnet_forward.4} parent=43 // pred_fallthru
          _
        %s318 = smul.u32 2, %s25
        %p319 = scmp.lt.s32.totalorder %s24, 1
        %s320 = scalar_select %p319, %s24, 1
        %p321 = scmp.lt.s32.totalorder %s318, 1
        %s322 = scalar_select %p321, %s318, 1
        %s323 = smul.addr %s320, 2
        %s324 = sadd.s32 %s322, %s323
        %s325 = smul.addr %s324, 4
        %s326 = scalar_lea.vmem %s0, %s325
        %p327 = pneg %p55
        %p328 = pneg %p52
        %s329 = smul.u32 %s25, 2
        %s330 = ssub.s32 %s329, 1
        %p331 = scmp.gt.s32.totalorder %s330, 0
        %s332 = scalar_select %p331, %s330, 0
        %p333 = scmp.lt.s32.totalorder %s24, 1
        %s334 = scalar_select %p333, %s24, 1
        %p335 = scmp.lt.s32.totalorder %s332, 1
        %s336 = scalar_select %p335, %s332, 1
        %s337 = smul.addr %s334, 2
        %s338 = sadd.s32 %s336, %s337
        %s339 = smul.addr %s338, 4
        %s340 = scalar_lea.vmem %s1, %s339
        %p341 = pneg %p91
        %p342 = pneg %p88
        %s343 = sadd.s32 %s25, 1
        %s344 = smul.u32 %s343, 2
        %p345 = scmp.lt.s32.totalorder %s344, 1
        %s346 = scalar_select %p345, %s344, 1
        %p347 = scmp.lt.s32.totalorder %s24, 1
        %s348 = scalar_select %p347, %s24, 1
        %p349 = scmp.lt.s32.totalorder %s346, 1
        %s350 = scalar_select %p349, %s346, 1
        %s351 = smul.addr %s348, 2
        %s352 = sadd.s32 %s350, %s351
        %s353 = smul.addr %s352, 4
        %s354 = scalar_lea.vmem %s2, %s353
        %p355 = pneg %p127
        %p356 = pneg %p124
        %p357 = pneg %p148
        %p358 = pneg %p145
        %p359 = pneg %p169
        %p360 = pneg %p166
        %p361 = pneg %p190
        %p362 = pneg %p187
        %p363 = pneg %p218
        %p364 = pneg %p215
        %s365 = smul.u32 2, %s25
        %p366 = scmp.lt.s32.totalorder %s24, 1
        %s367 = scalar_select %p366, %s24, 1
        %p368 = scmp.lt.s32.totalorder %s365, 1
        %s369 = scalar_select %p368, %s365, 1
        %s370 = smul.addr %s367, 2
        %s371 = sadd.s32 %s369, %s370
        %s372 = smul.addr %s371, 4
        %s373 = scalar_lea.vmem %s6, %s372
        %s374 = smul.u32 2, %s25
        %p375 = scmp.lt.s32.totalorder %s24, 1
        %s376 = scalar_select %p375, %s24, 1
        %p377 = scmp.lt.s32.totalorder %s374, 1
        %s378 = scalar_select %p377, %s374, 1
        %s379 = smul.addr %s376, 2
        %s380 = sadd.s32 %s378, %s379
        %s381 = smul.addr %s380, 4
        %s382 = scalar_lea.vmem %s0, %s381
        %s383 = smul.u32 2, %s25
        %s384 = smul.u32 %s25, 2
        %s385 = ssub.s32 %s384, 1
        %p386 = scmp.gt.s32.totalorder %s385, 0
        %s387 = scalar_select %p386, %s385, 0
        %p388 = scmp.lt.s32.totalorder %s24, 1
        %s389 = scalar_select %p388, %s24, 1
        %p390 = scmp.lt.s32.totalorder %s387, 1
        %s391 = scalar_select %p390, %s387, 1
        %s392 = smul.addr %s389, 2
        %s393 = sadd.s32 %s391, %s392
        %s394 = smul.addr %s393, 4
        %s395 = scalar_lea.vmem %s1, %s394
        %s396 = smul.u32 %s25, 2
        %s397 = ssub.s32 %s396, 1
        %p398 = scmp.gt.s32.totalorder %s397, 0
        %s399 = scalar_select %p398, %s397, 0
        %s400 = sadd.s32 %s25, 1
        %s401 = smul.u32 %s400, 2
        %p402 = scmp.lt.s32.totalorder %s401, 1
        %s403 = scalar_select %p402, %s401, 1
        %p404 = scmp.lt.s32.totalorder %s24, 1
        %s405 = scalar_select %p404, %s24, 1
        %p406 = scmp.lt.s32.totalorder %s403, 1
        %s407 = scalar_select %p406, %s403, 1
        %s408 = smul.addr %s405, 2
        %s409 = sadd.s32 %s407, %s408
        %s410 = smul.addr %s409, 4
        %s411 = scalar_lea.vmem %s2, %s410
        %s412 = sadd.s32 %s25, 1
        %s413 = smul.u32 %s412, 2
        %p414 = scmp.lt.s32.totalorder %s413, 1
        %s415 = scalar_select %p414, %s413, 1
        %s416 = smul.u32 2, %s25
        %p417 = scmp.lt.s32.totalorder %s24, 1
        %s418 = scalar_select %p417, %s24, 1
        %p419 = scmp.lt.s32.totalorder %s416, 1
        %s420 = scalar_select %p419, %s416, 1
        %s421 = smul.addr %s418, 2
        %s422 = sadd.s32 %s420, %s421
        %s423 = smul.addr %s422, 4
        %s424 = scalar_lea.vmem %s6, %s423
        %s425 = smul.u32 2, %s25
        %v427 = vld [vmem:[%s382] sm:$0xf]
        %v428 = vld [vmem:[%s382 + $0x4] sm:$0xf]
        %v429 = vld [vmem:[%s395] sm:$0xf]
        %v430 = vld [vmem:[%s411] sm:$0xf]
        %p431 = scmp.gt.s32.totalorder %s25, 0
        %s432 = scalar_select %p431, 1, 0
        %v433 = vstv %s432
        %vm434 = vcmp.eq.s32.totalorder %v433, 1
        %v435 = vsel %vm434, %v429, 0
        %s436 = sadd.s32 %s25, 1
        %s437 = smul.u32 %s436, 16
        %v438 = vlaneseq
        %v439 = vshrl.u32 %v438, 7
        %v440 = vstv %s437
        %v441 = vadd.s32 %v440, %v439
        %vm442 = vcmp.lt.s32.totalorder %v441, 16
        %vm443 = vmpackc.low %vm442, %vm442
        %v444 = vsel %vm443, %v430, 0
        %v447 = vunpack.c.l.b16 %v427
        %v448 = vunpack.c.l.b16 %v428
        %v449 = vpack.c.b16 %v447, %v447
        %v450 = vpack.c.b16 %v448, %v448
        %v452 = vunpack.c.l.b16 %v444
        %v453 = vpack.c.b16 %v452, %v452
        %vm454 = vcmask 1043456
        %v457 = vsel %vm454, %v435, %v449
        %v460 = vsel %vm454, %v450, %v453
        %v461 = vld [vmem:[#allocation3] sm:$0xf]
        %v462 = vld [vmem:[#allocation3 + $0x4] sm:$0xf]
        %v463 = vld [vmem:[#allocation3 + $0x8] sm:$0xf]
        %v464 = vld [vmem:[#allocation3 + $0xc] sm:$0xf]
        %v465 = vld [vmem:[#allocation3 + $0x10] sm:$0xf]
        %v466 = vld [vmem:[#allocation3 + $0x14] sm:$0xf]
        %s467 = scalar_lea.vmem [#allocation3], 24
        %v468 = vld [vmem:[%s467] sm:$0xf]
        %v469 = vld [vmem:[%s467 + $0x4] sm:$0xf]
        %v470 = vld [vmem:[%s467 + $0x8] sm:$0xf]
        %v471 = vld [vmem:[%s467 + $0xc] sm:$0xf]
        %v472 = vld [vmem:[%s467 + $0x10] sm:$0xf]
        %v473 = vld [vmem:[%s467 + $0x14] sm:$0xf]
        %vm474 = vsmask.f32 4352
        %v475 = vshrl.u32 %v457, 16
        %v477 = vrot.slane %v475, 3
        %v478 = vshll.u32 %v457, 16
        %v480 = vrot.slane %v478, 4
        %v481 = vor.u32 %v477, %v480
        %v482 = vshrl.u32 %v460, 16
        %v484 = vrot.slane %v482, 3
        %v485 = vshll.u32 %v460, 16
        %v487 = vrot.slane %v485, 4
        %v488 = vor.u32 %v484, %v487
        %v489 = vsel %vm474, %v481, %v488
        %v496 = vunpack.c.l.b16 %v468
        %v497 = vunpack.c.l.b16 %v469
        %v498 = vunpack.c.l.b16 %v470
        %v499 = vunpack.c.l.b16 %v471
        %v500 = vunpack.c.l.b16 %v472
        %v501 = vunpack.c.l.b16 %v473
        %v502 = vpack.c.b16 %v497, %v496
        %v503 = vpack.c.b16 %v499, %v498
        %v504 = vpack.c.b16 %v501, %v500
        %vm508 = vcmask 392192
        %v510 = vsel %vm508, %v489, 0
        %512 = vmatprep.subr.bf16.mxu0 0
        %513 = vmatpush1.bf16.msra.mxu0 %v502
        %514 = vmatprep.subr.bf16.mxu0 0
        %515 = vmatpush1.bf16.msra.mxu0 %v503
        %516 = vmatprep.subr.bf16.mxu0 0
        %517 = vmatpush1.bf16.msra.mxu0 %v504
        %518 = vmatprep.subr.bf16.mxu0 0
        %519 = vmatpush1.bf16.msra.mxu0 0
        %520 = vmatprep.subr.bf16.mxu0 0
        %521 = vmatpush1.bf16.msra.mxu0 0
        %522 = vmatprep.subr.bf16.mxu0 0
        %523 = vmatpush1.bf16.msra.mxu0 0
        %524 = vmatprep.subr.bf16.mxu0 0
        %525 = vmatpush1.bf16.msra.mxu0 0
        %526 = vmatprep.subr.bf16.mxu0 0
        %527 = vmatpush1.bf16.msra.mxu0 0
        %528 = vmatprep.subr.bf16.mxu0 0
        %529 = vmatpush1.bf16.msra.mxu0 0
        %530 = vmatprep.subr.bf16.mxu0 0
        %531 = vmatpush1.bf16.msra.mxu0 0
        %532 = vmatprep.subr.bf16.mxu0 0
        %533 = vmatpush1.bf16.msra.mxu0 0
        %534 = vmatprep.subr.bf16.mxu0 0
        %535 = vmatpush1.bf16.msra.mxu0 0
        %536 = vmatprep.subr.bf16.mxu0 0
        %537 = vmatpush1.bf16.msra.mxu0 0
        %538 = vmatprep.subr.bf16.mxu0 0
        %539 = vmatpush1.bf16.msra.mxu0 0
        %540 = vmatprep.subr.bf16.mxu0 0
        %541 = vmatpush1.bf16.msra.mxu0 0
        %542 = vmatprep.subr.bf16.mxu0 0
        %543 = vmatpush1.bf16.msra.mxu0 0
        %544 = vmatprep.mubr.bf16.mxu0 0
        %545 = vmatmul.mubr.bf16.gmra.mrb[0].mxu0 %v510
        %v546 = vpop.f32.mrb[0].mxu0
        %v547 = vadd.f32 0.0, %v546
        %v548 = vpop.f32.mrb[0].mxu0
        %v549 = vpop.f32.mrb[0].mxu0
        %v550 = vadd.f32 0.0, %v549
        %v551 = vpop.f32.mrb[0].mxu0
        %552 = vdwg.mxu0
        %vm555 = vcmask 1044480
        %v556 = vrot.slane %v457, 3
        %v557 = vrot.slane %v460, 3
        %v558 = vsel %vm555, %v556, %v557
        %v565 = vunpack.c.l.b16 %v461
        %v566 = vunpack.c.l.b16 %v462
        %v567 = vunpack.c.l.b16 %v463
        %v568 = vunpack.c.l.b16 %v464
        %v569 = vunpack.c.l.b16 %v465
        %v570 = vunpack.c.l.b16 %v466
        %v571 = vpack.c.b16 %v566, %v565
        %v572 = vpack.c.b16 %v568, %v567
        %v573 = vpack.c.b16 %v570, %v569
        %v578 = vsel %vm508, %v558, 0
        %580 = vmatprep.subr.bf16.mxu0 0
        %581 = vmatpush1.bf16.msra.mxu0 %v571
        %582 = vmatprep.subr.bf16.mxu0 0
        %583 = vmatpush1.bf16.msra.mxu0 %v572
        %584 = vmatprep.subr.bf16.mxu0 0
        %585 = vmatpush1.bf16.msra.mxu0 %v573
        %586 = vmatprep.subr.bf16.mxu0 0
        %587 = vmatpush1.bf16.msra.mxu0 0
        %588 = vmatprep.subr.bf16.mxu0 0
        %589 = vmatpush1.bf16.msra.mxu0 0
        %590 = vmatprep.subr.bf16.mxu0 0
        %591 = vmatpush1.bf16.msra.mxu0 0
        %592 = vmatprep.subr.bf16.mxu0 0
        %593 = vmatpush1.bf16.msra.mxu0 0
        %594 = vmatprep.subr.bf16.mxu0 0
        %595 = vmatpush1.bf16.msra.mxu0 0
        %596 = vmatprep.subr.bf16.mxu0 0
        %597 = vmatpush1.bf16.msra.mxu0 0
        %598 = vmatprep.subr.bf16.mxu0 0
        %599 = vmatpush1.bf16.msra.mxu0 0
        %600 = vmatprep.subr.bf16.mxu0 0
        %601 = vmatpush1.bf16.msra.mxu0 0
        %602 = vmatprep.subr.bf16.mxu0 0
        %603 = vmatpush1.bf16.msra.mxu0 0
        %604 = vmatprep.subr.bf16.mxu0 0
        %605 = vmatpush1.bf16.msra.mxu0 0
        %606 = vmatprep.subr.bf16.mxu0 0
        %607 = vmatpush1.bf16.msra.mxu0 0
        %608 = vmatprep.subr.bf16.mxu0 0
        %609 = vmatpush1.bf16.msra.mxu0 0
        %610 = vmatprep.subr.bf16.mxu0 0
        %611 = vmatpush1.bf16.msra.mxu0 0
        %612 = vmatprep.mubr.bf16.mxu0 0
        %613 = vmatmul.mubr.bf16.gmra.mrb[0].mxu0 %v578
        %v614 = vpop.f32.mrb[0].mxu0
        %v615 = vadd.f32 %v547, %v614
        %v616 = vpop.f32.mrb[0].mxu0
        %v617 = vpop.f32.mrb[0].mxu0
        %v618 = vadd.f32 %v550, %v617
        %v619 = vpop.f32.mrb[0].mxu0
        %620 = vdwg.mxu0
        %s621 = scalar_lea.vmem [#allocation3], 48
        %v622 = vld [vmem:[%s621] sm:$0xf]
        %v623 = vld [vmem:[%s621 + $0x4] sm:$0xf]
        %v624 = vld [vmem:[%s621 + $0x8] sm:$0xf]
        %v625 = vld [vmem:[%s621 + $0xc] sm:$0xf]
        %v626 = vld [vmem:[%s621 + $0x10] sm:$0xf]
        %v627 = vld [vmem:[%s621 + $0x14] sm:$0xf]
        %vm628 = vcmask 1043456
        %v629 = vrot.slane %v457, 4
        %v630 = vrot.slane %v460, 4
        %v631 = vsel %vm628, %v629, %v630
        %v638 = vunpack.c.l.b16 %v622
        %v639 = vunpack.c.l.b16 %v623
        %v640 = vunpack.c.l.b16 %v624
        %v641 = vunpack.c.l.b16 %v625
        %v642 = vunpack.c.l.b16 %v626
        %v643 = vunpack.c.l.b16 %v627
        %v644 = vpack.c.b16 %v639, %v638
        %v645 = vpack.c.b16 %v641, %v640
        %v646 = vpack.c.b16 %v643, %v642
        %v651 = vsel %vm508, %v631, 0
        %653 = vmatprep.subr.bf16.mxu0 0
        %654 = vmatpush1.bf16.msra.mxu0 %v644
        %655 = vmatprep.subr.bf16.mxu0 0
        %656 = vmatpush1.bf16.msra.mxu0 %v645
        %657 = vmatprep.subr.bf16.mxu0 0
        %658 = vmatpush1.bf16.msra.mxu0 %v646
        %659 = vmatprep.subr.bf16.mxu0 0
        %660 = vmatpush1.bf16.msra.mxu0 0
        %661 = vmatprep.subr.bf16.mxu0 0
        %662 = vmatpush1.bf16.msra.mxu0 0
        %663 = vmatprep.subr.bf16.mxu0 0
        %664 = vmatpush1.bf16.msra.mxu0 0
        %665 = vmatprep.subr.bf16.mxu0 0
        %666 = vmatpush1.bf16.msra.mxu0 0
        %667 = vmatprep.subr.bf16.mxu0 0
        %668 = vmatpush1.bf16.msra.mxu0 0
        %669 = vmatprep.subr.bf16.mxu0 0
        %670 = vmatpush1.bf16.msra.mxu0 0
        %671 = vmatprep.subr.bf16.mxu0 0
        %672 = vmatpush1.bf16.msra.mxu0 0
        %673 = vmatprep.subr.bf16.mxu0 0
        %674 = vmatpush1.bf16.msra.mxu0 0
        %675 = vmatprep.subr.bf16.mxu0 0
        %676 = vmatpush1.bf16.msra.mxu0 0
        %677 = vmatprep.subr.bf16.mxu0 0
        %678 = vmatpush1.bf16.msra.mxu0 0
        %679 = vmatprep.subr.bf16.mxu0 0
        %680 = vmatpush1.bf16.msra.mxu0 0
        %681 = vmatprep.subr.bf16.mxu0 0
        %682 = vmatpush1.bf16.msra.mxu0 0
        %683 = vmatprep.subr.bf16.mxu0 0
        %684 = vmatpush1.bf16.msra.mxu0 0
        %685 = vmatprep.mubr.bf16.mxu0 0
        %686 = vmatmul.mubr.bf16.gmra.mrb[0].mxu0 %v651
        %v687 = vpop.f32.mrb[0].mxu0
        %v688 = vadd.f32 0.0, %v687
        %v689 = vpop.f32.mrb[0].mxu0
        %v690 = vpop.f32.mrb[0].mxu0
        %v691 = vadd.f32 0.0, %v690
        %v692 = vpop.f32.mrb[0].mxu0
        %693 = vdwg.mxu0
        %v694 = vadd.f32 %v615, %v688
        %v695 = vadd.f32 %v618, %v691
        %s696 = scalar_lea.vmem [#allocation3], 72
        %v697 = vld [vmem:[%s696] sm:$0xf]
        %v698 = vld [vmem:[%s696 + $0x4] sm:$0xf]
        %v699 = vld [vmem:[%s696 + $0x8] sm:$0xf]
        %v700 = vld [vmem:[%s696 + $0xc] sm:$0xf]
        %v701 = vld [vmem:[%s696 + $0x10] sm:$0xf]
        %v702 = vld [vmem:[%s696 + $0x14] sm:$0xf]
        %vm703 = vsmask.f32 3328
        %v704 = vrot.slane %v475, 4
        %v705 = vrot.slane %v478, 5
        %v706 = vor.u32 %v704, %v705
        %v707 = vrot.slane %v482, 4
        %v708 = vrot.slane %v485, 5
        %v709 = vor.u32 %v707, %v708
        %v710 = vsel %vm703, %v706, %v709
        %v717 = vunpack.c.l.b16 %v697
        %v718 = vunpack.c.l.b16 %v698
        %v719 = vunpack.c.l.b16 %v699
        %v720 = vunpack.c.l.b16 %v700
        %v721 = vunpack.c.l.b16 %v701
        %v722 = vunpack.c.l.b16 %v702
        %v723 = vpack.c.b16 %v718, %v717
        %v724 = vpack.c.b16 %v720, %v719
        %v725 = vpack.c.b16 %v722, %v721
        %v730 = vsel %vm508, %v710, 0
        %732 = vmatprep.subr.bf16.mxu0 0
        %733 = vmatpush1.bf16.msra.mxu0 %v723
        %734 = vmatprep.subr.bf16.mxu0 0
        %735 = vmatpush1.bf16.msra.mxu0 %v724
        %736 = vmatprep.subr.bf16.mxu0 0
        %737 = vmatpush1.bf16.msra.mxu0 %v725
        %738 = vmatprep.subr.bf16.mxu0 0
        %739 = vmatpush1.bf16.msra.mxu0 0
        %740 = vmatprep.subr.bf16.mxu0 0
        %741 = vmatpush1.bf16.msra.mxu0 0
        %742 = vmatprep.subr.bf16.mxu0 0
        %743 = vmatpush1.bf16.msra.mxu0 0
        %744 = vmatprep.subr.bf16.mxu0 0
        %745 = vmatpush1.bf16.msra.mxu0 0
        %746 = vmatprep.subr.bf16.mxu0 0
        %747 = vmatpush1.bf16.msra.mxu0 0
        %748 = vmatprep.subr.bf16.mxu0 0
        %749 = vmatpush1.bf16.msra.mxu0 0
        %750 = vmatprep.subr.bf16.mxu0 0
        %751 = vmatpush1.bf16.msra.mxu0 0
        %752 = vmatprep.subr.bf16.mxu0 0
        %753 = vmatpush1.bf16.msra.mxu0 0
        %754 = vmatprep.subr.bf16.mxu0 0
        %755 = vmatpush1.bf16.msra.mxu0 0
        %756 = vmatprep.subr.bf16.mxu0 0
        %757 = vmatpush1.bf16.msra.mxu0 0
        %758 = vmatprep.subr.bf16.mxu0 0
        %759 = vmatpush1.bf16.msra.mxu0 0
        %760 = vmatprep.subr.bf16.mxu0 0
        %761 = vmatpush1.bf16.msra.mxu0 0
        %762 = vmatprep.subr.bf16.mxu0 0
        %763 = vmatpush1.bf16.msra.mxu0 0
        %764 = vmatprep.mubr.bf16.mxu0 0
        %765 = vmatmul.mubr.bf16.gmra.mrb[0].mxu0 %v730
        %v766 = vpop.f32.mrb[0].mxu0
        %v767 = vadd.f32 0.0, %v766
        %v768 = vpop.f32.mrb[0].mxu0
        %v769 = vpop.f32.mrb[0].mxu0
        %v770 = vadd.f32 0.0, %v769
        %v771 = vpop.f32.mrb[0].mxu0
        %772 = vdwg.mxu0
        %v773 = vadd.f32 %v694, %v767
        %v774 = vadd.f32 %v695, %v770
        %s775 = scalar_lea.vmem [#allocation3], 96
        %v776 = vld [vmem:[%s775] sm:$0xf]
        %v777 = vld [vmem:[%s775 + $0x4] sm:$0xf]
        %v778 = vld [vmem:[%s775 + $0x8] sm:$0xf]
        %v779 = vld [vmem:[%s775 + $0xc] sm:$0xf]
        %v780 = vld [vmem:[%s775 + $0x10] sm:$0xf]
        %v781 = vld [vmem:[%s775 + $0x14] sm:$0xf]
        %vm782 = vcmask 1042432
        %v783 = vrot.slane %v457, 5
        %v784 = vrot.slane %v460, 5
        %v785 = vsel %vm782, %v783, %v784
        %v792 = vunpack.c.l.b16 %v776
        %v793 = vunpack.c.l.b16 %v777
        %v794 = vunpack.c.l.b16 %v778
        %v795 = vunpack.c.l.b16 %v779
        %v796 = vunpack.c.l.b16 %v780
        %v797 = vunpack.c.l.b16 %v781
        %v798 = vpack.c.b16 %v793, %v792
        %v799 = vpack.c.b16 %v795, %v794
        %v800 = vpack.c.b16 %v797, %v796
        %v805 = vsel %vm508, %v785, 0
        %807 = vmatprep.subr.bf16.mxu0 0
        %808 = vmatpush1.bf16.msra.mxu0 %v798
        %809 = vmatprep.subr.bf16.mxu0 0
        %810 = vmatpush1.bf16.msra.mxu0 %v799
        %811 = vmatprep.subr.bf16.mxu0 0
        %812 = vmatpush1.bf16.msra.mxu0 %v800
        %813 = vmatprep.subr.bf16.mxu0 0
        %814 = vmatpush1.bf16.msra.mxu0 0
        %815 = vmatprep.subr.bf16.mxu0 0
        %816 = vmatpush1.bf16.msra.mxu0 0
        %817 = vmatprep.subr.bf16.mxu0 0
        %818 = vmatpush1.bf16.msra.mxu0 0
        %819 = vmatprep.subr.bf16.mxu0 0
        %820 = vmatpush1.bf16.msra.mxu0 0
        %821 = vmatprep.subr.bf16.mxu0 0
        %822 = vmatpush1.bf16.msra.mxu0 0
        %823 = vmatprep.subr.bf16.mxu0 0
        %824 = vmatpush1.bf16.msra.mxu0 0
        %825 = vmatprep.subr.bf16.mxu0 0
        %826 = vmatpush1.bf16.msra.mxu0 0
        %827 = vmatprep.subr.bf16.mxu0 0
        %828 = vmatpush1.bf16.msra.mxu0 0
        %829 = vmatprep.subr.bf16.mxu0 0
        %830 = vmatpush1.bf16.msra.mxu0 0
        %831 = vmatprep.subr.bf16.mxu0 0
        %832 = vmatpush1.bf16.msra.mxu0 0
        %833 = vmatprep.subr.bf16.mxu0 0
        %834 = vmatpush1.bf16.msra.mxu0 0
        %835 = vmatprep.subr.bf16.mxu0 0
        %836 = vmatpush1.bf16.msra.mxu0 0
        %837 = vmatprep.subr.bf16.mxu0 0
        %838 = vmatpush1.bf16.msra.mxu0 0
        %839 = vmatprep.mubr.bf16.mxu0 0
        %840 = vmatmul.mubr.bf16.gmra.mrb[0].mxu0 %v805
        %v841 = vpop.f32.mrb[0].mxu0
        %v842 = vadd.f32 0.0, %v841
        %v843 = vpop.f32.mrb[0].mxu0
        %v844 = vpop.f32.mrb[0].mxu0
        %v845 = vadd.f32 0.0, %v844
        %v846 = vpop.f32.mrb[0].mxu0
        %847 = vdwg.mxu0
        %v848 = vadd.f32 %v773, %v842
        %v849 = vadd.f32 %v774, %v845
        %v850 = vld [vmem:[%s4] sm:$0x1]
        %v852 = vlaneseq
        %v853 = vshrl.u32 %v852, 7
        %v854 = vsub.s32 0, %v853
        %v855 = vrot.slane %v850, %v854
        %v857 = vadd.f32 %v848, %v855
        %v858 = vadd.f32 %v849, %v855
        %v859 = vld [vmem:[#allocation2] sm:$0x1]
        %s860 = vtos %v859
        %vm861 = vcmp.ge.f32.partialorder %v857, 0.0
        %vm862 = vcmp.ge.f32.partialorder %v858, 0.0
        %v863 = vstv %s860
        %v864 = vmul.f32 %v863, %v857
        %v865 = vmul.f32 %v863, %v858
        %v866 = vsel %vm861, %v857, %v864
        %v867 = vsel %vm862, %v858, %v865
        %v868 = vpack.c.bf16 %v867, %v866
        %v870 = vunpack.c.l.b16 %v868
        %v871 = vunpack.c.h.b16 %v868
        %v872 = vpack.c.b16 %v870, %v870
        %v873 = vpack.c.b16 %v871, %v871
        %876 = vst [vmem:[%s424] sm:$0xf] %v872
        %877 = vst [vmem:[%s424 + $0x4] sm:$0xf] %v873
        %s878 = smul.u32 2, %s25
        %p879 = scmp.lt.s32.totalorder %s24, 1
        %s880 = scalar_select %p879, %s24, 1
        %p881 = scmp.lt.s32.totalorder %s878, 1
        %s882 = scalar_select %p881, %s878, 1
        %s883 = smul.addr %s880, 2
        %s884 = sadd.s32 %s882, %s883
        %s885 = smul.addr %s884, 4
        %s886 = scalar_lea.vmem %s6, %s885
        // Predicated region
        $region49: #{sr_resnet_forward.4} parent=43 // pred_check
          %p887 = pneg %p215
        $region50: #{sr_resnet_forward.4} parent=43 // pred_check_branch
          %889 = sbr.rel (%p887) target = $region52
        $region51: #{sr_resnet_forward.4} parent=43 // pred_region
          %s890 = smul.u32 2, %s25
        $region52: #{sr_resnet_forward.4} parent=43 // pred_fallthru
          _
      $region44: #{sr_resnet_forward.4} parent=5 // pred_fallthru
        _
      %p891 = scmp.le.s32.totalorder 2, %s15
      // Predicated region
      $region53: #{sr_resnet_forward.4} parent=5 // pred_check
        %p892 = pneg %p891
      $region54: #{sr_resnet_forward.4} parent=5 // pred_check_branch
        %894 = sbr.rel (%p892) target = $region56
      $region55: #{sr_resnet_forward.4} parent=5 // pred_region
        %s895 = ssub.s32 %s15, 2
        // Predicated region
        $region57: #{sr_resnet_forward.4} parent=55 // pred_check
          %p896 = pneg %p221
        $region58: #{sr_resnet_forward.4} parent=55 // pred_check_branch
          %898 = sbr.rel (%p896) target = $region60
        $region59: #{sr_resnet_forward.4} parent=55 // pred_region
          %s899 = smul.u32 2, %s27
          %p900 = scmp.lt.s32.totalorder %s26, 1
          %s901 = scalar_select %p900, %s26, 1
          %p902 = scmp.lt.s32.totalorder %s899, 1
          %s903 = scalar_select %p902, %s899, 1
          %s904 = smul.addr %s901, 2
          %s905 = sadd.s32 %s903, %s904
          %s906 = smul.addr %s905, 4
          %s907 = scalar_lea.vmem %s6, %s906
        $region60: #{sr_resnet_forward.4} parent=55 // pred_fallthru
          _
      $region56: #{sr_resnet_forward.4} parent=5 // pred_fallthru
        _
    $region6: #{sr_resnet_forward.4} parent=1 // loop_footer
      %s19 = sadd.s32 1, %s15
    $region7: #{sr_resnet_forward.4} parent=1 // loop_footer_branch
      %14 = sbr.rel target = $region3
    $region8: #{sr_resnet_forward.4} parent=1 // loop_exit
      _
    %908 = vsyncpa [#allocation4], 1
    %s909 = scalar_lea.sflag [#allocation4], 1
    %910 = vsyncpa %s909, 1

// kernel: sr_resnet_forward.5
$region0: #{sr_resnet_forward.5}
  #allocation0 [shape = 'u32[]', space=smem, size = 0x4, offset = 0x4, fixed_abs, tag = 'smem constant byte address 0x4 - core index']
  #allocation1 [shape = 'u32[144,128]{1,0:T(1,128)}', space=vmem, size = 0x12000, scoped, tag = 'internal scratch']
  %s0 = inlined_call_operand.vmem [shape: bf16[2,16,128], index: 0, kind: input, shape index: {}, may-alias: {0,1,2,5}]
  %s1 = inlined_call_operand.vmem [shape: bf16[2,16,128], index: 1, kind: input, shape index: {}, may-alias: {0,1,2,5}]
  %s2 = inlined_call_operand.vmem [shape: bf16[2,16,128], index: 2, kind: input, shape index: {}, may-alias: {0,1,2,5}]
  %s3 = inlined_call_operand.hbm [shape: bf16[3,128,128], index: 3, kind: input, shape index: {}]
  %s4 = inlined_call_operand.hbm [shape: f32[1,128], index: 4, kind: input, shape index: {}]
  %s5 = inlined_call_operand.vmem [shape: bf16[2,16,128], index: 5, kind: input, shape index: {}, may-alias: {0,1,2,5}]
  %s6 = inlined_call_operand.vmem [shape: bf16[2,16,128], index: 6, kind: output, shape index: {}]
  %s7 = sld [smem:[#allocation0]]
  $region65: #{sr_resnet_forward.5} parent=0
    _
  %s9 = ssub.s32 1, %s7
  %s10 = scalar_select 0, %s9, %s7
  $region1: #{sr_resnet_forward.5} parent=0
    #allocation2 [shape = 'u8[98304]{0}', space=vmem, size = 0x18000, scoped, tag = 'input window, operand 3, single buffered']
    #allocation3 [shape = 's32[2]{0}', space=sflag, size = 0x8, scoped, tag = 'scoped memory for sr_resnet_forward.5']
    #allocation4 [shape = 'u8[512]{0}', space=vmem, size = 0x400, scoped, tag = 'input window, operand 4, single buffered']
    #allocation5 [shape = 's32[1]{0}', space=sflag, size = 0x4, scoped, tag = 'scoped memory for sr_resnet_forward.5']
    %11 = vsyncpa [#allocation3], 0
    %12 = vsyncpa [#allocation5], 0
    loop: start=0, step=1, limit=4
    $region2: #{sr_resnet_forward.5} parent=1 // loop_pre_header
      _
    $region3: #{sr_resnet_forward.5} parent=1 // loop_header
      %s14 = sphi 0, %s18
      %p15 = scmp.ge.s32.totalorder %s14, 4
      %s21 = sphi 0, %s33
      %s22 = sphi 0, %s29
      %s23 = sphi 0, %s21
      %s24 = sphi 0, %s22
      %s25 = sphi 0, %s23
      %s26 = sphi 0, %s24
      %s38 = sphi 0, %s40
      %s41 = sphi 0, %s38
      %s42 = sphi 0, %s41
      %s58 = sphi 0, %s42
      %s74 = sphi 0, %s76
      %s77 = sphi 0, %s74
      %s78 = sphi 0, %s77
      %s94 = sphi 0, %s78
      %s110 = sphi 0, %s112
      %s113 = sphi 0, %s110
      %s114 = sphi 0, %s113
      %s130 = sphi 0, %s114
      %s134 = sphi 0, %s134
      %s136 = sphi 0, %s134
      %s137 = sphi 0, %s136
      %s151 = sphi 0, %s137
      %s155 = sphi 0, %s155
      %s157 = sphi 0, %s155
      %s158 = sphi 0, %s157
      %s172 = sphi 0, %s158
      %s180 = sphi 0, %s182
      %s183 = sphi 0, %s180
      %s184 = sphi 0, %s183
      %s200 = sphi 0, %s184
      %s208 = sphi 0, %s210
      %s211 = sphi 0, %s208
      %s212 = sphi 0, %s211
      %s228 = sphi 0, %s212
    $region4: #{sr_resnet_forward.5} parent=1 // loop_header_branch
      %17 = sbr.rel (%p15) target = $region8
    $region5: #{sr_resnet_forward.5} parent=1 // loop_body
      %s19 = ssub.s32 %s14, 1
      %s20 = ssub.s32 %s14, 2
      %s27 = sadd.s32 1, %s22
      %p28 = scmp.ge.s32.totalorder %s27, 1
      %s29 = scalar_select %p28, 0, %s27
      %s30 = sadd.s32 1, %s21
      %s31 = scalar_select %p28, %s30, %s21
      %p32 = scmp.ge.s32.totalorder %s31, 2
      %s33 = scalar_select %p32, 0, %s31
      %s34 = ssub.s32 %s21, %s33
      %s35 = ssub.s32 %s22, %s29
      %s36 = sor.u32 %s34, %s35
      %p37 = scmp.eq.s32.totalorder %s36, 0
      %s39 = sadd.s32 %s38, 1
      %s40 = scalar_select %p37, %s38, %s39
      %p43 = pneg %p37
      %p44 = scmp.eq.s32.totalorder %s14, 1
      %p45 = por %p43, %p44
      %p46 = scmp.ne.s32.totalorder %s38, %s41
      %p47 = scmp.eq.s32.totalorder %s14, 0
      %p48 = por %p46, %p47
      %p49 = scmp.ne.s32.totalorder %s38, %s41
      %p50 = scmp.eq.s32.totalorder %s19, 1
      %p51 = por %p49, %p50
      %p52 = scmp.ne.s32.totalorder %s41, %s42
      %p53 = scmp.eq.s32.totalorder %s19, 0
      %p54 = por %p52, %p53
      %p55 = scmp.ne.s32.totalorder %s41, %s42
      %p56 = scmp.eq.s32.totalorder %s20, 1
      %p57 = por %p55, %p56
      %p59 = scmp.ne.s32.totalorder %s42, %s58
      %p60 = scmp.eq.s32.totalorder %s20, 0
      %p61 = por %p59, %p60
      %s62 = smul.u32 %s22, 2
      %s63 = ssub.s32 %s62, 1
      %p64 = scmp.gt.s32.totalorder %s63, 0
      %s65 = scalar_select %p64, %s63, 0
      %s66 = smul.u32 %s29, 2
      %s67 = ssub.s32 %s66, 1
      %p68 = scmp.gt.s32.totalorder %s67, 0
      %s69 = scalar_select %p68, %s67, 0
      %s70 = ssub.s32 %s21, %s33
      %s71 = ssub.s32 %s65, %s69
      %s72 = sor.u32 %s70, %s71
      %p73 = scmp.eq.s32.totalorder %s72, 0
      %s75 = sadd.s32 %s74, 1
      %s76 = scalar_select %p73, %s74, %s75
      %p79 = pneg %p73
      %p80 = scmp.eq.s32.totalorder %s14, 1
      %p81 = por %p79, %p80
      %p82 = scmp.ne.s32.totalorder %s74, %s77
      %p83 = scmp.eq.s32.totalorder %s14, 0
      %p84 = por %p82, %p83
      %p85 = scmp.ne.s32.totalorder %s74, %s77
      %p86 = scmp.eq.s32.totalorder %s19, 1
      %p87 = por %p85, %p86
      %p88 = scmp.ne.s32.totalorder %s77, %s78
      %p89 = scmp.eq.s32.totalorder %s19, 0
      %p90 = por %p88, %p89
      %p91 = scmp.ne.s32.totalorder %s77, %s78
      %p92 = scmp.eq.s32.totalorder %s20, 1
      %p93 = por %p91, %p92
      %p95 = scmp.ne.s32.totalorder %s78, %s94
      %p96 = scmp.eq.s32.totalorder %s20, 0
      %p97 = por %p95, %p96
      %s98 = sadd.s32 %s22, 1
      %s99 = smul.u32 %s98, 2
      %p100 = scmp.lt.s32.totalorder %s99, 1
      %s101 = scalar_select %p100, %s99, 1
      %s102 = sadd.s32 %s29, 1
      %s103 = smul.u32 %s102, 2
      %p104 = scmp.lt.s32.totalorder %s103, 1
      %s105 = scalar_select %p104, %s103, 1
      %s106 = ssub.s32 %s21, %s33
      %s107 = ssub.s32 %s101, %s105
      %s108 = sor.u32 %s106, %s107
      %p109 = scmp.eq.s32.totalorder %s108, 0
      %s111 = sadd.s32 %s110, 1
      %s112 = scalar_select %p109, %s110, %s111
      %p115 = pneg %p109
      %p116 = scmp.eq.s32.totalorder %s14, 1
      %p117 = por %p115, %p116
      %p118 = scmp.ne.s32.totalorder %s110, %s113
      %p119 = scmp.eq.s32.totalorder %s14, 0
      %p120 = por %p118, %p119
      %p121 = scmp.ne.s32.totalorder %s110, %s113
      %p122 = scmp.eq.s32.totalorder %s19, 1
      %p123 = por %p121, %p122
      %p124 = scmp.ne.s32.totalorder %s113, %s114
      %p125 = scmp.eq.s32.totalorder %s19, 0
      %p126 = por %p124, %p125
      %p127 = scmp.ne.s32.totalorder %s113, %s114
      %p128 = scmp.eq.s32.totalorder %s20, 1
      %p129 = por %p127, %p128
      %p131 = scmp.ne.s32.totalorder %s114, %s130
      %p132 = scmp.eq.s32.totalorder %s20, 0
      %p133 = por %p131, %p132
      %s135 = sadd.s32 %s134, 1
      %p138 = scmp.eq.s32.totalorder %s14, 1
      %p139 = scmp.ne.s32.totalorder %s134, %s136
      %p140 = scmp.eq.s32.totalorder %s14, 0
      %p141 = por %p139, %p140
      %p142 = scmp.ne.s32.totalorder %s134, %s136
      %p143 = scmp.eq.s32.totalorder %s19, 1
      %p144 = por %p142, %p143
      %p145 = scmp.ne.s32.totalorder %s136, %s137
      %p146 = scmp.eq.s32.totalorder %s19, 0
      %p147 = por %p145, %p146
      %p148 = scmp.ne.s32.totalorder %s136, %s137
      %p149 = scmp.eq.s32.totalorder %s20, 1
      %p150 = por %p148, %p149
      %p152 = scmp.ne.s32.totalorder %s137, %s151
      %p153 = scmp.eq.s32.totalorder %s20, 0
      %p154 = por %p152, %p153
      %s156 = sadd.s32 %s155, 1
      %p159 = scmp.eq.s32.totalorder %s14, 1
      %p160 = scmp.ne.s32.totalorder %s155, %s157
      %p161 = scmp.eq.s32.totalorder %s14, 0
      %p162 = por %p160, %p161
      %p163 = scmp.ne.s32.totalorder %s155, %s157
      %p164 = scmp.eq.s32.totalorder %s19, 1
      %p165 = por %p163, %p164
      %p166 = scmp.ne.s32.totalorder %s157, %s158
      %p167 = scmp.eq.s32.totalorder %s19, 0
      %p168 = por %p166, %p167
      %p169 = scmp.ne.s32.totalorder %s157, %s158
      %p170 = scmp.eq.s32.totalorder %s20, 1
      %p171 = por %p169, %p170
      %p173 = scmp.ne.s32.totalorder %s158, %s172
      %p174 = scmp.eq.s32.totalorder %s20, 0
      %p175 = por %p173, %p174
      %s176 = ssub.s32 %s21, %s33
      %s177 = ssub.s32 %s22, %s29
      %s178 = sor.u32 %s176, %s177
      %p179 = scmp.eq.s32.totalorder %s178, 0
      %s181 = sadd.s32 %s180, 1
      %s182 = scalar_select %p179, %s180, %s181
      %p185 = pneg %p179
      %p186 = scmp.eq.s32.totalorder %s14, 1
      %p187 = por %p185, %p186
      %p188 = scmp.ne.s32.totalorder %s180, %s183
      %p189 = scmp.eq.s32.totalorder %s14, 0
      %p190 = por %p188, %p189
      %p191 = scmp.ne.s32.totalorder %s180, %s183
      %p192 = scmp.eq.s32.totalorder %s19, 1
      %p193 = por %p191, %p192
      %p194 = scmp.ne.s32.totalorder %s183, %s184
      %p195 = scmp.eq.s32.totalorder %s19, 0
      %p196 = por %p194, %p195
      %p197 = scmp.ne.s32.totalorder %s183, %s184
      %p198 = scmp.eq.s32.totalorder %s20, 1
      %p199 = por %p197, %p198
      %p201 = scmp.ne.s32.totalorder %s184, %s200
      %p202 = scmp.eq.s32.totalorder %s20, 0
      %p203 = por %p201, %p202
      %s204 = ssub.s32 %s21, %s33
      %s205 = ssub.s32 %s22, %s29
      %s206 = sor.u32 %s204, %s205
      %p207 = scmp.eq.s32.totalorder %s206, 0
      %s209 = sadd.s32 %s208, 1
      %s210 = scalar_select %p207, %s208, %s209
      %p213 = pneg %p207
      %p214 = scmp.eq.s32.totalorder %s14, 1
      %p215 = por %p213, %p214
      %p216 = scmp.ne.s32.totalorder %s208, %s211
      %p217 = scmp.eq.s32.totalorder %s14, 0
      %p218 = por %p216, %p217
      %p219 = scmp.ne.s32.totalorder %s208, %s211
      %p220 = scmp.eq.s32.totalorder %s19, 1
      %p221 = por %p219, %p220
      %p222 = scmp.ne.s32.totalorder %s211, %s212
      %p223 = scmp.eq.s32.totalorder %s19, 0
      %p224 = por %p222, %p223
      %p225 = scmp.ne.s32.totalorder %s211, %s212
      %p226 = scmp.eq.s32.totalorder %s20, 1
      %p227 = por %p225, %p226
      %p229 = scmp.ne.s32.totalorder %s212, %s228
      %p230 = scmp.eq.s32.totalorder %s20, 0
      %p231 = por %p229, %p230
      %p232 = scmp.le.s32.totalorder 1, %s14
      %p233 = scmp.lt.s32.totalorder %s14, 3
      %p234 = pnand %p232, %p233
      %p235 = pneg %p234
      // Predicated region
      $region9: #{sr_resnet_forward.5} parent=5 // pred_check
        _
      $region10: #{sr_resnet_forward.5} parent=5 // pred_check_branch
        %237 = sbr.rel (%p234) target = $region12
      $region11: #{sr_resnet_forward.5} parent=5 // pred_region
        %s238 = ssub.s32 %s14, 1
        // Predicated region
        $region13: #{sr_resnet_forward.5} parent=11 // pred_check
          %p239 = pneg %p147
        $region14: #{sr_resnet_forward.5} parent=11 // pred_check_branch
          %241 = sbr.rel (%p239) target = $region16
        $region15: #{sr_resnet_forward.5} parent=11 // pred_region
          %s243 = ssub.s32 3072, 3072
          %244 = vsyncadd [#allocation3], %s243
          %s245 = sshll.u32 [#allocation2], 4
          %s246 = int_to_ptr.vmem [resolvable:$true] %s245
          %251 = dma.hbm_to_vmem [thread:$0]  %s3, 3072, %s246, [#allocation3], 64, 64, 4
        $region16: #{sr_resnet_forward.5} parent=11 // pred_fallthru
          _
        // Predicated region
        $region17: #{sr_resnet_forward.5} parent=11 // pred_check
          %p252 = pneg %p168
        $region18: #{sr_resnet_forward.5} parent=11 // pred_check_branch
          %254 = sbr.rel (%p252) target = $region20
        $region19: #{sr_resnet_forward.5} parent=11 // pred_region
          %s256 = ssub.s32 16, 16
          %257 = vsyncadd [#allocation5], %s256
          %s259 = sshll.u32 [#allocation4], 4
          %s260 = int_to_ptr.vmem [resolvable:$true] %s259
          %262 = dma.hbm_to_vmem [thread:$0]  %s4, 16, %s260, [#allocation5]
        $region20: #{sr_resnet_forward.5} parent=11 // pred_fallthru
          _
      $region12: #{sr_resnet_forward.5} parent=5 // pred_fallthru
        _
      %p263 = scmp.lt.s32.totalorder %s14, 2
      // Predicated region
      $region21: #{sr_resnet_forward.5} parent=5 // pred_check
        %p264 = pneg %p263
      $region22: #{sr_resnet_forward.5} parent=5 // pred_check_branch
        %266 = sbr.rel (%p264) target = $region24
      $region23: #{sr_resnet_forward.5} parent=5 // pred_region
        // Predicated region
        $region25: #{sr_resnet_forward.5} parent=23 // pred_check
          %p267 = pneg %p48
        $region26: #{sr_resnet_forward.5} parent=23 // pred_check_branch
          %269 = sbr.rel (%p267) target = $region28
        $region27: #{sr_resnet_forward.5} parent=23 // pred_region
          %s270 = smul.u32 2, %s22
          %p271 = scmp.lt.s32.totalorder %s21, 1
          %s272 = scalar_select %p271, %s21, 1
          %p273 = scmp.lt.s32.totalorder %s270, 1
          %s274 = scalar_select %p273, %s270, 1
          %s275 = smul.addr %s272, 2
          %s276 = sadd.s32 %s274, %s275
          %s277 = smul.addr %s276, 4
          %s278 = scalar_lea.vmem %s0, %s277
          %s279 = smul.u32 2, %s22
        $region28: #{sr_resnet_forward.5} parent=23 // pred_fallthru
          _
        // Predicated region
        $region29: #{sr_resnet_forward.5} parent=23 // pred_check
          %p280 = pneg %p84
        $region30: #{sr_resnet_forward.5} parent=23 // pred_check_branch
          %282 = sbr.rel (%p280) target = $region32
        $region31: #{sr_resnet_forward.5} parent=23 // pred_region
          %s283 = smul.u32 %s22, 2
          %s284 = ssub.s32 %s283, 1
          %p285 = scmp.gt.s32.totalorder %s284, 0
          %s286 = scalar_select %p285, %s284, 0
          %p287 = scmp.lt.s32.totalorder %s21, 1
          %s288 = scalar_select %p287, %s21, 1
          %p289 = scmp.lt.s32.totalorder %s286, 1
          %s290 = scalar_select %p289, %s286, 1
          %s291 = smul.addr %s288, 2
          %s292 = sadd.s32 %s290, %s291
          %s293 = smul.addr %s292, 4
          %s294 = scalar_lea.vmem %s1, %s293
          %s295 = smul.u32 %s22, 2
          %s296 = ssub.s32 %s295, 1
          %p297 = scmp.gt.s32.totalorder %s296, 0
          %s298 = scalar_select %p297, %s296, 0
        $region32: #{sr_resnet_forward.5} parent=23 // pred_fallthru
          _
        // Predicated region
        $region33: #{sr_resnet_forward.5} parent=23 // pred_check
          %p299 = pneg %p120
        $region34: #{sr_resnet_forward.5} parent=23 // pred_check_branch
          %301 = sbr.rel (%p299) target = $region36
        $region35: #{sr_resnet_forward.5} parent=23 // pred_region
          %s302 = sadd.s32 %s22, 1
          %s303 = smul.u32 %s302, 2
          %p304 = scmp.lt.s32.totalorder %s303, 1
          %s305 = scalar_select %p304, %s303, 1
          %p306 = scmp.lt.s32.totalorder %s21, 1
          %s307 = scalar_select %p306, %s21, 1
          %p308 = scmp.lt.s32.totalorder %s305, 1
          %s309 = scalar_select %p308, %s305, 1
          %s310 = smul.addr %s307, 2
          %s311 = sadd.s32 %s309, %s310
          %s312 = smul.addr %s311, 4
          %s313 = scalar_lea.vmem %s2, %s312
          %s314 = sadd.s32 %s22, 1
          %s315 = smul.u32 %s314, 2
          %p316 = scmp.lt.s32.totalorder %s315, 1
          %s317 = scalar_select %p316, %s315, 1
        $region36: #{sr_resnet_forward.5} parent=23 // pred_fallthru
          _
        // Predicated region
        $region37: #{sr_resnet_forward.5} parent=23 // pred_check
          %p318 = pneg %p190
        $region38: #{sr_resnet_forward.5} parent=23 // pred_check_branch
          %320 = sbr.rel (%p318) target = $region40
        $region39: #{sr_resnet_forward.5} parent=23 // pred_region
          %s321 = smul.u32 2, %s22
          %p322 = scmp.lt.s32.totalorder %s21, 1
          %s323 = scalar_select %p322, %s21, 1
          %p324 = scmp.lt.s32.totalorder %s321, 1
          %s325 = scalar_select %p324, %s321, 1
          %s326 = smul.addr %s323, 2
          %s327 = sadd.s32 %s325, %s326
          %s328 = smul.addr %s327, 4
          %s329 = scalar_lea.vmem %s5, %s328
          %s330 = smul.u32 2, %s22
        $region40: #{sr_resnet_forward.5} parent=23 // pred_fallthru
          _
      $region24: #{sr_resnet_forward.5} parent=5 // pred_fallthru
        _
      %p331 = scmp.le.s32.totalorder 1, %s14
      %p332 = scmp.lt.s32.totalorder %s14, 3
      %p333 = pnand %p331, %p332
      %p334 = pneg %p333
      // Predicated region
      $region41: #{sr_resnet_forward.5} parent=5 // pred_check
        _
      $region42: #{sr_resnet_forward.5} parent=5 // pred_check_branch
        %336 = sbr.rel (%p333) target = $region44
      $region43: #{sr_resnet_forward.5} parent=5 // pred_region
        %s337 = ssub.s32 %s14, 1
        // Predicated region
        $region45: #{sr_resnet_forward.5} parent=43 // pred_check
          %p338 = pneg %p147
        $region46: #{sr_resnet_forward.5} parent=43 // pred_check_branch
          %340 = sbr.rel (%p338) target = $region48
        $region47: #{sr_resnet_forward.5} parent=43 // pred_region
          %341 = dma.done [#allocation3], 3072
        $region48: #{sr_resnet_forward.5} parent=43 // pred_fallthru
          _
        // Predicated region
        $region49: #{sr_resnet_forward.5} parent=43 // pred_check
          %p342 = pneg %p168
        $region50: #{sr_resnet_forward.5} parent=43 // pred_check_branch
          %344 = sbr.rel (%p342) target = $region52
        $region51: #{sr_resnet_forward.5} parent=43 // pred_region
          %345 = dma.done [#allocation5], 16
        $region52: #{sr_resnet_forward.5} parent=43 // pred_fallthru
          _
        %s346 = smul.u32 2, %s24
        %p347 = scmp.lt.s32.totalorder %s23, 1
        %s348 = scalar_select %p347, %s23, 1
        %p349 = scmp.lt.s32.totalorder %s346, 1
        %s350 = scalar_select %p349, %s346, 1
        %s351 = smul.addr %s348, 2
        %s352 = sadd.s32 %s350, %s351
        %s353 = smul.addr %s352, 4
        %s354 = scalar_lea.vmem %s0, %s353
        %p355 = pneg %p54
        %p356 = pneg %p51
        %s357 = smul.u32 %s24, 2
        %s358 = ssub.s32 %s357, 1
        %p359 = scmp.gt.s32.totalorder %s358, 0
        %s360 = scalar_select %p359, %s358, 0
        %p361 = scmp.lt.s32.totalorder %s23, 1
        %s362 = scalar_select %p361, %s23, 1
        %p363 = scmp.lt.s32.totalorder %s360, 1
        %s364 = scalar_select %p363, %s360, 1
        %s365 = smul.addr %s362, 2
        %s366 = sadd.s32 %s364, %s365
        %s367 = smul.addr %s366, 4
        %s368 = scalar_lea.vmem %s1, %s367
        %p369 = pneg %p90
        %p370 = pneg %p87
        %s371 = sadd.s32 %s24, 1
        %s372 = smul.u32 %s371, 2
        %p373 = scmp.lt.s32.totalorder %s372, 1
        %s374 = scalar_select %p373, %s372, 1
        %p375 = scmp.lt.s32.totalorder %s23, 1
        %s376 = scalar_select %p375, %s23, 1
        %p377 = scmp.lt.s32.totalorder %s374, 1
        %s378 = scalar_select %p377, %s374, 1
        %s379 = smul.addr %s376, 2
        %s380 = sadd.s32 %s378, %s379
        %s381 = smul.addr %s380, 4
        %s382 = scalar_lea.vmem %s2, %s381
        %p383 = pneg %p126
        %p384 = pneg %p123
        %p385 = pneg %p147
        %p386 = pneg %p144
        %p387 = pneg %p168
        %p388 = pneg %p165
        %s389 = smul.u32 2, %s24
        %p390 = scmp.lt.s32.totalorder %s23, 1
        %s391 = scalar_select %p390, %s23, 1
        %p392 = scmp.lt.s32.totalorder %s389, 1
        %s393 = scalar_select %p392, %s389, 1
        %s394 = smul.addr %s391, 2
        %s395 = sadd.s32 %s393, %s394
        %s396 = smul.addr %s395, 4
        %s397 = scalar_lea.vmem %s5, %s396
        %p398 = pneg %p196
        %p399 = pneg %p193
        %p400 = pneg %p224
        %p401 = pneg %p221
        %s402 = smul.u32 2, %s24
        %p403 = scmp.lt.s32.totalorder %s23, 1
        %s404 = scalar_select %p403, %s23, 1
        %p405 = scmp.lt.s32.totalorder %s402, 1
        %s406 = scalar_select %p405, %s402, 1
        %s407 = smul.addr %s404, 2
        %s408 = sadd.s32 %s406, %s407
        %s409 = smul.addr %s408, 4
        %s410 = scalar_lea.vmem %s6, %s409
        %s411 = smul.u32 2, %s24
        %p412 = scmp.lt.s32.totalorder %s23, 1
        %s413 = scalar_select %p412, %s23, 1
        %p414 = scmp.lt.s32.totalorder %s411, 1
        %s415 = scalar_select %p414, %s411, 1
        %s416 = smul.addr %s413, 2
        %s417 = sadd.s32 %s415, %s416
        %s418 = smul.addr %s417, 4
        %s419 = scalar_lea.vmem %s0, %s418
        %s420 = smul.u32 2, %s24
        %s421 = smul.u32 %s24, 2
        %s422 = ssub.s32 %s421, 1
        %p423 = scmp.gt.s32.totalorder %s422, 0
        %s424 = scalar_select %p423, %s422, 0
        %p425 = scmp.lt.s32.totalorder %s23, 1
        %s426 = scalar_select %p425, %s23, 1
        %p427 = scmp.lt.s32.totalorder %s424, 1
        %s428 = scalar_select %p427, %s424, 1
        %s429 = smul.addr %s426, 2
        %s430 = sadd.s32 %s428, %s429
        %s431 = smul.addr %s430, 4
        %s432 = scalar_lea.vmem %s1, %s431
        %s433 = smul.u32 %s24, 2
        %s434 = ssub.s32 %s433, 1
        %p435 = scmp.gt.s32.totalorder %s434, 0
        %s436 = scalar_select %p435, %s434, 0
        %s437 = sadd.s32 %s24, 1
        %s438 = smul.u32 %s437, 2
        %p439 = scmp.lt.s32.totalorder %s438, 1
        %s440 = scalar_select %p439, %s438, 1
        %p441 = scmp.lt.s32.totalorder %s23, 1
        %s442 = scalar_select %p441, %s23, 1
        %p443 = scmp.lt.s32.totalorder %s440, 1
        %s444 = scalar_select %p443, %s440, 1
        %s445 = smul.addr %s442, 2
        %s446 = sadd.s32 %s444, %s445
        %s447 = smul.addr %s446, 4
        %s448 = scalar_lea.vmem %s2, %s447
        %s449 = sadd.s32 %s24, 1
        %s450 = smul.u32 %s449, 2
        %p451 = scmp.lt.s32.totalorder %s450, 1
        %s452 = scalar_select %p451, %s450, 1
        %s453 = smul.u32 2, %s24
        %p454 = scmp.lt.s32.totalorder %s23, 1
        %s455 = scalar_select %p454, %s23, 1
        %p456 = scmp.lt.s32.totalorder %s453, 1
        %s457 = scalar_select %p456, %s453, 1
        %s458 = smul.addr %s455, 2
        %s459 = sadd.s32 %s457, %s458
        %s460 = smul.addr %s459, 4
        %s461 = scalar_lea.vmem %s5, %s460
        %s462 = smul.u32 2, %s24
        %s463 = smul.u32 2, %s24
        %p464 = scmp.lt.s32.totalorder %s23, 1
        %s465 = scalar_select %p464, %s23, 1
        %p466 = scmp.lt.s32.totalorder %s463, 1
        %s467 = scalar_select %p466, %s463, 1
        %s468 = smul.addr %s465, 2
        %s469 = sadd.s32 %s467, %s468
        %s470 = smul.addr %s469, 4
        %s471 = scalar_lea.vmem %s6, %s470
        %s472 = smul.u32 2, %s24
        %v474 = vld [vmem:[%s419] sm:$0xf]
        %v475 = vld [vmem:[%s419 + $0x4] sm:$0xf]
        %v476 = vld [vmem:[%s432] sm:$0xf]
        %v477 = vld [vmem:[%s448] sm:$0xf]
        %p478 = scmp.gt.s32.totalorder %s24, 0
        %s479 = scalar_select %p478, 1, 0
        %v480 = vstv %s479
        %vm481 = vcmp.eq.s32.totalorder %v480, 1
        %v482 = vsel %vm481, %v476, 0
        %s483 = sadd.s32 %s24, 1
        %s484 = smul.u32 %s483, 16
        %v485 = vlaneseq
        %v486 = vshrl.u32 %v485, 7
        %v487 = vstv %s484
        %v488 = vadd.s32 %v487, %v486
        %vm489 = vcmp.lt.s32.totalorder %v488, 16
        %vm490 = vmpackc.low %vm489, %vm489
        %v491 = vsel %vm490, %v477, 0
        %v494 = vunpack.c.l.b16 %v474
        %v495 = vunpack.c.l.b16 %v475
        %v496 = vpack.c.b16 %v494, %v494
        %v497 = vpack.c.b16 %v495, %v495
        %v499 = vunpack.c.l.b16 %v491
        %v500 = vpack.c.b16 %v499, %v499
        %vm501 = vcmask 1043456
        %v504 = vsel %vm501, %v482, %v496
        %v507 = vsel %vm501, %v497, %v500
        %v508 = vld [vmem:[#allocation2] sm:$0xf]
        %v509 = vld [vmem:[#allocation2 + $0x4] sm:$0xf]
        %v510 = vld [vmem:[#allocation2 + $0x8] sm:$0xf]
        %v511 = vld [vmem:[#allocation2 + $0xc] sm:$0xf]
        %v512 = vld [vmem:[#allocation2 + $0x10] sm:$0xf]
        %v513 = vld [vmem:[#allocation2 + $0x14] sm:$0xf]
        %v514 = vld [vmem:[#allocation2 + $0x18] sm:$0xf]
        %v515 = vld [vmem:[#allocation2 + $0x1c] sm:$0xf]
        %v516 = vld [vmem:[#allocation2 + $0x20] sm:$0xf]
        %v517 = vld [vmem:[#allocation2 + $0x24] sm:$0xf]
        %v518 = vld [vmem:[#allocation2 + $0x28] sm:$0xf]
        %v519 = vld [vmem:[#allocation2 + $0x2c] sm:$0xf]
        %v520 = vld [vmem:[#allocation2 + $0x30] sm:$0xf]
        %v521 = vld [vmem:[#allocation2 + $0x34] sm:$0xf]
        %v522 = vld [vmem:[#allocation2 + $0x38] sm:$0xf]
        %v523 = vld [vmem:[#allocation2 + $0x3c] sm:$0xf]
        %s524 = scalar_lea.vmem [#allocation2], 64
        %v525 = vld [vmem:[%s524] sm:$0xf]
        %v526 = vld [vmem:[%s524 + $0x4] sm:$0xf]
        %v527 = vld [vmem:[%s524 + $0x8] sm:$0xf]
        %v528 = vld [vmem:[%s524 + $0xc] sm:$0xf]
        %v529 = vld [vmem:[%s524 + $0x10] sm:$0xf]
        %v530 = vld [vmem:[%s524 + $0x14] sm:$0xf]
        %v531 = vld [vmem:[%s524 + $0x18] sm:$0xf]
        %v532 = vld [vmem:[%s524 + $0x1c] sm:$0xf]
        %v533 = vld [vmem:[%s524 + $0x20] sm:$0xf]
        %v534 = vld [vmem:[%s524 + $0x24] sm:$0xf]
        %v535 = vld [vmem:[%s524 + $0x28] sm:$0xf]
        %v536 = vld [vmem:[%s524 + $0x2c] sm:$0xf]
        %v537 = vld [vmem:[%s524 + $0x30] sm:$0xf]
        %v538 = vld [vmem:[%s524 + $0x34] sm:$0xf]
        %v539 = vld [vmem:[%s524 + $0x38] sm:$0xf]
        %v540 = vld [vmem:[%s524 + $0x3c] sm:$0xf]
        %vm543 = vcmask 1043456
        %v544 = vrot.slane %v504, 4
        %v545 = vrot.slane %v507, 4
        %v546 = vsel %vm543, %v544, %v545
        %v564 = vunpack.c.l.b16 %v525
        %v565 = vunpack.c.l.b16 %v526
        %v566 = vunpack.c.l.b16 %v527
        %v567 = vunpack.c.l.b16 %v528
        %v568 = vunpack.c.l.b16 %v529
        %v569 = vunpack.c.l.b16 %v530
        %v570 = vunpack.c.l.b16 %v531
        %v571 = vunpack.c.l.b16 %v532
        %v572 = vunpack.c.l.b16 %v533
        %v573 = vunpack.c.l.b16 %v534
        %v574 = vunpack.c.l.b16 %v535
        %v575 = vunpack.c.l.b16 %v536
        %v576 = vunpack.c.l.b16 %v537
        %v577 = vunpack.c.l.b16 %v538
        %v578 = vunpack.c.l.b16 %v539
        %v579 = vunpack.c.l.b16 %v540
        %v580 = vpack.c.b16 %v565, %v564
        %v581 = vpack.c.b16 %v567, %v566
        %v582 = vpack.c.b16 %v569, %v568
        %v583 = vpack.c.b16 %v571, %v570
        %v584 = vpack.c.b16 %v573, %v572
        %v585 = vpack.c.b16 %v575, %v574
        %v586 = vpack.c.b16 %v577, %v576
        %v587 = vpack.c.b16 %v579, %v578
        %596 = vmatprep.subr.bf16.mxu0 0
        %597 = vmatpush1.bf16.msra.mxu0 %v580
        %598 = vmatprep.subr.bf16.mxu0 0
        %599 = vmatpush1.bf16.msra.mxu0 %v581
        %600 = vmatprep.subr.bf16.mxu0 0
        %601 = vmatpush1.bf16.msra.mxu0 %v582
        %602 = vmatprep.subr.bf16.mxu0 0
        %603 = vmatpush1.bf16.msra.mxu0 %v583
        %604 = vmatprep.subr.bf16.mxu0 0
        %605 = vmatpush1.bf16.msra.mxu0 %v584
        %606 = vmatprep.subr.bf16.mxu0 0
        %607 = vmatpush1.bf16.msra.mxu0 %v585
        %608 = vmatprep.subr.bf16.mxu0 0
        %609 = vmatpush1.bf16.msra.mxu0 %v586
        %610 = vmatprep.subr.bf16.mxu0 0
        %611 = vmatpush1.bf16.msra.mxu0 %v587
        %612 = vmatprep.subr.bf16.mxu0 0
        %613 = vmatpush1.bf16.msra.mxu0 0
        %614 = vmatprep.subr.bf16.mxu0 0
        %615 = vmatpush1.bf16.msra.mxu0 0
        %616 = vmatprep.subr.bf16.mxu0 0
        %617 = vmatpush1.bf16.msra.mxu0 0
        %618 = vmatprep.subr.bf16.mxu0 0
        %619 = vmatpush1.bf16.msra.mxu0 0
        %620 = vmatprep.subr.bf16.mxu0 0
        %621 = vmatpush1.bf16.msra.mxu0 0
        %622 = vmatprep.subr.bf16.mxu0 0
        %623 = vmatpush1.bf16.msra.mxu0 0
        %624 = vmatprep.subr.bf16.mxu0 0
        %625 = vmatpush1.bf16.msra.mxu0 0
        %626 = vmatprep.subr.bf16.mxu0 0
        %627 = vmatpush1.bf16.msra.mxu0 0
        %628 = vmatprep.mubr.bf16.mxu0 0
        %629 = vmatmul.mubr.bf16.gmra.mrb[0].mxu0 %v546
        %v630 = vpop.f32.mrb[0].mxu0
        %v631 = vadd.f32 0.0, %v630
        %v632 = vpop.f32.mrb[0].mxu0
        %v633 = vpop.f32.mrb[0].mxu0
        %v634 = vadd.f32 0.0, %v633
        %v635 = vpop.f32.mrb[0].mxu0
        %636 = vdwg.mxu0
        %vm637 = vsmask.f32 4352
        %v638 = vshrl.u32 %v504, 16
        %v640 = vrot.slane %v638, 3
        %v641 = vshll.u32 %v504, 16
        %v643 = vrot.slane %v641, 4
        %v644 = vor.u32 %v640, %v643
        %v645 = vshrl.u32 %v507, 16
        %v647 = vrot.slane %v645, 3
        %v648 = vshll.u32 %v507, 16
        %v650 = vrot.slane %v648, 4
        %v651 = vor.u32 %v647, %v650
        %v652 = vsel %vm637, %v644, %v651
        %v670 = vunpack.c.l.b16 %v508
        %v671 = vunpack.c.l.b16 %v509
        %v672 = vunpack.c.l.b16 %v510
        %v673 = vunpack.c.l.b16 %v511
        %v674 = vunpack.c.l.b16 %v512
        %v675 = vunpack.c.l.b16 %v513
        %v676 = vunpack.c.l.b16 %v514
        %v677 = vunpack.c.l.b16 %v515
        %v678 = vunpack.c.l.b16 %v516
        %v679 = vunpack.c.l.b16 %v517
        %v680 = vunpack.c.l.b16 %v518
        %v681 = vunpack.c.l.b16 %v519
        %v682 = vunpack.c.l.b16 %v520
        %v683 = vunpack.c.l.b16 %v521
        %v684 = vunpack.c.l.b16 %v522
        %v685 = vunpack.c.l.b16 %v523
        %v686 = vpack.c.b16 %v671, %v670
        %v687 = vpack.c.b16 %v673, %v672
        %v688 = vpack.c.b16 %v675, %v674
        %v689 = vpack.c.b16 %v677, %v676
        %v690 = vpack.c.b16 %v679, %v678
        %v691 = vpack.c.b16 %v681, %v680
        %v692 = vpack.c.b16 %v683, %v682
        %v693 = vpack.c.b16 %v685, %v684
        %702 = vmatprep.subr.bf16.mxu0 0
        %703 = vmatpush1.bf16.msra.mxu0 %v686
        %704 = vmatprep.subr.bf16.mxu0 0
        %705 = vmatpush1.bf16.msra.mxu0 %v687
        %706 = vmatprep.subr.bf16.mxu0 0
        %707 = vmatpush1.bf16.msra.mxu0 %v688
        %708 = vmatprep.subr.bf16.mxu0 0
        %709 = vmatpush1.bf16.msra.mxu0 %v689
        %710 = vmatprep.subr.bf16.mxu0 0
        %711 = vmatpush1.bf16.msra.mxu0 %v690
        %712 = vmatprep.subr.bf16.mxu0 0
        %713 = vmatpush1.bf16.msra.mxu0 %v691
        %714 = vmatprep.subr.bf16.mxu0 0
        %715 = vmatpush1.bf16.msra.mxu0 %v692
        %716 = vmatprep.subr.bf16.mxu0 0
        %717 = vmatpush1.bf16.msra.mxu0 %v693
        %718 = vmatprep.subr.bf16.mxu0 0
        %719 = vmatpush1.bf16.msra.mxu0 0
        %720 = vmatprep.subr.bf16.mxu0 0
        %721 = vmatpush1.bf16.msra.mxu0 0
        %722 = vmatprep.subr.bf16.mxu0 0
        %723 = vmatpush1.bf16.msra.mxu0 0
        %724 = vmatprep.subr.bf16.mxu0 0
        %725 = vmatpush1.bf16.msra.mxu0 0
        %726 = vmatprep.subr.bf16.mxu0 0
        %727 = vmatpush1.bf16.msra.mxu0 0
        %728 = vmatprep.subr.bf16.mxu0 0
        %729 = vmatpush1.bf16.msra.mxu0 0
        %730 = vmatprep.subr.bf16.mxu0 0
        %731 = vmatpush1.bf16.msra.mxu0 0
        %732 = vmatprep.subr.bf16.mxu0 0
        %733 = vmatpush1.bf16.msra.mxu0 0
        %734 = vmatprep.mubr.bf16.mxu0 0
        %735 = vmatmul.mubr.bf16.gmra.mrb[0].mxu0 %v652
        %v736 = vpop.f32.mrb[0].mxu0
        %v737 = vadd.f32 %v631, %v736
        %v738 = vpop.f32.mrb[0].mxu0
        %v739 = vpop.f32.mrb[0].mxu0
        %v740 = vadd.f32 %v634, %v739
        %v741 = vpop.f32.mrb[0].mxu0
        %742 = vdwg.mxu0
        %s743 = scalar_lea.vmem [#allocation2], 128
        %v744 = vld [vmem:[%s743] sm:$0xf]
        %v745 = vld [vmem:[%s743 + $0x4] sm:$0xf]
        %v746 = vld [vmem:[%s743 + $0x8] sm:$0xf]
        %v747 = vld [vmem:[%s743 + $0xc] sm:$0xf]
        %v748 = vld [vmem:[%s743 + $0x10] sm:$0xf]
        %v749 = vld [vmem:[%s743 + $0x14] sm:$0xf]
        %v750 = vld [vmem:[%s743 + $0x18] sm:$0xf]
        %v751 = vld [vmem:[%s743 + $0x1c] sm:$0xf]
        %v752 = vld [vmem:[%s743 + $0x20] sm:$0xf]
        %v753 = vld [vmem:[%s743 + $0x24] sm:$0xf]
        %v754 = vld [vmem:[%s743 + $0x28] sm:$0xf]
        %v755 = vld [vmem:[%s743 + $0x2c] sm:$0xf]
        %v756 = vld [vmem:[%s743 + $0x30] sm:$0xf]
        %v757 = vld [vmem:[%s743 + $0x34] sm:$0xf]
        %v758 = vld [vmem:[%s743 + $0x38] sm:$0xf]
        %v759 = vld [vmem:[%s743 + $0x3c] sm:$0xf]
        %vm760 = vsmask.f32 3328
        %v761 = vrot.slane %v638, 4
        %v762 = vrot.slane %v641, 5
        %v763 = vor.u32 %v761, %v762
        %v764 = vrot.slane %v645, 4
        %v765 = vrot.slane %v648, 5
        %v766 = vor.u32 %v764, %v765
        %v767 = vsel %vm760, %v763, %v766
        %v785 = vunpack.c.l.b16 %v744
        %v786 = vunpack.c.l.b16 %v745
        %v787 = vunpack.c.l.b16 %v746
        %v788 = vunpack.c.l.b16 %v747
        %v789 = vunpack.c.l.b16 %v748
        %v790 = vunpack.c.l.b16 %v749
        %v791 = vunpack.c.l.b16 %v750
        %v792 = vunpack.c.l.b16 %v751
        %v793 = vunpack.c.l.b16 %v752
        %v794 = vunpack.c.l.b16 %v753
        %v795 = vunpack.c.l.b16 %v754
        %v796 = vunpack.c.l.b16 %v755
        %v797 = vunpack.c.l.b16 %v756
        %v798 = vunpack.c.l.b16 %v757
        %v799 = vunpack.c.l.b16 %v758
        %v800 = vunpack.c.l.b16 %v759
        %v801 = vpack.c.b16 %v786, %v785
        %v802 = vpack.c.b16 %v788, %v787
        %v803 = vpack.c.b16 %v790, %v789
        %v804 = vpack.c.b16 %v792, %v791
        %v805 = vpack.c.b16 %v794, %v793
        %v806 = vpack.c.b16 %v796, %v795
        %v807 = vpack.c.b16 %v798, %v797
        %v808 = vpack.c.b16 %v800, %v799
        %817 = vmatprep.subr.bf16.mxu0 0
        %818 = vmatpush1.bf16.msra.mxu0 %v801
        %819 = vmatprep.subr.bf16.mxu0 0
        %820 = vmatpush1.bf16.msra.mxu0 %v802
        %821 = vmatprep.subr.bf16.mxu0 0
        %822 = vmatpush1.bf16.msra.mxu0 %v803
        %823 = vmatprep.subr.bf16.mxu0 0
        %824 = vmatpush1.bf16.msra.mxu0 %v804
        %825 = vmatprep.subr.bf16.mxu0 0
        %826 = vmatpush1.bf16.msra.mxu0 %v805
        %827 = vmatprep.subr.bf16.mxu0 0
        %828 = vmatpush1.bf16.msra.mxu0 %v806
        %829 = vmatprep.subr.bf16.mxu0 0
        %830 = vmatpush1.bf16.msra.mxu0 %v807
        %831 = vmatprep.subr.bf16.mxu0 0
        %832 = vmatpush1.bf16.msra.mxu0 %v808
        %833 = vmatprep.subr.bf16.mxu0 0
        %834 = vmatpush1.bf16.msra.mxu0 0
        %835 = vmatprep.subr.bf16.mxu0 0
        %836 = vmatpush1.bf16.msra.mxu0 0
        %837 = vmatprep.subr.bf16.mxu0 0
        %838 = vmatpush1.bf16.msra.mxu0 0
        %839 = vmatprep.subr.bf16.mxu0 0
        %840 = vmatpush1.bf16.msra.mxu0 0
        %841 = vmatprep.subr.bf16.mxu0 0
        %842 = vmatpush1.bf16.msra.mxu0 0
        %843 = vmatprep.subr.bf16.mxu0 0
        %844 = vmatpush1.bf16.msra.mxu0 0
        %845 = vmatprep.subr.bf16.mxu0 0
        %846 = vmatpush1.bf16.msra.mxu0 0
        %847 = vmatprep.subr.bf16.mxu0 0
        %848 = vmatpush1.bf16.msra.mxu0 0
        %849 = vmatprep.mubr.bf16.mxu0 0
        %850 = vmatmul.mubr.bf16.gmra.mrb[0].mxu0 %v767
        %v851 = vpop.f32.mrb[0].mxu0
        %v852 = vadd.f32 0.0, %v851
        %v853 = vpop.f32.mrb[0].mxu0
        %v854 = vpop.f32.mrb[0].mxu0
        %v855 = vadd.f32 0.0, %v854
        %v856 = vpop.f32.mrb[0].mxu0
        %857 = vdwg.mxu0
        %v858 = vadd.f32 %v737, %v852
        %v859 = vadd.f32 %v740, %v855
        %v860 = vld [vmem:[#allocation4] sm:$0x1]
        %v862 = vlaneseq
        %v863 = vshrl.u32 %v862, 7
        %v864 = vsub.s32 0, %v863
        %v865 = vrot.slane %v860, %v864
        %v867 = vadd.f32 %v858, %v865
        %v868 = vadd.f32 %v859, %v865
        %v869 = vld [vmem:[%s461] sm:$0xf]
        %v870 = vld [vmem:[%s461 + $0x4] sm:$0xf]
        %v871 = vunpack.c.l.bf16 %v869
        %v872 = vunpack.c.l.bf16 %v870
        %v873 = vadd.f32 %v867, %v871
        %v874 = vadd.f32 %v868, %v872
        %v875 = vpack.c.bf16 %v874, %v873
        %v877 = vunpack.c.l.b16 %v875
        %v878 = vunpack.c.h.b16 %v875
        %v879 = vpack.c.b16 %v877, %v877
        %v880 = vpack.c.b16 %v878, %v878
        %883 = vst [vmem:[%s471] sm:$0xf] %v879
        %884 = vst [vmem:[%s471 + $0x4] sm:$0xf] %v880
        %s885 = smul.u32 2, %s24
        %p886 = scmp.lt.s32.totalorder %s23, 1
        %s887 = scalar_select %p886, %s23, 1
        %p888 = scmp.lt.s32.totalorder %s885, 1
        %s889 = scalar_select %p888, %s885, 1
        %s890 = smul.addr %s887, 2
        %s891 = sadd.s32 %s889, %s890
        %s892 = smul.addr %s891, 4
        %s893 = scalar_lea.vmem %s6, %s892
        // Predicated region
        $region53: #{sr_resnet_forward.5} parent=43 // pred_check
          %p894 = pneg %p221
        $region54: #{sr_resnet_forward.5} parent=43 // pred_check_branch
          %896 = sbr.rel (%p894) target = $region56
        $region55: #{sr_resnet_forward.5} parent=43 // pred_region
          %s897 = smul.u32 2, %s24
        $region56: #{sr_resnet_forward.5} parent=43 // pred_fallthru
          _
      $region44: #{sr_resnet_forward.5} parent=5 // pred_fallthru
        _
      %p898 = scmp.le.s32.totalorder 2, %s14
      // Predicated region
      $region57: #{sr_resnet_forward.5} parent=5 // pred_check
        %p899 = pneg %p898
      $region58: #{sr_resnet_forward.5} parent=5 // pred_check_branch
        %901 = sbr.rel (%p899) target = $region60
      $region59: #{sr_resnet_forward.5} parent=5 // pred_region
        %s902 = ssub.s32 %s14, 2
        // Predicated region
        $region61: #{sr_resnet_forward.5} parent=59 // pred_check
          %p903 = pneg %p227
        $region62: #{sr_resnet_forward.5} parent=59 // pred_check_branch
          %905 = sbr.rel (%p903) target = $region64
        $region63: #{sr_resnet_forward.5} parent=59 // pred_region
          %s906 = smul.u32 2, %s26
          %p907 = scmp.lt.s32.totalorder %s25, 1
          %s908 = scalar_select %p907, %s25, 1
          %p909 = scmp.lt.s32.totalorder %s906, 1
          %s910 = scalar_select %p909, %s906, 1
          %s911 = smul.addr %s908, 2
          %s912 = sadd.s32 %s910, %s911
          %s913 = smul.addr %s912, 4
          %s914 = scalar_lea.vmem %s6, %s913
        $region64: #{sr_resnet_forward.5} parent=59 // pred_fallthru
          _
      $region60: #{sr_resnet_forward.5} parent=5 // pred_fallthru
        _
    $region6: #{sr_resnet_forward.5} parent=1 // loop_footer
      %s18 = sadd.s32 1, %s14
    $region7: #{sr_resnet_forward.5} parent=1 // loop_footer_branch
      %13 = sbr.rel target = $region3
    $region8: #{sr_resnet_forward.5} parent=1 // loop_exit
      _
    %915 = vsyncpa [#allocation3], 1
    %s916 = scalar_lea.sflag [#allocation3], 1
    %917 = vsyncpa %s916, 1
    %918 = vsyncpa [#allocation5], 1

// kernel: sr_resnet_forward.6
$region0: #{sr_resnet_forward.6}
  #allocation0 [shape = 'u32[]', space=smem, size = 0x4, offset = 0x4, fixed_abs, tag = 'smem constant byte address 0x4 - core index']
  #allocation1 [shape = 'u32[144,128]{1,0:T(1,128)}', space=vmem, size = 0x12000, scoped, tag = 'internal scratch']
  #allocation2 [shape = 'f32[1,1]{1,0:T(1,128)S(1)}', space=vmem, size = 0x200, scoped, tag = 'scoped memory for sr_resnet_forward.6']
  %s0 = inlined_call_operand.vmem [shape: bf16[2,16,128], index: 0, kind: input, shape index: {}, may-alias: {0,1,2}]
  %s1 = inlined_call_operand.vmem [shape: bf16[2,16,128], index: 1, kind: input, shape index: {}, may-alias: {0,1,2}]
  %s2 = inlined_call_operand.vmem [shape: bf16[2,16,128], index: 2, kind: input, shape index: {}, may-alias: {0,1,2}]
  %s3 = inlined_call_operand.vmem [shape: bf16[3,128,512], index: 3, kind: input, shape index: {}]
  %s4 = inlined_call_operand.vmem [shape: f32[1,512], index: 4, kind: input, shape index: {}]
  %s5 = inlined_call_operand.<no memory space> [shape: f32[1,1], index: 5, kind: input, shape index: {}]
  %s6 = inlined_call_operand.vmem [shape: bf16[2,16,512], index: 6, kind: output, shape index: {}]
  %s7 = sld [smem:[#allocation0]]
  $region57: #{sr_resnet_forward.6} parent=0
    _
  %s9 = ssub.s32 1, %s7
  %s10 = scalar_select 0, %s9, %s7
  %v11 = vstv %s5
  %12 = vst [vmem:[#allocation2] sm:$0x1] %v11
  loop: start=0, step=1, limit=4
  $region2: #{sr_resnet_forward.6} parent=0 // loop_pre_header
    _
  $region3: #{sr_resnet_forward.6} parent=0 // loop_header
    %s14 = sphi 0, %s18
    %p15 = scmp.ge.s32.totalorder %s14, 4
    %s21 = sphi 0, %s33
    %s22 = sphi 0, %s29
    %s23 = sphi 0, %s21
    %s24 = sphi 0, %s22
    %s25 = sphi 0, %s23
    %s26 = sphi 0, %s24
    %s38 = sphi 0, %s40
    %s41 = sphi 0, %s38
    %s42 = sphi 0, %s41
    %s58 = sphi 0, %s42
    %s74 = sphi 0, %s76
    %s77 = sphi 0, %s74
    %s78 = sphi 0, %s77
    %s94 = sphi 0, %s78
    %s110 = sphi 0, %s112
    %s113 = sphi 0, %s110
    %s114 = sphi 0, %s113
    %s130 = sphi 0, %s114
    %s134 = sphi 0, %s134
    %s136 = sphi 0, %s134
    %s137 = sphi 0, %s136
    %s151 = sphi 0, %s137
    %s155 = sphi 0, %s155
    %s157 = sphi 0, %s155
    %s158 = sphi 0, %s157
    %s172 = sphi 0, %s158
    %s176 = sphi 0, %s176
    %s178 = sphi 0, %s176
    %s179 = sphi 0, %s178
    %s193 = sphi 0, %s179
    %s201 = sphi 0, %s203
    %s204 = sphi 0, %s201
    %s205 = sphi 0, %s204
    %s221 = sphi 0, %s205
  $region4: #{sr_resnet_forward.6} parent=0 // loop_header_branch
    %17 = sbr.rel (%p15) target = $region8
  $region5: #{sr_resnet_forward.6} parent=0 // loop_body
    %s19 = ssub.s32 %s14, 1
    %s20 = ssub.s32 %s14, 2
    %s27 = sadd.s32 1, %s22
    %p28 = scmp.ge.s32.totalorder %s27, 1
    %s29 = scalar_select %p28, 0, %s27
    %s30 = sadd.s32 1, %s21
    %s31 = scalar_select %p28, %s30, %s21
    %p32 = scmp.ge.s32.totalorder %s31, 2
    %s33 = scalar_select %p32, 0, %s31
    %s34 = ssub.s32 %s21, %s33
    %s35 = ssub.s32 %s22, %s29
    %s36 = sor.u32 %s34, %s35
    %p37 = scmp.eq.s32.totalorder %s36, 0
    %s39 = sadd.s32 %s38, 1
    %s40 = scalar_select %p37, %s38, %s39
    %p43 = pneg %p37
    %p44 = scmp.eq.s32.totalorder %s14, 1
    %p45 = por %p43, %p44
    %p46 = scmp.ne.s32.totalorder %s38, %s41
    %p47 = scmp.eq.s32.totalorder %s14, 0
    %p48 = por %p46, %p47
    %p49 = scmp.ne.s32.totalorder %s38, %s41
    %p50 = scmp.eq.s32.totalorder %s19, 1
    %p51 = por %p49, %p50
    %p52 = scmp.ne.s32.totalorder %s41, %s42
    %p53 = scmp.eq.s32.totalorder %s19, 0
    %p54 = por %p52, %p53
    %p55 = scmp.ne.s32.totalorder %s41, %s42
    %p56 = scmp.eq.s32.totalorder %s20, 1
    %p57 = por %p55, %p56
    %p59 = scmp.ne.s32.totalorder %s42, %s58
    %p60 = scmp.eq.s32.totalorder %s20, 0
    %p61 = por %p59, %p60
    %s62 = smul.u32 %s22, 2
    %s63 = ssub.s32 %s62, 1
    %p64 = scmp.gt.s32.totalorder %s63, 0
    %s65 = scalar_select %p64, %s63, 0
    %s66 = smul.u32 %s29, 2
    %s67 = ssub.s32 %s66, 1
    %p68 = scmp.gt.s32.totalorder %s67, 0
    %s69 = scalar_select %p68, %s67, 0
    %s70 = ssub.s32 %s21, %s33
    %s71 = ssub.s32 %s65, %s69
    %s72 = sor.u32 %s70, %s71
    %p73 = scmp.eq.s32.totalorder %s72, 0
    %s75 = sadd.s32 %s74, 1
    %s76 = scalar_select %p73, %s74, %s75
    %p79 = pneg %p73
    %p80 = scmp.eq.s32.totalorder %s14, 1
    %p81 = por %p79, %p80
    %p82 = scmp.ne.s32.totalorder %s74, %s77
    %p83 = scmp.eq.s32.totalorder %s14, 0
    %p84 = por %p82, %p83
    %p85 = scmp.ne.s32.totalorder %s74, %s77
    %p86 = scmp.eq.s32.totalorder %s19, 1
    %p87 = por %p85, %p86
    %p88 = scmp.ne.s32.totalorder %s77, %s78
    %p89 = scmp.eq.s32.totalorder %s19, 0
    %p90 = por %p88, %p89
    %p91 = scmp.ne.s32.totalorder %s77, %s78
    %p92 = scmp.eq.s32.totalorder %s20, 1
    %p93 = por %p91, %p92
    %p95 = scmp.ne.s32.totalorder %s78, %s94
    %p96 = scmp.eq.s32.totalorder %s20, 0
    %p97 = por %p95, %p96
    %s98 = sadd.s32 %s22, 1
    %s99 = smul.u32 %s98, 2
    %p100 = scmp.lt.s32.totalorder %s99, 1
    %s101 = scalar_select %p100, %s99, 1
    %s102 = sadd.s32 %s29, 1
    %s103 = smul.u32 %s102, 2
    %p104 = scmp.lt.s32.totalorder %s103, 1
    %s105 = scalar_select %p104, %s103, 1
    %s106 = ssub.s32 %s21, %s33
    %s107 = ssub.s32 %s101, %s105
    %s108 = sor.u32 %s106, %s107
    %p109 = scmp.eq.s32.totalorder %s108, 0
    %s111 = sadd.s32 %s110, 1
    %s112 = scalar_select %p109, %s110, %s111
    %p115 = pneg %p109
    %p116 = scmp.eq.s32.totalorder %s14, 1
    %p117 = por %p115, %p116
    %p118 = scmp.ne.s32.totalorder %s110, %s113
    %p119 = scmp.eq.s32.totalorder %s14, 0
    %p120 = por %p118, %p119
    %p121 = scmp.ne.s32.totalorder %s110, %s113
    %p122 = scmp.eq.s32.totalorder %s19, 1
    %p123 = por %p121, %p122
    %p124 = scmp.ne.s32.totalorder %s113, %s114
    %p125 = scmp.eq.s32.totalorder %s19, 0
    %p126 = por %p124, %p125
    %p127 = scmp.ne.s32.totalorder %s113, %s114
    %p128 = scmp.eq.s32.totalorder %s20, 1
    %p129 = por %p127, %p128
    %p131 = scmp.ne.s32.totalorder %s114, %s130
    %p132 = scmp.eq.s32.totalorder %s20, 0
    %p133 = por %p131, %p132
    %s135 = sadd.s32 %s134, 1
    %p138 = scmp.eq.s32.totalorder %s14, 1
    %p139 = scmp.ne.s32.totalorder %s134, %s136
    %p140 = scmp.eq.s32.totalorder %s14, 0
    %p141 = por %p139, %p140
    %p142 = scmp.ne.s32.totalorder %s134, %s136
    %p143 = scmp.eq.s32.totalorder %s19, 1
    %p144 = por %p142, %p143
    %p145 = scmp.ne.s32.totalorder %s136, %s137
    %p146 = scmp.eq.s32.totalorder %s19, 0
    %p147 = por %p145, %p146
    %p148 = scmp.ne.s32.totalorder %s136, %s137
    %p149 = scmp.eq.s32.totalorder %s20, 1
    %p150 = por %p148, %p149
    %p152 = scmp.ne.s32.totalorder %s137, %s151
    %p153 = scmp.eq.s32.totalorder %s20, 0
    %p154 = por %p152, %p153
    %s156 = sadd.s32 %s155, 1
    %p159 = scmp.eq.s32.totalorder %s14, 1
    %p160 = scmp.ne.s32.totalorder %s155, %s157
    %p161 = scmp.eq.s32.totalorder %s14, 0
    %p162 = por %p160, %p161
    %p163 = scmp.ne.s32.totalorder %s155, %s157
    %p164 = scmp.eq.s32.totalorder %s19, 1
    %p165 = por %p163, %p164
    %p166 = scmp.ne.s32.totalorder %s157, %s158
    %p167 = scmp.eq.s32.totalorder %s19, 0
    %p168 = por %p166, %p167
    %p169 = scmp.ne.s32.totalorder %s157, %s158
    %p170 = scmp.eq.s32.totalorder %s20, 1
    %p171 = por %p169, %p170
    %p173 = scmp.ne.s32.totalorder %s158, %s172
    %p174 = scmp.eq.s32.totalorder %s20, 0
    %p175 = por %p173, %p174
    %s177 = sadd.s32 %s176, 1
    %p180 = scmp.eq.s32.totalorder %s14, 1
    %p181 = scmp.ne.s32.totalorder %s176, %s178
    %p182 = scmp.eq.s32.totalorder %s14, 0
    %p183 = por %p181, %p182
    %p184 = scmp.ne.s32.totalorder %s176, %s178
    %p185 = scmp.eq.s32.totalorder %s19, 1
    %p186 = por %p184, %p185
    %p187 = scmp.ne.s32.totalorder %s178, %s179
    %p188 = scmp.eq.s32.totalorder %s19, 0
    %p189 = por %p187, %p188
    %p190 = scmp.ne.s32.totalorder %s178, %s179
    %p191 = scmp.eq.s32.totalorder %s20, 1
    %p192 = por %p190, %p191
    %p194 = scmp.ne.s32.totalorder %s179, %s193
    %p195 = scmp.eq.s32.totalorder %s20, 0
    %p196 = por %p194, %p195
    %s197 = ssub.s32 %s21, %s33
    %s198 = ssub.s32 %s22, %s29
    %s199 = sor.u32 %s197, %s198
    %p200 = scmp.eq.s32.totalorder %s199, 0
    %s202 = sadd.s32 %s201, 1
    %s203 = scalar_select %p200, %s201, %s202
    %p206 = pneg %p200
    %p207 = scmp.eq.s32.totalorder %s14, 1
    %p208 = por %p206, %p207
    %p209 = scmp.ne.s32.totalorder %s201, %s204
    %p210 = scmp.eq.s32.totalorder %s14, 0
    %p211 = por %p209, %p210
    %p212 = scmp.ne.s32.totalorder %s201, %s204
    %p213 = scmp.eq.s32.totalorder %s19, 1
    %p214 = por %p212, %p213
    %p215 = scmp.ne.s32.totalorder %s204, %s205
    %p216 = scmp.eq.s32.totalorder %s19, 0
    %p217 = por %p215, %p216
    %p218 = scmp.ne.s32.totalorder %s204, %s205
    %p219 = scmp.eq.s32.totalorder %s20, 1
    %p220 = por %p218, %p219
    %p222 = scmp.ne.s32.totalorder %s205, %s221
    %p223 = scmp.eq.s32.totalorder %s20, 0
    %p224 = por %p222, %p223
    %p225 = scmp.le.s32.totalorder 1, %s14
    %p226 = scmp.lt.s32.totalorder %s14, 3
    %p227 = pnand %p225, %p226
    %p228 = pneg %p227
    // Predicated region
    $region9: #{sr_resnet_forward.6} parent=5 // pred_check
      _
    $region10: #{sr_resnet_forward.6} parent=5 // pred_check_branch
      %230 = sbr.rel (%p227) target = $region12
    $region11: #{sr_resnet_forward.6} parent=5 // pred_region
      %s231 = ssub.s32 %s14, 1
      // Predicated region
      $region13: #{sr_resnet_forward.6} parent=11 // pred_check
        %p232 = pneg %p147
      $region14: #{sr_resnet_forward.6} parent=11 // pred_check_branch
        %234 = sbr.rel (%p232) target = $region16
      $region15: #{sr_resnet_forward.6} parent=11 // pred_region
        _
      $region16: #{sr_resnet_forward.6} parent=11 // pred_fallthru
        _
      // Predicated region
      $region17: #{sr_resnet_forward.6} parent=11 // pred_check
        %p235 = pneg %p168
      $region18: #{sr_resnet_forward.6} parent=11 // pred_check_branch
        %237 = sbr.rel (%p235) target = $region20
      $region19: #{sr_resnet_forward.6} parent=11 // pred_region
        _
      $region20: #{sr_resnet_forward.6} parent=11 // pred_fallthru
        _
      // Predicated region
      $region21: #{sr_resnet_forward.6} parent=11 // pred_check
        %p238 = pneg %p189
      $region22: #{sr_resnet_forward.6} parent=11 // pred_check_branch
        %240 = sbr.rel (%p238) target = $region24
      $region23: #{sr_resnet_forward.6} parent=11 // pred_region
        _
      $region24: #{sr_resnet_forward.6} parent=11 // pred_fallthru
        _
    $region12: #{sr_resnet_forward.6} parent=5 // pred_fallthru
      _
    %p241 = scmp.lt.s32.totalorder %s14, 2
    // Predicated region
    $region25: #{sr_resnet_forward.6} parent=5 // pred_check
      %p242 = pneg %p241
    $region26: #{sr_resnet_forward.6} parent=5 // pred_check_branch
      %244 = sbr.rel (%p242) target = $region28
    $region27: #{sr_resnet_forward.6} parent=5 // pred_region
      // Predicated region
      $region29: #{sr_resnet_forward.6} parent=27 // pred_check
        %p245 = pneg %p48
      $region30: #{sr_resnet_forward.6} parent=27 // pred_check_branch
        %247 = sbr.rel (%p245) target = $region32
      $region31: #{sr_resnet_forward.6} parent=27 // pred_region
        %s248 = smul.u32 2, %s22
        %p249 = scmp.lt.s32.totalorder %s21, 1
        %s250 = scalar_select %p249, %s21, 1
        %p251 = scmp.lt.s32.totalorder %s248, 1
        %s252 = scalar_select %p251, %s248, 1
        %s253 = smul.addr %s250, 2
        %s254 = sadd.s32 %s252, %s253
        %s255 = smul.addr %s254, 4
        %s256 = scalar_lea.vmem %s0, %s255
        %s257 = smul.u32 2, %s22
      $region32: #{sr_resnet_forward.6} parent=27 // pred_fallthru
        _
      // Predicated region
      $region33: #{sr_resnet_forward.6} parent=27 // pred_check
        %p258 = pneg %p84
      $region34: #{sr_resnet_forward.6} parent=27 // pred_check_branch
        %260 = sbr.rel (%p258) target = $region36
      $region35: #{sr_resnet_forward.6} parent=27 // pred_region
        %s261 = smul.u32 %s22, 2
        %s262 = ssub.s32 %s261, 1
        %p263 = scmp.gt.s32.totalorder %s262, 0
        %s264 = scalar_select %p263, %s262, 0
        %p265 = scmp.lt.s32.totalorder %s21, 1
        %s266 = scalar_select %p265, %s21, 1
        %p267 = scmp.lt.s32.totalorder %s264, 1
        %s268 = scalar_select %p267, %s264, 1
        %s269 = smul.addr %s266, 2
        %s270 = sadd.s32 %s268, %s269
        %s271 = smul.addr %s270, 4
        %s272 = scalar_lea.vmem %s1, %s271
        %s273 = smul.u32 %s22, 2
        %s274 = ssub.s32 %s273, 1
        %p275 = scmp.gt.s32.totalorder %s274, 0
        %s276 = scalar_select %p275, %s274, 0
      $region36: #{sr_resnet_forward.6} parent=27 // pred_fallthru
        _
      // Predicated region
      $region37: #{sr_resnet_forward.6} parent=27 // pred_check
        %p277 = pneg %p120
      $region38: #{sr_resnet_forward.6} parent=27 // pred_check_branch
        %279 = sbr.rel (%p277) target = $region40
      $region39: #{sr_resnet_forward.6} parent=27 // pred_region
        %s280 = sadd.s32 %s22, 1
        %s281 = smul.u32 %s280, 2
        %p282 = scmp.lt.s32.totalorder %s281, 1
        %s283 = scalar_select %p282, %s281, 1
        %p284 = scmp.lt.s32.totalorder %s21, 1
        %s285 = scalar_select %p284, %s21, 1
        %p286 = scmp.lt.s32.totalorder %s283, 1
        %s287 = scalar_select %p286, %s283, 1
        %s288 = smul.addr %s285, 2
        %s289 = sadd.s32 %s287, %s288
        %s290 = smul.addr %s289, 4
        %s291 = scalar_lea.vmem %s2, %s290
        %s292 = sadd.s32 %s22, 1
        %s293 = smul.u32 %s292, 2
        %p294 = scmp.lt.s32.totalorder %s293, 1
        %s295 = scalar_select %p294, %s293, 1
      $region40: #{sr_resnet_forward.6} parent=27 // pred_fallthru
        _
    $region28: #{sr_resnet_forward.6} parent=5 // pred_fallthru
      _
    %p296 = scmp.le.s32.totalorder 1, %s14
    %p297 = scmp.lt.s32.totalorder %s14, 3
    %p298 = pnand %p296, %p297
    %p299 = pneg %p298
    // Predicated region
    $region41: #{sr_resnet_forward.6} parent=5 // pred_check
      _
    $region42: #{sr_resnet_forward.6} parent=5 // pred_check_branch
      %301 = sbr.rel (%p298) target = $region44
    $region43: #{sr_resnet_forward.6} parent=5 // pred_region
      %s302 = ssub.s32 %s14, 1
      %s303 = smul.u32 2, %s24
      %p304 = scmp.lt.s32.totalorder %s23, 1
      %s305 = scalar_select %p304, %s23, 1
      %p306 = scmp.lt.s32.totalorder %s303, 1
      %s307 = scalar_select %p306, %s303, 1
      %s308 = smul.addr %s305, 2
      %s309 = sadd.s32 %s307, %s308
      %s310 = smul.addr %s309, 4
      %s311 = scalar_lea.vmem %s0, %s310
      %p312 = pneg %p54
      %p313 = pneg %p51
      %s314 = smul.u32 %s24, 2
      %s315 = ssub.s32 %s314, 1
      %p316 = scmp.gt.s32.totalorder %s315, 0
      %s317 = scalar_select %p316, %s315, 0
      %p318 = scmp.lt.s32.totalorder %s23, 1
      %s319 = scalar_select %p318, %s23, 1
      %p320 = scmp.lt.s32.totalorder %s317, 1
      %s321 = scalar_select %p320, %s317, 1
      %s322 = smul.addr %s319, 2
      %s323 = sadd.s32 %s321, %s322
      %s324 = smul.addr %s323, 4
      %s325 = scalar_lea.vmem %s1, %s324
      %p326 = pneg %p90
      %p327 = pneg %p87
      %s328 = sadd.s32 %s24, 1
      %s329 = smul.u32 %s328, 2
      %p330 = scmp.lt.s32.totalorder %s329, 1
      %s331 = scalar_select %p330, %s329, 1
      %p332 = scmp.lt.s32.totalorder %s23, 1
      %s333 = scalar_select %p332, %s23, 1
      %p334 = scmp.lt.s32.totalorder %s331, 1
      %s335 = scalar_select %p334, %s331, 1
      %s336 = smul.addr %s333, 2
      %s337 = sadd.s32 %s335, %s336
      %s338 = smul.addr %s337, 4
      %s339 = scalar_lea.vmem %s2, %s338
      %p340 = pneg %p126
      %p341 = pneg %p123
      %p342 = pneg %p147
      %p343 = pneg %p144
      %p344 = pneg %p168
      %p345 = pneg %p165
      %p346 = pneg %p189
      %p347 = pneg %p186
      %p348 = pneg %p217
      %p349 = pneg %p214
      %s350 = smul.u32 2, %s24
      %p351 = scmp.lt.s32.totalorder %s23, 1
      %s352 = scalar_select %p351, %s23, 1
      %p353 = scmp.lt.s32.totalorder %s350, 1
      %s354 = scalar_select %p353, %s350, 1
      %s355 = smul.addr %s354, 4
      %s356 = smul.addr %s352, 8
      %s357 = sadd.s32 %s355, %s356
      %s358 = smul.addr %s357, 4
      %s359 = scalar_lea.vmem %s6, %s358
      %s360 = smul.u32 2, %s24
      %p361 = scmp.lt.s32.totalorder %s23, 1
      %s362 = scalar_select %p361, %s23, 1
      %p363 = scmp.lt.s32.totalorder %s360, 1
      %s364 = scalar_select %p363, %s360, 1
      %s365 = smul.addr %s362, 2
      %s366 = sadd.s32 %s364, %s365
      %s367 = smul.addr %s366, 4
      %s368 = scalar_lea.vmem %s0, %s367
      %s369 = smul.u32 2, %s24
      %s370 = smul.u32 %s24, 2
      %s371 = ssub.s32 %s370, 1
      %p372 = scmp.gt.s32.totalorder %s371, 0
      %s373 = scalar_select %p372, %s371, 0
      %p374 = scmp.lt.s32.totalorder %s23, 1
      %s375 = scalar_select %p374, %s23, 1
      %p376 = scmp.lt.s32.totalorder %s373, 1
      %s377 = scalar_select %p376, %s373, 1
      %s378 = smul.addr %s375, 2
      %s379 = sadd.s32 %s377, %s378
      %s380 = smul.addr %s379, 4
      %s381 = scalar_lea.vmem %s1, %s380
      %s382 = smul.u32 %s24, 2
      %s383 = ssub.s32 %s382, 1
      %p384 = scmp.gt.s32.totalorder %s383, 0
      %s385 = scalar_select %p384, %s383, 0
      %s386 = sadd.s32 %s24, 1
      %s387 = smul.u32 %s386, 2
      %p388 = scmp.lt.s32.totalorder %s387, 1
      %s389 = scalar_select %p388, %s387, 1
      %p390 = scmp.lt.s32.totalorder %s23, 1
      %s391 = scalar_select %p390, %s23, 1
      %p392 = scmp.lt.s32.totalorder %s389, 1
      %s393 = scalar_select %p392, %s389, 1
      %s394 = smul.addr %s391, 2
      %s395 = sadd.s32 %s393, %s394
      %s396 = smul.addr %s395, 4
      %s397 = scalar_lea.vmem %s2, %s396
      %s398 = sadd.s32 %s24, 1
      %s399 = smul.u32 %s398, 2
      %p400 = scmp.lt.s32.totalorder %s399, 1
      %s401 = scalar_select %p400, %s399, 1
      %s402 = smul.u32 2, %s24
      %p403 = scmp.lt.s32.totalorder %s23, 1
      %s404 = scalar_select %p403, %s23, 1
      %p405 = scmp.lt.s32.totalorder %s402, 1
      %s406 = scalar_select %p405, %s402, 1
      %s407 = smul.addr %s406, 4
      %s408 = smul.addr %s404, 8
      %s409 = sadd.s32 %s407, %s408
      %s410 = smul.addr %s409, 4
      %s411 = scalar_lea.vmem %s6, %s410
      %s412 = smul.u32 2, %s24
      %v414 = vld [vmem:[%s368] sm:$0xf]
      %v415 = vld [vmem:[%s368 + $0x4] sm:$0xf]
      %v416 = vld [vmem:[%s381] sm:$0xf]
      %v417 = vld [vmem:[%s397] sm:$0xf]
      %p418 = scmp.gt.s32.totalorder %s24, 0
      %s419 = scalar_select %p418, 1, 0
      %v420 = vstv %s419
      %vm421 = vcmp.eq.s32.totalorder %v420, 1
      %v422 = vsel %vm421, %v416, 0
      %s423 = sadd.s32 %s24, 1
      %s424 = smul.u32 %s423, 16
      %v425 = vlaneseq
      %v426 = vshrl.u32 %v425, 7
      %v427 = vstv %s424
      %v428 = vadd.s32 %v427, %v426
      %vm429 = vcmp.lt.s32.totalorder %v428, 16
      %vm430 = vmpackc.low %vm429, %vm429
      %v431 = vsel %vm430, %v417, 0
      %v434 = vunpack.c.l.b16 %v414
      %v435 = vunpack.c.l.b16 %v415
      %v436 = vpack.c.b16 %v434, %v434
      %v437 = vpack.c.b16 %v435, %v435
      %v439 = vunpack.c.l.b16 %v431
      %v440 = vpack.c.b16 %v439, %v439
      %vm441 = vcmask 1043456
      %v444 = vsel %vm441, %v422, %v436
      %v447 = vsel %vm441, %v437, %v440
      %v448 = vld [vmem:[%s3] sm:$0xff]
      %v449 = vld [vmem:[%s3 + $0x8] sm:$0xff]
      %v450 = vld [vmem:[%s3 + $0x10] sm:$0xff]
      %v451 = vld [vmem:[%s3 + $0x18] sm:$0xff]
      %v452 = vld [vmem:[%s3 + $0x20] sm:$0xff]
      %v453 = vld [vmem:[%s3 + $0x28] sm:$0xff]
      %v454 = vld [vmem:[%s3 + $0x30] sm:$0xff]
      %v455 = vld [vmem:[%s3 + $0x38] sm:$0xff]
      %v456 = vld [vmem:[%s3 + $0x40] sm:$0xff]
      %v457 = vld [vmem:[%s3 + $0x48] sm:$0xff]
      %v458 = vld [vmem:[%s3 + $0x50] sm:$0xff]
      %v459 = vld [vmem:[%s3 + $0x58] sm:$0xff]
      %v460 = vld [vmem:[%s3 + $0x60] sm:$0xff]
      %v461 = vld [vmem:[%s3 + $0x68] sm:$0xff]
      %v462 = vld [vmem:[%s3 + $0x70] sm:$0xff]
      %v463 = vld [vmem:[%s3 + $0x78] sm:$0xff]
      %v464 = vld [vmem:[%s3 + $0x80] sm:$0xff]
      %v465 = vld [vmem:[%s3 + $0x88] sm:$0xff]
      %v466 = vld [vmem:[%s3 + $0x90] sm:$0xff]
      %v467 = vld [vmem:[%s3 + $0x98] sm:$0xff]
      %v468 = vld [vmem:[%s3 + $0xa0] sm:$0xff]
      %v469 = vld [vmem:[%s3 + $0xa8] sm:$0xff]
      %v470 = vld [vmem:[%s3 + $0xb0] sm:$0xff]
      %v471 = vld [vmem:[%s3 + $0xb8] sm:$0xff]
      %v472 = vld [vmem:[%s3 + $0xc0] sm:$0xff]
      %v473 = vld [vmem:[%s3 + $0xc8] sm:$0xff]
      %v474 = vld [vmem:[%s3 + $0xd0] sm:$0xff]
      %v475 = vld [vmem:[%s3 + $0xd8] sm:$0xff]
      %v476 = vld [vmem:[%s3 + $0xe0] sm:$0xff]
      %v477 = vld [vmem:[%s3 + $0xe8] sm:$0xff]
      %v478 = vld [vmem:[%s3 + $0xf0] sm:$0xff]
      %v479 = vld [vmem:[%s3 + $0xf8] sm:$0xff]
      %s480 = scalar_lea.vmem %s3, 256
      %v481 = vld [vmem:[%s480] sm:$0xff]
      %v482 = vld [vmem:[%s480 + $0x8] sm:$0xff]
      %v483 = vld [vmem:[%s480 + $0x10] sm:$0xff]
      %v484 = vld [vmem:[%s480 + $0x18] sm:$0xff]
      %v485 = vld [vmem:[%s480 + $0x20] sm:$0xff]
      %v486 = vld [vmem:[%s480 + $0x28] sm:$0xff]
      %v487 = vld [vmem:[%s480 + $0x30] sm:$0xff]
      %v488 = vld [vmem:[%s480 + $0x38] sm:$0xff]
      %v489 = vld [vmem:[%s480 + $0x40] sm:$0xff]
      %v490 = vld [vmem:[%s480 + $0x48] sm:$0xff]
      %v491 = vld [vmem:[%s480 + $0x50] sm:$0xff]
      %v492 = vld [vmem:[%s480 + $0x58] sm:$0xff]
      %v493 = vld [vmem:[%s480 + $0x60] sm:$0xff]
      %v494 = vld [vmem:[%s480 + $0x68] sm:$0xff]
      %v495 = vld [vmem:[%s480 + $0x70] sm:$0xff]
      %v496 = vld [vmem:[%s480 + $0x78] sm:$0xff]
      %v497 = vld [vmem:[%s480 + $0x80] sm:$0xff]
      %v498 = vld [vmem:[%s480 + $0x88] sm:$0xff]
      %v499 = vld [vmem:[%s480 + $0x90] sm:$0xff]
      %v500 = vld [vmem:[%s480 + $0x98] sm:$0xff]
      %v501 = vld [vmem:[%s480 + $0xa0] sm:$0xff]
      %v502 = vld [vmem:[%s480 + $0xa8] sm:$0xff]
      %v503 = vld [vmem:[%s480 + $0xb0] sm:$0xff]
      %v504 = vld [vmem:[%s480 + $0xb8] sm:$0xff]
      %v505 = vld [vmem:[%s480 + $0xc0] sm:$0xff]
      %v506 = vld [vmem:[%s480 + $0xc8] sm:$0xff]
      %v507 = vld [vmem:[%s480 + $0xd0] sm:$0xff]
      %v508 = vld [vmem:[%s480 + $0xd8] sm:$0xff]
      %v509 = vld [vmem:[%s480 + $0xe0] sm:$0xff]
      %v510 = vld [vmem:[%s480 + $0xe8] sm:$0xff]
      %v511 = vld [vmem:[%s480 + $0xf0] sm:$0xff]
      %v512 = vld [vmem:[%s480 + $0xf8] sm:$0xff]
      %vm515 = vcmask 1043456
      %v516 = vrot.slane %v444, 4
      %v517 = vrot.slane %v447, 4
      %v518 = vsel %vm515, %v516, %v517
      %v552 = vunpack.c.l.b16 %v481
      %v553 = vunpack.c.h.b16 %v481
      %v554 = vunpack.c.l.b16 %v482
      %v555 = vunpack.c.h.b16 %v482
      %v556 = vunpack.c.l.b16 %v483
      %v557 = vunpack.c.h.b16 %v483
      %v558 = vunpack.c.l.b16 %v484
      %v559 = vunpack.c.h.b16 %v484
      %v560 = vunpack.c.l.b16 %v485
      %v561 = vunpack.c.h.b16 %v485
      %v562 = vunpack.c.l.b16 %v486
      %v563 = vunpack.c.h.b16 %v486
      %v564 = vunpack.c.l.b16 %v487
      %v565 = vunpack.c.h.b16 %v487
      %v566 = vunpack.c.l.b16 %v488
      %v567 = vunpack.c.h.b16 %v488
      %v568 = vunpack.c.l.b16 %v489
      %v569 = vunpack.c.h.b16 %v489
      %v570 = vunpack.c.l.b16 %v490
      %v571 = vunpack.c.h.b16 %v490
      %v572 = vunpack.c.l.b16 %v491
      %v573 = vunpack.c.h.b16 %v491
      %v574 = vunpack.c.l.b16 %v492
      %v575 = vunpack.c.h.b16 %v492
      %v576 = vunpack.c.l.b16 %v493
      %v577 = vunpack.c.h.b16 %v493
      %v578 = vunpack.c.l.b16 %v494
      %v579 = vunpack.c.h.b16 %v494
      %v580 = vunpack.c.l.b16 %v495
      %v581 = vunpack.c.h.b16 %v495
      %v582 = vunpack.c.l.b16 %v496
      %v583 = vunpack.c.h.b16 %v496
      %v584 = vunpack.c.l.b16 %v497
      %v585 = vunpack.c.h.b16 %v497
      %v586 = vunpack.c.l.b16 %v498
      %v587 = vunpack.c.h.b16 %v498
      %v588 = vunpack.c.l.b16 %v499
      %v589 = vunpack.c.h.b16 %v499
      %v590 = vunpack.c.l.b16 %v500
      %v591 = vunpack.c.h.b16 %v500
      %v592 = vunpack.c.l.b16 %v501
      %v593 = vunpack.c.h.b16 %v501
      %v594 = vunpack.c.l.b16 %v502
      %v595 = vunpack.c.h.b16 %v502
      %v596 = vunpack.c.l.b16 %v503
      %v597 = vunpack.c.h.b16 %v503
      %v598 = vunpack.c.l.b16 %v504
      %v599 = vunpack.c.h.b16 %v504
      %v600 = vunpack.c.l.b16 %v505
      %v601 = vunpack.c.h.b16 %v505
      %v602 = vunpack.c.l.b16 %v506
      %v603 = vunpack.c.h.b16 %v506
      %v604 = vunpack.c.l.b16 %v507
      %v605 = vunpack.c.h.b16 %v507
      %v606 = vunpack.c.l.b16 %v508
      %v607 = vunpack.c.h.b16 %v508
      %v608 = vunpack.c.l.b16 %v509
      %v609 = vunpack.c.h.b16 %v509
      %v610 = vunpack.c.l.b16 %v510
      %v611 = vunpack.c.h.b16 %v510
      %v612 = vunpack.c.l.b16 %v511
      %v613 = vunpack.c.h.b16 %v511
      %v614 = vunpack.c.l.b16 %v512
      %v615 = vunpack.c.h.b16 %v512
      %v616 = vpack.c.b16 %v556, %v552
      %v617 = vpack.c.b16 %v557, %v553
      %v618 = vpack.c.b16 %v558, %v554
      %v619 = vpack.c.b16 %v559, %v555
      %v620 = vpack.c.b16 %v564, %v560
      %v621 = vpack.c.b16 %v565, %v561
      %v622 = vpack.c.b16 %v566, %v562
      %v623 = vpack.c.b16 %v567, %v563
      %v624 = vpack.c.b16 %v572, %v568
      %v625 = vpack.c.b16 %v573, %v569
      %v626 = vpack.c.b16 %v574, %v570
      %v627 = vpack.c.b16 %v575, %v571
      %v628 = vpack.c.b16 %v580, %v576
      %v629 = vpack.c.b16 %v581, %v577
      %v630 = vpack.c.b16 %v582, %v578
      %v631 = vpack.c.b16 %v583, %v579
      %v632 = vpack.c.b16 %v588, %v584
      %v633 = vpack.c.b16 %v589, %v585
      %v634 = vpack.c.b16 %v590, %v586
      %v635 = vpack.c.b16 %v591, %v587
      %v636 = vpack.c.b16 %v596, %v592
      %v637 = vpack.c.b16 %v597, %v593
      %v638 = vpack.c.b16 %v598, %v594
      %v639 = vpack.c.b16 %v599, %v595
      %v640 = vpack.c.b16 %v604, %v600
      %v641 = vpack.c.b16 %v605, %v601
      %v642 = vpack.c.b16 %v606, %v602
      %v643 = vpack.c.b16 %v607, %v603
      %v644 = vpack.c.b16 %v612, %v608
      %v645 = vpack.c.b16 %v613, %v609
      %v646 = vpack.c.b16 %v614, %v610
      %v647 = vpack.c.b16 %v615, %v611
      %680 = vmatprep.subr.bf16.mxu0 %v617
      %681 = vmatpush1.bf16.msra.mxu0 %v616
      %682 = vmatprep.subr.bf16.mxu0 %v621
      %683 = vmatpush1.bf16.msra.mxu0 %v620
      %684 = vmatprep.subr.bf16.mxu0 %v625
      %685 = vmatpush1.bf16.msra.mxu0 %v624
      %686 = vmatprep.subr.bf16.mxu0 %v629
      %687 = vmatpush1.bf16.msra.mxu0 %v628
      %688 = vmatprep.subr.bf16.mxu0 %v633
      %689 = vmatpush1.bf16.msra.mxu0 %v632
      %690 = vmatprep.subr.bf16.mxu0 %v637
      %691 = vmatpush1.bf16.msra.mxu0 %v636
      %692 = vmatprep.subr.bf16.mxu0 %v641
      %693 = vmatpush1.bf16.msra.mxu0 %v640
      %694 = vmatprep.subr.bf16.mxu0 %v645
      %695 = vmatpush1.bf16.msra.mxu0 %v644
      %696 = vmatprep.subr.bf16.mxu0 0
      %697 = vmatpush1.bf16.msra.mxu0 0
      %698 = vmatprep.subr.bf16.mxu0 0
      %699 = vmatpush1.bf16.msra.mxu0 0
      %700 = vmatprep.subr.bf16.mxu0 0
      %701 = vmatpush1.bf16.msra.mxu0 0
      %702 = vmatprep.subr.bf16.mxu0 0
      %703 = vmatpush1.bf16.msra.mxu0 0
      %704 = vmatprep.subr.bf16.mxu0 0
      %705 = vmatpush1.bf16.msra.mxu0 0
      %706 = vmatprep.subr.bf16.mxu0 0
      %707 = vmatpush1.bf16.msra.mxu0 0
      %708 = vmatprep.subr.bf16.mxu0 0
      %709 = vmatpush1.bf16.msra.mxu0 0
      %710 = vmatprep.subr.bf16.mxu0 0
      %711 = vmatpush1.bf16.msra.mxu0 0
      %712 = vmatprep.mubr.bf16.mxu0 0
      %713 = vmatmul.mubr.bf16.gmra.mrb[0].mxu0 %v518
      %v714 = vpop.f32.mrb[0].mxu0
      %v715 = vadd.f32 0.0, %v714
      %v716 = vpop.f32.mrb[0].mxu0
      %v717 = vadd.f32 0.0, %v716
      %v718 = vpop.f32.mrb[0].mxu0
      %v719 = vadd.f32 0.0, %v718
      %v720 = vpop.f32.mrb[0].mxu0
      %v721 = vadd.f32 0.0, %v720
      %722 = vdwg.mxu0
      %723 = vmatprep.subr.bf16.mxu0 %v619
      %724 = vmatpush1.bf16.msra.mxu0 %v618
      %725 = vmatprep.subr.bf16.mxu0 %v623
      %726 = vmatpush1.bf16.msra.mxu0 %v622
      %727 = vmatprep.subr.bf16.mxu0 %v627
      %728 = vmatpush1.bf16.msra.mxu0 %v626
      %729 = vmatprep.subr.bf16.mxu0 %v631
      %730 = vmatpush1.bf16.msra.mxu0 %v630
      %731 = vmatprep.subr.bf16.mxu0 %v635
      %732 = vmatpush1.bf16.msra.mxu0 %v634
      %733 = vmatprep.subr.bf16.mxu0 %v639
      %734 = vmatpush1.bf16.msra.mxu0 %v638
      %735 = vmatprep.subr.bf16.mxu0 %v643
      %736 = vmatpush1.bf16.msra.mxu0 %v642
      %737 = vmatprep.subr.bf16.mxu0 %v647
      %738 = vmatpush1.bf16.msra.mxu0 %v646
      %739 = vmatprep.subr.bf16.mxu0 0
      %740 = vmatpush1.bf16.msra.mxu0 0
      %741 = vmatprep.subr.bf16.mxu0 0
      %742 = vmatpush1.bf16.msra.mxu0 0
      %743 = vmatprep.subr.bf16.mxu0 0
      %744 = vmatpush1.bf16.msra.mxu0 0
      %745 = vmatprep.subr.bf16.mxu0 0
      %746 = vmatpush1.bf16.msra.mxu0 0
      %747 = vmatprep.subr.bf16.mxu0 0
      %748 = vmatpush1.bf16.msra.mxu0 0
      %749 = vmatprep.subr.bf16.mxu0 0
      %750 = vmatpush1.bf16.msra.mxu0 0
      %751 = vmatprep.subr.bf16.mxu0 0
      %752 = vmatpush1.bf16.msra.mxu0 0
      %753 = vmatprep.subr.bf16.mxu0 0
      %754 = vmatpush1.bf16.msra.mxu0 0
      %755 = vmatprep.mubr.bf16.mxu0 0
      %756 = vmatmul.mubr.bf16.gmra.mrb[0].mxu0 %v518
      %v757 = vpop.f32.mrb[0].mxu0
      %v758 = vadd.f32 0.0, %v757
      %v759 = vpop.f32.mrb[0].mxu0
      %v760 = vadd.f32 0.0, %v759
      %v761 = vpop.f32.mrb[0].mxu0
      %v762 = vadd.f32 0.0, %v761
      %v763 = vpop.f32.mrb[0].mxu0
      %v764 = vadd.f32 0.0, %v763
      %765 = vdwg.mxu0
      %vm766 = vsmask.f32 4352
      %v767 = vshrl.u32 %v444, 16
      %v769 = vrot.slane %v767, 3
      %v770 = vshll.u32 %v444, 16
      %v772 = vrot.slane %v770, 4
      %v773 = vor.u32 %v769, %v772
      %v774 = vshrl.u32 %v447, 16
      %v776 = vrot.slane %v774, 3
      %v777 = vshll.u32 %v447, 16
      %v779 = vrot.slane %v777, 4
      %v780 = vor.u32 %v776, %v779
      %v781 = vsel %vm766, %v773, %v780
      %v815 = vunpack.c.l.b16 %v448
      %v816 = vunpack.c.h.b16 %v448
      %v817 = vunpack.c.l.b16 %v449
      %v818 = vunpack.c.h.b16 %v449
      %v819 = vunpack.c.l.b16 %v450
      %v820 = vunpack.c.h.b16 %v450
      %v821 = vunpack.c.l.b16 %v451
      %v822 = vunpack.c.h.b16 %v451
      %v823 = vunpack.c.l.b16 %v452
      %v824 = vunpack.c.h.b16 %v452
      %v825 = vunpack.c.l.b16 %v453
      %v826 = vunpack.c.h.b16 %v453
      %v827 = vunpack.c.l.b16 %v454
      %v828 = vunpack.c.h.b16 %v454
      %v829 = vunpack.c.l.b16 %v455
      %v830 = vunpack.c.h.b16 %v455
      %v831 = vunpack.c.l.b16 %v456
      %v832 = vunpack.c.h.b16 %v456
      %v833 = vunpack.c.l.b16 %v457
      %v834 = vunpack.c.h.b16 %v457
      %v835 = vunpack.c.l.b16 %v458
      %v836 = vunpack.c.h.b16 %v458
      %v837 = vunpack.c.l.b16 %v459
      %v838 = vunpack.c.h.b16 %v459
      %v839 = vunpack.c.l.b16 %v460
      %v840 = vunpack.c.h.b16 %v460
      %v841 = vunpack.c.l.b16 %v461
      %v842 = vunpack.c.h.b16 %v461
      %v843 = vunpack.c.l.b16 %v462
      %v844 = vunpack.c.h.b16 %v462
      %v845 = vunpack.c.l.b16 %v463
      %v846 = vunpack.c.h.b16 %v463
      %v847 = vunpack.c.l.b16 %v464
      %v848 = vunpack.c.h.b16 %v464
      %v849 = vunpack.c.l.b16 %v465
      %v850 = vunpack.c.h.b16 %v465
      %v851 = vunpack.c.l.b16 %v466
      %v852 = vunpack.c.h.b16 %v466
      %v853 = vunpack.c.l.b16 %v467
      %v854 = vunpack.c.h.b16 %v467
      %v855 = vunpack.c.l.b16 %v468
      %v856 = vunpack.c.h.b16 %v468
      %v857 = vunpack.c.l.b16 %v469
      %v858 = vunpack.c.h.b16 %v469
      %v859 = vunpack.c.l.b16 %v470
      %v860 = vunpack.c.h.b16 %v470
      %v861 = vunpack.c.l.b16 %v471
      %v862 = vunpack.c.h.b16 %v471
      %v863 = vunpack.c.l.b16 %v472
      %v864 = vunpack.c.h.b16 %v472
      %v865 = vunpack.c.l.b16 %v473
      %v866 = vunpack.c.h.b16 %v473
      %v867 = vunpack.c.l.b16 %v474
      %v868 = vunpack.c.h.b16 %v474
      %v869 = vunpack.c.l.b16 %v475
      %v870 = vunpack.c.h.b16 %v475
      %v871 = vunpack.c.l.b16 %v476
      %v872 = vunpack.c.h.b16 %v476
      %v873 = vunpack.c.l.b16 %v477
      %v874 = vunpack.c.h.b16 %v477
      %v875 = vunpack.c.l.b16 %v478
      %v876 = vunpack.c.h.b16 %v478
      %v877 = vunpack.c.l.b16 %v479
      %v878 = vunpack.c.h.b16 %v479
      %v879 = vpack.c.b16 %v819, %v815
      %v880 = vpack.c.b16 %v820, %v816
      %v881 = vpack.c.b16 %v821, %v817
      %v882 = vpack.c.b16 %v822, %v818
      %v883 = vpack.c.b16 %v827, %v823
      %v884 = vpack.c.b16 %v828, %v824
      %v885 = vpack.c.b16 %v829, %v825
      %v886 = vpack.c.b16 %v830, %v826
      %v887 = vpack.c.b16 %v835, %v831
      %v888 = vpack.c.b16 %v836, %v832
      %v889 = vpack.c.b16 %v837, %v833
      %v890 = vpack.c.b16 %v838, %v834
      %v891 = vpack.c.b16 %v843, %v839
      %v892 = vpack.c.b16 %v844, %v840
      %v893 = vpack.c.b16 %v845, %v841
      %v894 = vpack.c.b16 %v846, %v842
      %v895 = vpack.c.b16 %v851, %v847
      %v896 = vpack.c.b16 %v852, %v848
      %v897 = vpack.c.b16 %v853, %v849
      %v898 = vpack.c.b16 %v854, %v850
      %v899 = vpack.c.b16 %v859, %v855
      %v900 = vpack.c.b16 %v860, %v856
      %v901 = vpack.c.b16 %v861, %v857
      %v902 = vpack.c.b16 %v862, %v858
      %v903 = vpack.c.b16 %v867, %v863
      %v904 = vpack.c.b16 %v868, %v864
      %v905 = vpack.c.b16 %v869, %v865
      %v906 = vpack.c.b16 %v870, %v866
      %v907 = vpack.c.b16 %v875, %v871
      %v908 = vpack.c.b16 %v876, %v872
      %v909 = vpack.c.b16 %v877, %v873
      %v910 = vpack.c.b16 %v878, %v874
      %943 = vmatprep.subr.bf16.mxu0 %v880
      %944 = vmatpush1.bf16.msra.mxu0 %v879
      %945 = vmatprep.subr.bf16.mxu0 %v884
      %946 = vmatpush1.bf16.msra.mxu0 %v883
      %947 = vmatprep.subr.bf16.mxu0 %v888
      %948 = vmatpush1.bf16.msra.mxu0 %v887
      %949 = vmatprep.subr.bf16.mxu0 %v892
      %950 = vmatpush1.bf16.msra.mxu0 %v891
      %951 = vmatprep.subr.bf16.mxu0 %v896
      %952 = vmatpush1.bf16.msra.mxu0 %v895
      %953 = vmatprep.subr.bf16.mxu0 %v900
      %954 = vmatpush1.bf16.msra.mxu0 %v899
      %955 = vmatprep.subr.bf16.mxu0 %v904
      %956 = vmatpush1.bf16.msra.mxu0 %v903
      %957 = vmatprep.subr.bf16.mxu0 %v908
      %958 = vmatpush1.bf16.msra.mxu0 %v907
      %959 = vmatprep.subr.bf16.mxu0 0
      %960 = vmatpush1.bf16.msra.mxu0 0
      %961 = vmatprep.subr.bf16.mxu0 0
      %962 = vmatpush1.bf16.msra.mxu0 0
      %963 = vmatprep.subr.bf16.mxu0 0
      %964 = vmatpush1.bf16.msra.mxu0 0
      %965 = vmatprep.subr.bf16.mxu0 0
      %966 = vmatpush1.bf16.msra.mxu0 0
      %967 = vmatprep.subr.bf16.mxu0 0
      %968 = vmatpush1.bf16.msra.mxu0 0
      %969 = vmatprep.subr.bf16.mxu0 0
      %970 = vmatpush1.bf16.msra.mxu0 0
      %971 = vmatprep.subr.bf16.mxu0 0
      %972 = vmatpush1.bf16.msra.mxu0 0
      %973 = vmatprep.subr.bf16.mxu0 0
      %974 = vmatpush1.bf16.msra.mxu0 0
      %975 = vmatprep.mubr.bf16.mxu0 0
      %976 = vmatmul.mubr.bf16.gmra.mrb[0].mxu0 %v781
      %v977 = vpop.f32.mrb[0].mxu0
      %v978 = vadd.f32 %v715, %v977
      %v979 = vpop.f32.mrb[0].mxu0
      %v980 = vadd.f32 %v717, %v979
      %v981 = vpop.f32.mrb[0].mxu0
      %v982 = vadd.f32 %v719, %v981
      %v983 = vpop.f32.mrb[0].mxu0
      %v984 = vadd.f32 %v721, %v983
      %985 = vdwg.mxu0
      %986 = vmatprep.subr.bf16.mxu0 %v882
      %987 = vmatpush1.bf16.msra.mxu0 %v881
      %988 = vmatprep.subr.bf16.mxu0 %v886
      %989 = vmatpush1.bf16.msra.mxu0 %v885
      %990 = vmatprep.subr.bf16.mxu0 %v890
      %991 = vmatpush1.bf16.msra.mxu0 %v889
      %992 = vmatprep.subr.bf16.mxu0 %v894
      %993 = vmatpush1.bf16.msra.mxu0 %v893
      %994 = vmatprep.subr.bf16.mxu0 %v898
      %995 = vmatpush1.bf16.msra.mxu0 %v897
      %996 = vmatprep.subr.bf16.mxu0 %v902
      %997 = vmatpush1.bf16.msra.mxu0 %v901
      %998 = vmatprep.subr.bf16.mxu0 %v906
      %999 = vmatpush1.bf16.msra.mxu0 %v905
      %1000 = vmatprep.subr.bf16.mxu0 %v910
      %1001 = vmatpush1.bf16.msra.mxu0 %v909
      %1002 = vmatprep.subr.bf16.mxu0 0
      %1003 = vmatpush1.bf16.msra.mxu0 0
      %1004 = vmatprep.subr.bf16.mxu0 0
      %1005 = vmatpush1.bf16.msra.mxu0 0
      %1006 = vmatprep.subr.bf16.mxu0 0
      %1007 = vmatpush1.bf16.msra.mxu0 0
      %1008 = vmatprep.subr.bf16.mxu0 0
      %1009 = vmatpush1.bf16.msra.mxu0 0
      %1010 = vmatprep.subr.bf16.mxu0 0
      %1011 = vmatpush1.bf16.msra.mxu0 0
      %1012 = vmatprep.subr.bf16.mxu0 0
      %1013 = vmatpush1.bf16.msra.mxu0 0
      %1014 = vmatprep.subr.bf16.mxu0 0
      %1015 = vmatpush1.bf16.msra.mxu0 0
      %1016 = vmatprep.subr.bf16.mxu0 0
      %1017 = vmatpush1.bf16.msra.mxu0 0
      %1018 = vmatprep.mubr.bf16.mxu0 0
      %1019 = vmatmul.mubr.bf16.gmra.mrb[0].mxu0 %v781
      %v1020 = vpop.f32.mrb[0].mxu0
      %v1021 = vadd.f32 %v758, %v1020
      %v1022 = vpop.f32.mrb[0].mxu0
      %v1023 = vadd.f32 %v760, %v1022
      %v1024 = vpop.f32.mrb[0].mxu0
      %v1025 = vadd.f32 %v762, %v1024
      %v1026 = vpop.f32.mrb[0].mxu0
      %v1027 = vadd.f32 %v764, %v1026
      %1028 = vdwg.mxu0
      %s1029 = scalar_lea.vmem %s3, 512
      %v1030 = vld [vmem:[%s1029] sm:$0xff]
      %v1031 = vld [vmem:[%s1029 + $0x8] sm:$0xff]
      %v1032 = vld [vmem:[%s1029 + $0x10] sm:$0xff]
      %v1033 = vld [vmem:[%s1029 + $0x18] sm:$0xff]
      %v1034 = vld [vmem:[%s1029 + $0x20] sm:$0xff]
      %v1035 = vld [vmem:[%s1029 + $0x28] sm:$0xff]
      %v1036 = vld [vmem:[%s1029 + $0x30] sm:$0xff]
      %v1037 = vld [vmem:[%s1029 + $0x38] sm:$0xff]
      %v1038 = vld [vmem:[%s1029 + $0x40] sm:$0xff]
      %v1039 = vld [vmem:[%s1029 + $0x48] sm:$0xff]
      %v1040 = vld [vmem:[%s1029 + $0x50] sm:$0xff]
      %v1041 = vld [vmem:[%s1029 + $0x58] sm:$0xff]
      %v1042 = vld [vmem:[%s1029 + $0x60] sm:$0xff]
      %v1043 = vld [vmem:[%s1029 + $0x68] sm:$0xff]
      %v1044 = vld [vmem:[%s1029 + $0x70] sm:$0xff]
      %v1045 = vld [vmem:[%s1029 + $0x78] sm:$0xff]
      %v1046 = vld [vmem:[%s1029 + $0x80] sm:$0xff]
      %v1047 = vld [vmem:[%s1029 + $0x88] sm:$0xff]
      %v1048 = vld [vmem:[%s1029 + $0x90] sm:$0xff]
      %v1049 = vld [vmem:[%s1029 + $0x98] sm:$0xff]
      %v1050 = vld [vmem:[%s1029 + $0xa0] sm:$0xff]
      %v1051 = vld [vmem:[%s1029 + $0xa8] sm:$0xff]
      %v1052 = vld [vmem:[%s1029 + $0xb0] sm:$0xff]
      %v1053 = vld [vmem:[%s1029 + $0xb8] sm:$0xff]
      %v1054 = vld [vmem:[%s1029 + $0xc0] sm:$0xff]
      %v1055 = vld [vmem:[%s1029 + $0xc8] sm:$0xff]
      %v1056 = vld [vmem:[%s1029 + $0xd0] sm:$0xff]
      %v1057 = vld [vmem:[%s1029 + $0xd8] sm:$0xff]
      %v1058 = vld [vmem:[%s1029 + $0xe0] sm:$0xff]
      %v1059 = vld [vmem:[%s1029 + $0xe8] sm:$0xff]
      %v1060 = vld [vmem:[%s1029 + $0xf0] sm:$0xff]
      %v1061 = vld [vmem:[%s1029 + $0xf8] sm:$0xff]
      %vm1062 = vsmask.f32 3328
      %v1063 = vrot.slane %v767, 4
      %v1064 = vrot.slane %v770, 5
      %v1065 = vor.u32 %v1063, %v1064
      %v1066 = vrot.slane %v774, 4
      %v1067 = vrot.slane %v777, 5
      %v1068 = vor.u32 %v1066, %v1067
      %v1069 = vsel %vm1062, %v1065, %v1068
      %v1103 = vunpack.c.l.b16 %v1030
      %v1104 = vunpack.c.h.b16 %v1030
      %v1105 = vunpack.c.l.b16 %v1031
      %v1106 = vunpack.c.h.b16 %v1031
      %v1107 = vunpack.c.l.b16 %v1032
      %v1108 = vunpack.c.h.b16 %v1032
      %v1109 = vunpack.c.l.b16 %v1033
      %v1110 = vunpack.c.h.b16 %v1033
      %v1111 = vunpack.c.l.b16 %v1034
      %v1112 = vunpack.c.h.b16 %v1034
      %v1113 = vunpack.c.l.b16 %v1035
      %v1114 = vunpack.c.h.b16 %v1035
      %v1115 = vunpack.c.l.b16 %v1036
      %v1116 = vunpack.c.h.b16 %v1036
      %v1117 = vunpack.c.l.b16 %v1037
      %v1118 = vunpack.c.h.b16 %v1037
      %v1119 = vunpack.c.l.b16 %v1038
      %v1120 = vunpack.c.h.b16 %v1038
      %v1121 = vunpack.c.l.b16 %v1039
      %v1122 = vunpack.c.h.b16 %v1039
      %v1123 = vunpack.c.l.b16 %v1040
      %v1124 = vunpack.c.h.b16 %v1040
      %v1125 = vunpack.c.l.b16 %v1041
      %v1126 = vunpack.c.h.b16 %v1041
      %v1127 = vunpack.c.l.b16 %v1042
      %v1128 = vunpack.c.h.b16 %v1042
      %v1129 = vunpack.c.l.b16 %v1043
      %v1130 = vunpack.c.h.b16 %v1043
      %v1131 = vunpack.c.l.b16 %v1044
      %v1132 = vunpack.c.h.b16 %v1044
      %v1133 = vunpack.c.l.b16 %v1045
      %v1134 = vunpack.c.h.b16 %v1045
      %v1135 = vunpack.c.l.b16 %v1046
      %v1136 = vunpack.c.h.b16 %v1046
      %v1137 = vunpack.c.l.b16 %v1047
      %v1138 = vunpack.c.h.b16 %v1047
      %v1139 = vunpack.c.l.b16 %v1048
      %v1140 = vunpack.c.h.b16 %v1048
      %v1141 = vunpack.c.l.b16 %v1049
      %v1142 = vunpack.c.h.b16 %v1049
      %v1143 = vunpack.c.l.b16 %v1050
      %v1144 = vunpack.c.h.b16 %v1050
      %v1145 = vunpack.c.l.b16 %v1051
      %v1146 = vunpack.c.h.b16 %v1051
      %v1147 = vunpack.c.l.b16 %v1052
      %v1148 = vunpack.c.h.b16 %v1052
      %v1149 = vunpack.c.l.b16 %v1053
      %v1150 = vunpack.c.h.b16 %v1053
      %v1151 = vunpack.c.l.b16 %v1054
      %v1152 = vunpack.c.h.b16 %v1054
      %v1153 = vunpack.c.l.b16 %v1055
      %v1154 = vunpack.c.h.b16 %v1055
      %v1155 = vunpack.c.l.b16 %v1056
      %v1156 = vunpack.c.h.b16 %v1056
      %v1157 = vunpack.c.l.b16 %v1057
      %v1158 = vunpack.c.h.b16 %v1057
      %v1159 = vunpack.c.l.b16 %v1058
      %v1160 = vunpack.c.h.b16 %v1058
      %v1161 = vunpack.c.l.b16 %v1059
      %v1162 = vunpack.c.h.b16 %v1059
      %v1163 = vunpack.c.l.b16 %v1060
      %v1164 = vunpack.c.h.b16 %v1060
      %v1165 = vunpack.c.l.b16 %v1061
      %v1166 = vunpack.c.h.b16 %v1061
      %v1167 = vpack.c.b16 %v1107, %v1103
      %v1168 = vpack.c.b16 %v1108, %v1104
      %v1169 = vpack.c.b16 %v1109, %v1105
      %v1170 = vpack.c.b16 %v1110, %v1106
      %v1171 = vpack.c.b16 %v1115, %v1111
      %v1172 = vpack.c.b16 %v1116, %v1112
      %v1173 = vpack.c.b16 %v1117, %v1113
      %v1174 = vpack.c.b16 %v1118, %v1114
      %v1175 = vpack.c.b16 %v1123, %v1119
      %v1176 = vpack.c.b16 %v1124, %v1120
      %v1177 = vpack.c.b16 %v1125, %v1121
      %v1178 = vpack.c.b16 %v1126, %v1122
      %v1179 = vpack.c.b16 %v1131, %v1127
      %v1180 = vpack.c.b16 %v1132, %v1128
      %v1181 = vpack.c.b16 %v1133, %v1129
      %v1182 = vpack.c.b16 %v1134, %v1130
      %v1183 = vpack.c.b16 %v1139, %v1135
      %v1184 = vpack.c.b16 %v1140, %v1136
      %v1185 = vpack.c.b16 %v1141, %v1137
      %v1186 = vpack.c.b16 %v1142, %v1138
      %v1187 = vpack.c.b16 %v1147, %v1143
      %v1188 = vpack.c.b16 %v1148, %v1144
      %v1189 = vpack.c.b16 %v1149, %v1145
      %v1190 = vpack.c.b16 %v1150, %v1146
      %v1191 = vpack.c.b16 %v1155, %v1151
      %v1192 = vpack.c.b16 %v1156, %v1152
      %v1193 = vpack.c.b16 %v1157, %v1153
      %v1194 = vpack.c.b16 %v1158, %v1154
      %v1195 = vpack.c.b16 %v1163, %v1159
      %v1196 = vpack.c.b16 %v1164, %v1160
      %v1197 = vpack.c.b16 %v1165, %v1161
      %v1198 = vpack.c.b16 %v1166, %v1162
      %1231 = vmatprep.subr.bf16.mxu0 %v1168
      %1232 = vmatpush1.bf16.msra.mxu0 %v1167
      %1233 = vmatprep.subr.bf16.mxu0 %v1172
      %1234 = vmatpush1.bf16.msra.mxu0 %v1171
      %1235 = vmatprep.subr.bf16.mxu0 %v1176
      %1236 = vmatpush1.bf16.msra.mxu0 %v1175
      %1237 = vmatprep.subr.bf16.mxu0 %v1180
      %1238 = vmatpush1.bf16.msra.mxu0 %v1179
      %1239 = vmatprep.subr.bf16.mxu0 %v1184
      %1240 = vmatpush1.bf16.msra.mxu0 %v1183
      %1241 = vmatprep.subr.bf16.mxu0 %v1188
      %1242 = vmatpush1.bf16.msra.mxu0 %v1187
      %1243 = vmatprep.subr.bf16.mxu0 %v1192
      %1244 = vmatpush1.bf16.msra.mxu0 %v1191
      %1245 = vmatprep.subr.bf16.mxu0 %v1196
      %1246 = vmatpush1.bf16.msra.mxu0 %v1195
      %1247 = vmatprep.subr.bf16.mxu0 0
      %1248 = vmatpush1.bf16.msra.mxu0 0
      %1249 = vmatprep.subr.bf16.mxu0 0
      %1250 = vmatpush1.bf16.msra.mxu0 0
      %1251 = vmatprep.subr.bf16.mxu0 0
      %1252 = vmatpush1.bf16.msra.mxu0 0
      %1253 = vmatprep.subr.bf16.mxu0 0
      %1254 = vmatpush1.bf16.msra.mxu0 0
      %1255 = vmatprep.subr.bf16.mxu0 0
      %1256 = vmatpush1.bf16.msra.mxu0 0
      %1257 = vmatprep.subr.bf16.mxu0 0
      %1258 = vmatpush1.bf16.msra.mxu0 0
      %1259 = vmatprep.subr.bf16.mxu0 0
      %1260 = vmatpush1.bf16.msra.mxu0 0
      %1261 = vmatprep.subr.bf16.mxu0 0
      %1262 = vmatpush1.bf16.msra.mxu0 0
      %1263 = vmatprep.mubr.bf16.mxu0 0
      %1264 = vmatmul.mubr.bf16.gmra.mrb[0].mxu0 %v1069
      %v1265 = vpop.f32.mrb[0].mxu0
      %v1266 = vadd.f32 0.0, %v1265
      %v1267 = vpop.f32.mrb[0].mxu0
      %v1268 = vadd.f32 0.0, %v1267
      %v1269 = vpop.f32.mrb[0].mxu0
      %v1270 = vadd.f32 0.0, %v1269
      %v1271 = vpop.f32.mrb[0].mxu0
      %v1272 = vadd.f32 0.0, %v1271
      %1273 = vdwg.mxu0
      %1274 = vmatprep.subr.bf16.mxu0 %v1170
      %1275 = vmatpush1.bf16.msra.mxu0 %v1169
      %1276 = vmatprep.subr.bf16.mxu0 %v1174
      %1277 = vmatpush1.bf16.msra.mxu0 %v1173
      %1278 = vmatprep.subr.bf16.mxu0 %v1178
      %1279 = vmatpush1.bf16.msra.mxu0 %v1177
      %1280 = vmatprep.subr.bf16.mxu0 %v1182
      %1281 = vmatpush1.bf16.msra.mxu0 %v1181
      %1282 = vmatprep.subr.bf16.mxu0 %v1186
      %1283 = vmatpush1.bf16.msra.mxu0 %v1185
      %1284 = vmatprep.subr.bf16.mxu0 %v1190
      %1285 = vmatpush1.bf16.msra.mxu0 %v1189
      %1286 = vmatprep.subr.bf16.mxu0 %v1194
      %1287 = vmatpush1.bf16.msra.mxu0 %v1193
      %1288 = vmatprep.subr.bf16.mxu0 %v1198
      %1289 = vmatpush1.bf16.msra.mxu0 %v1197
      %1290 = vmatprep.subr.bf16.mxu0 0
      %1291 = vmatpush1.bf16.msra.mxu0 0
      %1292 = vmatprep.subr.bf16.mxu0 0
      %1293 = vmatpush1.bf16.msra.mxu0 0
      %1294 = vmatprep.subr.bf16.mxu0 0
      %1295 = vmatpush1.bf16.msra.mxu0 0
      %1296 = vmatprep.subr.bf16.mxu0 0
      %1297 = vmatpush1.bf16.msra.mxu0 0
      %1298 = vmatprep.subr.bf16.mxu0 0
      %1299 = vmatpush1.bf16.msra.mxu0 0
      %1300 = vmatprep.subr.bf16.mxu0 0
      %1301 = vmatpush1.bf16.msra.mxu0 0
      %1302 = vmatprep.subr.bf16.mxu0 0
      %1303 = vmatpush1.bf16.msra.mxu0 0
      %1304 = vmatprep.subr.bf16.mxu0 0
      %1305 = vmatpush1.bf16.msra.mxu0 0
      %1306 = vmatprep.mubr.bf16.mxu0 0
      %1307 = vmatmul.mubr.bf16.gmra.mrb[0].mxu0 %v1069
      %v1308 = vpop.f32.mrb[0].mxu0
      %v1309 = vadd.f32 0.0, %v1308
      %v1310 = vpop.f32.mrb[0].mxu0
      %v1311 = vadd.f32 0.0, %v1310
      %v1312 = vpop.f32.mrb[0].mxu0
      %v1313 = vadd.f32 0.0, %v1312
      %v1314 = vpop.f32.mrb[0].mxu0
      %v1315 = vadd.f32 0.0, %v1314
      %1316 = vdwg.mxu0
      %v1317 = vadd.f32 %v978, %v1266
      %v1318 = vadd.f32 %v980, %v1268
      %v1319 = vadd.f32 %v1021, %v1309
      %v1320 = vadd.f32 %v1023, %v1311
      %v1321 = vadd.f32 %v982, %v1270
      %v1322 = vadd.f32 %v984, %v1272
      %v1323 = vadd.f32 %v1025, %v1313
      %v1324 = vadd.f32 %v1027, %v1315
      %v1325 = vld [vmem:[%s4] sm:$0xf]
      %v1327 = vlaneseq
      %v1328 = vshrl.u32 %v1327, 7
      %v1329 = vsub.s32 0, %v1328
      %v1330 = vrot.slane %v1325, %v1329
      %v1331 = vlaneseq
      %v1332 = vshrl.u32 %v1331, 7
      %v1333 = vsub.s32 1, %v1332
      %v1334 = vrot.slane %v1325, %v1333
      %v1335 = vlaneseq
      %v1336 = vshrl.u32 %v1335, 7
      %v1337 = vsub.s32 2, %v1336
      %v1338 = vrot.slane %v1325, %v1337
      %v1339 = vlaneseq
      %v1340 = vshrl.u32 %v1339, 7
      %v1341 = vsub.s32 3, %v1340
      %v1342 = vrot.slane %v1325, %v1341
      %v1347 = vadd.f32 %v1317, %v1330
      %v1348 = vadd.f32 %v1318, %v1334
      %v1349 = vadd.f32 %v1319, %v1338
      %v1350 = vadd.f32 %v1320, %v1342
      %v1351 = vadd.f32 %v1321, %v1330
      %v1352 = vadd.f32 %v1322, %v1334
      %v1353 = vadd.f32 %v1323, %v1338
      %v1354 = vadd.f32 %v1324, %v1342
      %v1355 = vld [vmem:[#allocation2] sm:$0x1]
      %s1356 = vtos %v1355
      %vm1357 = vcmp.ge.f32.partialorder %v1347, 0.0
      %vm1358 = vcmp.ge.f32.partialorder %v1348, 0.0
      %vm1359 = vcmp.ge.f32.partialorder %v1349, 0.0
      %vm1360 = vcmp.ge.f32.partialorder %v1350, 0.0
      %vm1361 = vcmp.ge.f32.partialorder %v1351, 0.0
      %vm1362 = vcmp.ge.f32.partialorder %v1352, 0.0
      %vm1363 = vcmp.ge.f32.partialorder %v1353, 0.0
      %vm1364 = vcmp.ge.f32.partialorder %v1354, 0.0
      %v1365 = vstv %s1356
      %v1366 = vmul.f32 %v1365, %v1347
      %v1367 = vmul.f32 %v1365, %v1348
      %v1368 = vmul.f32 %v1365, %v1349
      %v1369 = vmul.f32 %v1365, %v1350
      %v1370 = vmul.f32 %v1365, %v1351
      %v1371 = vmul.f32 %v1365, %v1352
      %v1372 = vmul.f32 %v1365, %v1353
      %v1373 = vmul.f32 %v1365, %v1354
      %v1374 = vsel %vm1357, %v1347, %v1366
      %v1375 = vsel %vm1358, %v1348, %v1367
      %v1376 = vsel %vm1359, %v1349, %v1368
      %v1377 = vsel %vm1360, %v1350, %v1369
      %v1378 = vsel %vm1361, %v1351, %v1370
      %v1379 = vsel %vm1362, %v1352, %v1371
      %v1380 = vsel %vm1363, %v1353, %v1372
      %v1381 = vsel %vm1364, %v1354, %v1373
      %v1382 = vpack.c.bf16 %v1378, %v1374
      %v1383 = vpack.c.bf16 %v1379, %v1375
      %v1384 = vpack.c.bf16 %v1380, %v1376
      %v1385 = vpack.c.bf16 %v1381, %v1377
      %v1390 = vunpack.c.l.b16 %v1382
      %v1391 = vunpack.c.l.b16 %v1383
      %v1392 = vunpack.c.l.b16 %v1384
      %v1393 = vunpack.c.l.b16 %v1385
      %v1394 = vunpack.c.h.b16 %v1382
      %v1395 = vunpack.c.h.b16 %v1383
      %v1396 = vunpack.c.h.b16 %v1384
      %v1397 = vunpack.c.h.b16 %v1385
      %v1398 = vpack.c.b16 %v1391, %v1390
      %v1399 = vpack.c.b16 %v1393, %v1392
      %v1400 = vpack.c.b16 %v1395, %v1394
      %v1401 = vpack.c.b16 %v1397, %v1396
      %1406 = vst [vmem:[%s411] sm:$0xff] %v1398
      %1407 = vst [vmem:[%s411 + $0x8] sm:$0xff] %v1399
      %1408 = vst [vmem:[%s411 + $0x10] sm:$0xff] %v1400
      %1409 = vst [vmem:[%s411 + $0x18] sm:$0xff] %v1401
      %s1410 = smul.u32 2, %s24
      %p1411 = scmp.lt.s32.totalorder %s23, 1
      %s1412 = scalar_select %p1411, %s23, 1
      %p1413 = scmp.lt.s32.totalorder %s1410, 1
      %s1414 = scalar_select %p1413, %s1410, 1
      %s1415 = smul.addr %s1414, 4
      %s1416 = smul.addr %s1412, 8
      %s1417 = sadd.s32 %s1415, %s1416
      %s1418 = smul.addr %s1417, 4
      %s1419 = scalar_lea.vmem %s6, %s1418
      // Predicated region
      $region45: #{sr_resnet_forward.6} parent=43 // pred_check
        %p1420 = pneg %p214
      $region46: #{sr_resnet_forward.6} parent=43 // pred_check_branch
        %1422 = sbr.rel (%p1420) target = $region48
      $region47: #{sr_resnet_forward.6} parent=43 // pred_region
        %s1423 = smul.u32 2, %s24
      $region48: #{sr_resnet_forward.6} parent=43 // pred_fallthru
        _
    $region44: #{sr_resnet_forward.6} parent=5 // pred_fallthru
      _
    %p1424 = scmp.le.s32.totalorder 2, %s14
    // Predicated region
    $region49: #{sr_resnet_forward.6} parent=5 // pred_check
      %p1425 = pneg %p1424
    $region50: #{sr_resnet_forward.6} parent=5 // pred_check_branch
      %1427 = sbr.rel (%p1425) target = $region52
    $region51: #{sr_resnet_forward.6} parent=5 // pred_region
      %s1428 = ssub.s32 %s14, 2
      // Predicated region
      $region53: #{sr_resnet_forward.6} parent=51 // pred_check
        %p1429 = pneg %p220
      $region54: #{sr_resnet_forward.6} parent=51 // pred_check_branch
        %1431 = sbr.rel (%p1429) target = $region56
      $region55: #{sr_resnet_forward.6} parent=51 // pred_region
        %s1432 = smul.u32 2, %s26
        %p1433 = scmp.lt.s32.totalorder %s25, 1
        %s1434 = scalar_select %p1433, %s25, 1
        %p1435 = scmp.lt.s32.totalorder %s1432, 1
        %s1436 = scalar_select %p1435, %s1432, 1
        %s1437 = smul.addr %s1436, 4
        %s1438 = smul.addr %s1434, 8
        %s1439 = sadd.s32 %s1437, %s1438
        %s1440 = smul.addr %s1439, 4
        %s1441 = scalar_lea.vmem %s6, %s1440
      $region56: #{sr_resnet_forward.6} parent=51 // pred_fallthru
        _
    $region52: #{sr_resnet_forward.6} parent=5 // pred_fallthru
      _
  $region6: #{sr_resnet_forward.6} parent=0 // loop_footer
    %s18 = sadd.s32 1, %s14
  $region7: #{sr_resnet_forward.6} parent=0 // loop_footer_branch
    %13 = sbr.rel target = $region3
  $region8: #{sr_resnet_forward.6} parent=0 // loop_exit
    _

// kernel: sr_resnet_forward.7
$region0: #{sr_resnet_forward.7}
  #allocation0 [shape = 'u32[]', space=smem, size = 0x4, offset = 0x4, fixed_abs, tag = 'smem constant byte address 0x4 - core index']
  #allocation1 [shape = 'u32[144,128]{1,0:T(1,128)}', space=vmem, size = 0x12000, scoped, tag = 'internal scratch']
  %s0 = inlined_call_operand.vmem [shape: bf16[2,32,256], index: 0, kind: input, shape index: {}, may-alias: {0,1,2}]
  %s1 = inlined_call_operand.vmem [shape: bf16[2,32,256], index: 1, kind: input, shape index: {}, may-alias: {0,1,2}]
  %s2 = inlined_call_operand.vmem [shape: bf16[2,32,256], index: 2, kind: input, shape index: {}, may-alias: {0,1,2}]
  %s3 = inlined_call_operand.vmem [shape: bf16[5,256,96], index: 3, kind: input, shape index: {}]
  %s4 = inlined_call_operand.vmem [shape: f32[1,96], index: 4, kind: input, shape index: {}]
  %s5 = inlined_call_operand.vmem [shape: f32[2,32,96], index: 5, kind: output, shape index: {}]
  %s6 = sld [smem:[#allocation0]]
  $region53: #{sr_resnet_forward.7} parent=0
    _
  %s8 = ssub.s32 1, %s6
  %s9 = scalar_select 0, %s8, %s6
  loop: start=0, step=1, limit=4
  $region2: #{sr_resnet_forward.7} parent=0 // loop_pre_header
    _
  $region3: #{sr_resnet_forward.7} parent=0 // loop_header
    %s11 = sphi 0, %s15
    %p12 = scmp.ge.s32.totalorder %s11, 4
    %s18 = sphi 0, %s30
    %s19 = sphi 0, %s26
    %s20 = sphi 0, %s18
    %s21 = sphi 0, %s19
    %s22 = sphi 0, %s20
    %s23 = sphi 0, %s21
    %s35 = sphi 0, %s37
    %s38 = sphi 0, %s35
    %s39 = sphi 0, %s38
    %s55 = sphi 0, %s39
    %s71 = sphi 0, %s73
    %s74 = sphi 0, %s71
    %s75 = sphi 0, %s74
    %s91 = sphi 0, %s75
    %s107 = sphi 0, %s109
    %s110 = sphi 0, %s107
    %s111 = sphi 0, %s110
    %s127 = sphi 0, %s111
    %s131 = sphi 0, %s131
    %s133 = sphi 0, %s131
    %s134 = sphi 0, %s133
    %s148 = sphi 0, %s134
    %s152 = sphi 0, %s152
    %s154 = sphi 0, %s152
    %s155 = sphi 0, %s154
    %s169 = sphi 0, %s155
    %s177 = sphi 0, %s179
    %s180 = sphi 0, %s177
    %s181 = sphi 0, %s180
    %s197 = sphi 0, %s181
  $region4: #{sr_resnet_forward.7} parent=0 // loop_header_branch
    %14 = sbr.rel (%p12) target = $region8
  $region5: #{sr_resnet_forward.7} parent=0 // loop_body
    %s16 = ssub.s32 %s11, 1
    %s17 = ssub.s32 %s11, 2
    %s24 = sadd.s32 1, %s19
    %p25 = scmp.ge.s32.totalorder %s24, 1
    %s26 = scalar_select %p25, 0, %s24
    %s27 = sadd.s32 1, %s18
    %s28 = scalar_select %p25, %s27, %s18
    %p29 = scmp.ge.s32.totalorder %s28, 2
    %s30 = scalar_select %p29, 0, %s28
    %s31 = ssub.s32 %s18, %s30
    %s32 = ssub.s32 %s19, %s26
    %s33 = sor.u32 %s31, %s32
    %p34 = scmp.eq.s32.totalorder %s33, 0
    %s36 = sadd.s32 %s35, 1
    %s37 = scalar_select %p34, %s35, %s36
    %p40 = pneg %p34
    %p41 = scmp.eq.s32.totalorder %s11, 1
    %p42 = por %p40, %p41
    %p43 = scmp.ne.s32.totalorder %s35, %s38
    %p44 = scmp.eq.s32.totalorder %s11, 0
    %p45 = por %p43, %p44
    %p46 = scmp.ne.s32.totalorder %s35, %s38
    %p47 = scmp.eq.s32.totalorder %s16, 1
    %p48 = por %p46, %p47
    %p49 = scmp.ne.s32.totalorder %s38, %s39
    %p50 = scmp.eq.s32.totalorder %s16, 0
    %p51 = por %p49, %p50
    %p52 = scmp.ne.s32.totalorder %s38, %s39
    %p53 = scmp.eq.s32.totalorder %s17, 1
    %p54 = por %p52, %p53
    %p56 = scmp.ne.s32.totalorder %s39, %s55
    %p57 = scmp.eq.s32.totalorder %s17, 0
    %p58 = por %p56, %p57
    %s59 = smul.u32 %s19, 4
    %s60 = ssub.s32 %s59, 1
    %p61 = scmp.gt.s32.totalorder %s60, 0
    %s62 = scalar_select %p61, %s60, 0
    %s63 = smul.u32 %s26, 4
    %s64 = ssub.s32 %s63, 1
    %p65 = scmp.gt.s32.totalorder %s64, 0
    %s66 = scalar_select %p65, %s64, 0
    %s67 = ssub.s32 %s18, %s30
    %s68 = ssub.s32 %s62, %s66
    %s69 = sor.u32 %s67, %s68
    %p70 = scmp.eq.s32.totalorder %s69, 0
    %s72 = sadd.s32 %s71, 1
    %s73 = scalar_select %p70, %s71, %s72
    %p76 = pneg %p70
    %p77 = scmp.eq.s32.totalorder %s11, 1
    %p78 = por %p76, %p77
    %p79 = scmp.ne.s32.totalorder %s71, %s74
    %p80 = scmp.eq.s32.totalorder %s11, 0
    %p81 = por %p79, %p80
    %p82 = scmp.ne.s32.totalorder %s71, %s74
    %p83 = scmp.eq.s32.totalorder %s16, 1
    %p84 = por %p82, %p83
    %p85 = scmp.ne.s32.totalorder %s74, %s75
    %p86 = scmp.eq.s32.totalorder %s16, 0
    %p87 = por %p85, %p86
    %p88 = scmp.ne.s32.totalorder %s74, %s75
    %p89 = scmp.eq.s32.totalorder %s17, 1
    %p90 = por %p88, %p89
    %p92 = scmp.ne.s32.totalorder %s75, %s91
    %p93 = scmp.eq.s32.totalorder %s17, 0
    %p94 = por %p92, %p93
    %s95 = sadd.s32 %s19, 1
    %s96 = smul.u32 %s95, 4
    %p97 = scmp.lt.s32.totalorder %s96, 3
    %s98 = scalar_select %p97, %s96, 3
    %s99 = sadd.s32 %s26, 1
    %s100 = smul.u32 %s99, 4
    %p101 = scmp.lt.s32.totalorder %s100, 3
    %s102 = scalar_select %p101, %s100, 3
    %s103 = ssub.s32 %s18, %s30
    %s104 = ssub.s32 %s98, %s102
    %s105 = sor.u32 %s103, %s104
    %p106 = scmp.eq.s32.totalorder %s105, 0
    %s108 = sadd.s32 %s107, 1
    %s109 = scalar_select %p106, %s107, %s108
    %p112 = pneg %p106
    %p113 = scmp.eq.s32.totalorder %s11, 1
    %p114 = por %p112, %p113
    %p115 = scmp.ne.s32.totalorder %s107, %s110
    %p116 = scmp.eq.s32.totalorder %s11, 0
    %p117 = por %p115, %p116
    %p118 = scmp.ne.s32.totalorder %s107, %s110
    %p119 = scmp.eq.s32.totalorder %s16, 1
    %p120 = por %p118, %p119
    %p121 = scmp.ne.s32.totalorder %s110, %s111
    %p122 = scmp.eq.s32.totalorder %s16, 0
    %p123 = por %p121, %p122
    %p124 = scmp.ne.s32.totalorder %s110, %s111
    %p125 = scmp.eq.s32.totalorder %s17, 1
    %p126 = por %p124, %p125
    %p128 = scmp.ne.s32.totalorder %s111, %s127
    %p129 = scmp.eq.s32.totalorder %s17, 0
    %p130 = por %p128, %p129
    %s132 = sadd.s32 %s131, 1
    %p135 = scmp.eq.s32.totalorder %s11, 1
    %p136 = scmp.ne.s32.totalorder %s131, %s133
    %p137 = scmp.eq.s32.totalorder %s11, 0
    %p138 = por %p136, %p137
    %p139 = scmp.ne.s32.totalorder %s131, %s133
    %p140 = scmp.eq.s32.totalorder %s16, 1
    %p141 = por %p139, %p140
    %p142 = scmp.ne.s32.totalorder %s133, %s134
    %p143 = scmp.eq.s32.totalorder %s16, 0
    %p144 = por %p142, %p143
    %p145 = scmp.ne.s32.totalorder %s133, %s134
    %p146 = scmp.eq.s32.totalorder %s17, 1
    %p147 = por %p145, %p146
    %p149 = scmp.ne.s32.totalorder %s134, %s148
    %p150 = scmp.eq.s32.totalorder %s17, 0
    %p151 = por %p149, %p150
    %s153 = sadd.s32 %s152, 1
    %p156 = scmp.eq.s32.totalorder %s11, 1
    %p157 = scmp.ne.s32.totalorder %s152, %s154
    %p158 = scmp.eq.s32.totalorder %s11, 0
    %p159 = por %p157, %p158
    %p160 = scmp.ne.s32.totalorder %s152, %s154
    %p161 = scmp.eq.s32.totalorder %s16, 1
    %p162 = por %p160, %p161
    %p163 = scmp.ne.s32.totalorder %s154, %s155
    %p164 = scmp.eq.s32.totalorder %s16, 0
    %p165 = por %p163, %p164
    %p166 = scmp.ne.s32.totalorder %s154, %s155
    %p167 = scmp.eq.s32.totalorder %s17, 1
    %p168 = por %p166, %p167
    %p170 = scmp.ne.s32.totalorder %s155, %s169
    %p171 = scmp.eq.s32.totalorder %s17, 0
    %p172 = por %p170, %p171
    %s173 = ssub.s32 %s18, %s30
    %s174 = ssub.s32 %s19, %s26
    %s175 = sor.u32 %s173, %s174
    %p176 = scmp.eq.s32.totalorder %s175, 0
    %s178 = sadd.s32 %s177, 1
    %s179 = scalar_select %p176, %s177, %s178
    %p182 = pneg %p176
    %p183 = scmp.eq.s32.totalorder %s11, 1
    %p184 = por %p182, %p183
    %p185 = scmp.ne.s32.totalorder %s177, %s180
    %p186 = scmp.eq.s32.totalorder %s11, 0
    %p187 = por %p185, %p186
    %p188 = scmp.ne.s32.totalorder %s177, %s180
    %p189 = scmp.eq.s32.totalorder %s16, 1
    %p190 = por %p188, %p189
    %p191 = scmp.ne.s32.totalorder %s180, %s181
    %p192 = scmp.eq.s32.totalorder %s16, 0
    %p193 = por %p191, %p192
    %p194 = scmp.ne.s32.totalorder %s180, %s181
    %p195 = scmp.eq.s32.totalorder %s17, 1
    %p196 = por %p194, %p195
    %p198 = scmp.ne.s32.totalorder %s181, %s197
    %p199 = scmp.eq.s32.totalorder %s17, 0
    %p200 = por %p198, %p199
    %p201 = scmp.le.s32.totalorder 1, %s11
    %p202 = scmp.lt.s32.totalorder %s11, 3
    %p203 = pnand %p201, %p202
    %p204 = pneg %p203
    // Predicated region
    $region9: #{sr_resnet_forward.7} parent=5 // pred_check
      _
    $region10: #{sr_resnet_forward.7} parent=5 // pred_check_branch
      %206 = sbr.rel (%p203) target = $region12
    $region11: #{sr_resnet_forward.7} parent=5 // pred_region
      %s207 = ssub.s32 %s11, 1
      // Predicated region
      $region13: #{sr_resnet_forward.7} parent=11 // pred_check
        %p208 = pneg %p144
      $region14: #{sr_resnet_forward.7} parent=11 // pred_check_branch
        %210 = sbr.rel (%p208) target = $region16
      $region15: #{sr_resnet_forward.7} parent=11 // pred_region
        _
      $region16: #{sr_resnet_forward.7} parent=11 // pred_fallthru
        _
      // Predicated region
      $region17: #{sr_resnet_forward.7} parent=11 // pred_check
        %p211 = pneg %p165
      $region18: #{sr_resnet_forward.7} parent=11 // pred_check_branch
        %213 = sbr.rel (%p211) target = $region20
      $region19: #{sr_resnet_forward.7} parent=11 // pred_region
        _
      $region20: #{sr_resnet_forward.7} parent=11 // pred_fallthru
        _
    $region12: #{sr_resnet_forward.7} parent=5 // pred_fallthru
      _
    %p214 = scmp.lt.s32.totalorder %s11, 2
    // Predicated region
    $region21: #{sr_resnet_forward.7} parent=5 // pred_check
      %p215 = pneg %p214
    $region22: #{sr_resnet_forward.7} parent=5 // pred_check_branch
      %217 = sbr.rel (%p215) target = $region24
    $region23: #{sr_resnet_forward.7} parent=5 // pred_region
      // Predicated region
      $region25: #{sr_resnet_forward.7} parent=23 // pred_check
        %p218 = pneg %p45
      $region26: #{sr_resnet_forward.7} parent=23 // pred_check_branch
        %220 = sbr.rel (%p218) target = $region28
      $region27: #{sr_resnet_forward.7} parent=23 // pred_region
        %s221 = smul.u32 4, %s19
        %p222 = scmp.lt.s32.totalorder %s18, 1
        %s223 = scalar_select %p222, %s18, 1
        %p224 = scmp.lt.s32.totalorder %s221, 3
        %s225 = scalar_select %p224, %s221, 3
        %s226 = smul.addr %s225, 2
        %s227 = smul.addr %s223, 8
        %s228 = sadd.s32 %s226, %s227
        %s229 = smul.addr %s228, 4
        %s230 = scalar_lea.vmem %s0, %s229
        %s231 = smul.u32 4, %s19
      $region28: #{sr_resnet_forward.7} parent=23 // pred_fallthru
        _
      // Predicated region
      $region29: #{sr_resnet_forward.7} parent=23 // pred_check
        %p232 = pneg %p81
      $region30: #{sr_resnet_forward.7} parent=23 // pred_check_branch
        %234 = sbr.rel (%p232) target = $region32
      $region31: #{sr_resnet_forward.7} parent=23 // pred_region
        %s235 = smul.u32 %s19, 4
        %s236 = ssub.s32 %s235, 1
        %p237 = scmp.gt.s32.totalorder %s236, 0
        %s238 = scalar_select %p237, %s236, 0
        %p239 = scmp.lt.s32.totalorder %s18, 1
        %s240 = scalar_select %p239, %s18, 1
        %p241 = scmp.lt.s32.totalorder %s238, 3
        %s242 = scalar_select %p241, %s238, 3
        %s243 = smul.addr %s242, 2
        %s244 = smul.addr %s240, 8
        %s245 = sadd.s32 %s243, %s244
        %s246 = smul.addr %s245, 4
        %s247 = scalar_lea.vmem %s1, %s246
        %s248 = smul.u32 %s19, 4
        %s249 = ssub.s32 %s248, 1
        %p250 = scmp.gt.s32.totalorder %s249, 0
        %s251 = scalar_select %p250, %s249, 0
      $region32: #{sr_resnet_forward.7} parent=23 // pred_fallthru
        _
      // Predicated region
      $region33: #{sr_resnet_forward.7} parent=23 // pred_check
        %p252 = pneg %p117
      $region34: #{sr_resnet_forward.7} parent=23 // pred_check_branch
        %254 = sbr.rel (%p252) target = $region36
      $region35: #{sr_resnet_forward.7} parent=23 // pred_region
        %s255 = sadd.s32 %s19, 1
        %s256 = smul.u32 %s255, 4
        %p257 = scmp.lt.s32.totalorder %s256, 3
        %s258 = scalar_select %p257, %s256, 3
        %p259 = scmp.lt.s32.totalorder %s18, 1
        %s260 = scalar_select %p259, %s18, 1
        %p261 = scmp.lt.s32.totalorder %s258, 3
        %s262 = scalar_select %p261, %s258, 3
        %s263 = smul.addr %s262, 2
        %s264 = smul.addr %s260, 8
        %s265 = sadd.s32 %s263, %s264
        %s266 = smul.addr %s265, 4
        %s267 = scalar_lea.vmem %s2, %s266
        %s268 = sadd.s32 %s19, 1
        %s269 = smul.u32 %s268, 4
        %p270 = scmp.lt.s32.totalorder %s269, 3
        %s271 = scalar_select %p270, %s269, 3
      $region36: #{sr_resnet_forward.7} parent=23 // pred_fallthru
        _
    $region24: #{sr_resnet_forward.7} parent=5 // pred_fallthru
      _
    %p272 = scmp.le.s32.totalorder 1, %s11
    %p273 = scmp.lt.s32.totalorder %s11, 3
    %p274 = pnand %p272, %p273
    %p275 = pneg %p274
    // Predicated region
    $region37: #{sr_resnet_forward.7} parent=5 // pred_check
      _
    $region38: #{sr_resnet_forward.7} parent=5 // pred_check_branch
      %277 = sbr.rel (%p274) target = $region40
    $region39: #{sr_resnet_forward.7} parent=5 // pred_region
      %s278 = ssub.s32 %s11, 1
      %s279 = smul.u32 4, %s21
      %p280 = scmp.lt.s32.totalorder %s20, 1
      %s281 = scalar_select %p280, %s20, 1
      %p282 = scmp.lt.s32.totalorder %s279, 3
      %s283 = scalar_select %p282, %s279, 3
      %s284 = smul.addr %s283, 2
      %s285 = smul.addr %s281, 8
      %s286 = sadd.s32 %s284, %s285
      %s287 = smul.addr %s286, 4
      %s288 = scalar_lea.vmem %s0, %s287
      %p289 = pneg %p51
      %p290 = pneg %p48
      %s291 = smul.u32 %s21, 4
      %s292 = ssub.s32 %s291, 1
      %p293 = scmp.gt.s32.totalorder %s292, 0
      %s294 = scalar_select %p293, %s292, 0
      %p295 = scmp.lt.s32.totalorder %s20, 1
      %s296 = scalar_select %p295, %s20, 1
      %p297 = scmp.lt.s32.totalorder %s294, 3
      %s298 = scalar_select %p297, %s294, 3
      %s299 = smul.addr %s298, 2
      %s300 = smul.addr %s296, 8
      %s301 = sadd.s32 %s299, %s300
      %s302 = smul.addr %s301, 4
      %s303 = scalar_lea.vmem %s1, %s302
      %p304 = pneg %p87
      %p305 = pneg %p84
      %s306 = sadd.s32 %s21, 1
      %s307 = smul.u32 %s306, 4
      %p308 = scmp.lt.s32.totalorder %s307, 3
      %s309 = scalar_select %p308, %s307, 3
      %p310 = scmp.lt.s32.totalorder %s20, 1
      %s311 = scalar_select %p310, %s20, 1
      %p312 = scmp.lt.s32.totalorder %s309, 3
      %s313 = scalar_select %p312, %s309, 3
      %s314 = smul.addr %s313, 2
      %s315 = smul.addr %s311, 8
      %s316 = sadd.s32 %s314, %s315
      %s317 = smul.addr %s316, 4
      %s318 = scalar_lea.vmem %s2, %s317
      %p319 = pneg %p123
      %p320 = pneg %p120
      %p321 = pneg %p144
      %p322 = pneg %p141
      %p323 = pneg %p165
      %p324 = pneg %p162
      %p325 = pneg %p193
      %p326 = pneg %p190
      %s327 = smul.u32 4, %s21
      %p328 = scmp.lt.s32.totalorder %s20, 1
      %s329 = scalar_select %p328, %s20, 1
      %p330 = scmp.lt.s32.totalorder %s327, 3
      %s331 = scalar_select %p330, %s327, 3
      %s332 = smul.addr %s329, 4
      %s333 = sadd.s32 %s331, %s332
      %s334 = smul.addr %s333, 8
      %s335 = scalar_lea.vmem %s5, %s334
      %s336 = smul.u32 4, %s21
      %p337 = scmp.lt.s32.totalorder %s20, 1
      %s338 = scalar_select %p337, %s20, 1
      %p339 = scmp.lt.s32.totalorder %s336, 3
      %s340 = scalar_select %p339, %s336, 3
      %s341 = smul.addr %s340, 2
      %s342 = smul.addr %s338, 8
      %s343 = sadd.s32 %s341, %s342
      %s344 = smul.addr %s343, 4
      %s345 = scalar_lea.vmem %s0, %s344
      %s346 = smul.u32 4, %s21
      %s347 = smul.u32 %s21, 4
      %s348 = ssub.s32 %s347, 1
      %p349 = scmp.gt.s32.totalorder %s348, 0
      %s350 = scalar_select %p349, %s348, 0
      %p351 = scmp.lt.s32.totalorder %s20, 1
      %s352 = scalar_select %p351, %s20, 1
      %p353 = scmp.lt.s32.totalorder %s350, 3
      %s354 = scalar_select %p353, %s350, 3
      %s355 = smul.addr %s354, 2
      %s356 = smul.addr %s352, 8
      %s357 = sadd.s32 %s355, %s356
      %s358 = smul.addr %s357, 4
      %s359 = scalar_lea.vmem %s1, %s358
      %s360 = smul.u32 %s21, 4
      %s361 = ssub.s32 %s360, 1
      %p362 = scmp.gt.s32.totalorder %s361, 0
      %s363 = scalar_select %p362, %s361, 0
      %s364 = sadd.s32 %s21, 1
      %s365 = smul.u32 %s364, 4
      %p366 = scmp.lt.s32.totalorder %s365, 3
      %s367 = scalar_select %p366, %s365, 3
      %p368 = scmp.lt.s32.totalorder %s20, 1
      %s369 = scalar_select %p368, %s20, 1
      %p370 = scmp.lt.s32.totalorder %s367, 3
      %s371 = scalar_select %p370, %s367, 3
      %s372 = smul.addr %s371, 2
      %s373 = smul.addr %s369, 8
      %s374 = sadd.s32 %s372, %s373
      %s375 = smul.addr %s374, 4
      %s376 = scalar_lea.vmem %s2, %s375
      %s377 = sadd.s32 %s21, 1
      %s378 = smul.u32 %s377, 4
      %p379 = scmp.lt.s32.totalorder %s378, 3
      %s380 = scalar_select %p379, %s378, 3
      %s381 = smul.u32 4, %s21
      %p382 = scmp.lt.s32.totalorder %s20, 1
      %s383 = scalar_select %p382, %s20, 1
      %p384 = scmp.lt.s32.totalorder %s381, 3
      %s385 = scalar_select %p384, %s381, 3
      %s386 = smul.addr %s383, 4
      %s387 = sadd.s32 %s385, %s386
      %s388 = smul.addr %s387, 8
      %s389 = scalar_lea.vmem %s5, %s388
      %s390 = smul.u32 4, %s21
      %v392 = vld [vmem:[%s345] sm:$0xff]
      %v393 = vld [vmem:[%s345 + $0x8] sm:$0xff]
      %v394 = vld [vmem:[%s345 + $0x10] sm:$0xff]
      %v395 = vld [vmem:[%s345 + $0x18] sm:$0xff]
      %v396 = vld [vmem:[%s359] sm:$0xff]
      %v397 = vld [vmem:[%s376] sm:$0xff]
      %p398 = scmp.gt.s32.totalorder %s21, 0
      %s399 = scalar_select %p398, 1, 0
      %v400 = vstv %s399
      %vm401 = vcmp.eq.s32.totalorder %v400, 1
      %v402 = vsel %vm401, %v396, 0
      %s403 = sadd.s32 %s21, 1
      %s404 = smul.u32 %s403, 32
      %v405 = vlaneseq
      %v406 = vshrl.u32 %v405, 7
      %v407 = vstv %s404
      %v408 = vadd.s32 %v407, %v406
      %vm409 = vcmp.lt.s32.totalorder %v408, 32
      %vm410 = vmpackc.low %vm409, %vm409
      %v411 = vsel %vm410, %v397, 0
      %v413 = vunpack.c.l.b16 %v402
      %v414 = vunpack.c.h.b16 %v402
      %v415 = vpack.c.b16 %v413, %v413
      %v416 = vpack.c.b16 %v414, %v414
      %v421 = vunpack.c.l.b16 %v392
      %v422 = vunpack.c.h.b16 %v392
      %v423 = vunpack.c.l.b16 %v393
      %v424 = vunpack.c.h.b16 %v393
      %v425 = vunpack.c.l.b16 %v394
      %v426 = vunpack.c.h.b16 %v394
      %v427 = vunpack.c.l.b16 %v395
      %v428 = vunpack.c.h.b16 %v395
      %v429 = vpack.c.b16 %v421, %v421
      %v430 = vpack.c.b16 %v422, %v422
      %v431 = vpack.c.b16 %v425, %v423
      %v432 = vpack.c.b16 %v426, %v424
      %v433 = vpack.c.b16 %v427, %v427
      %v434 = vpack.c.b16 %v428, %v428
      %v436 = vunpack.c.l.b16 %v411
      %v437 = vunpack.c.h.b16 %v411
      %v438 = vpack.c.b16 %v436, %v436
      %v439 = vpack.c.b16 %v437, %v437
      %vm440 = vcmask 1043456
      %v443 = vsel %vm440, %v415, %v429
      %v446 = vsel %vm440, %v416, %v430
      %v449 = vsel %vm440, %v433, %v438
      %v452 = vsel %vm440, %v434, %v439
      %v453 = vld [vmem:[%s3] sm:$0xf]
      %v454 = vld [vmem:[%s3 + $0x4] sm:$0xf]
      %v455 = vld [vmem:[%s3 + $0x8] sm:$0xf]
      %v456 = vld [vmem:[%s3 + $0xc] sm:$0xf]
      %v457 = vld [vmem:[%s3 + $0x10] sm:$0xf]
      %v458 = vld [vmem:[%s3 + $0x14] sm:$0xf]
      %v459 = vld [vmem:[%s3 + $0x18] sm:$0xf]
      %v460 = vld [vmem:[%s3 + $0x1c] sm:$0xf]
      %v461 = vld [vmem:[%s3 + $0x20] sm:$0xf]
      %v462 = vld [vmem:[%s3 + $0x24] sm:$0xf]
      %v463 = vld [vmem:[%s3 + $0x28] sm:$0xf]
      %v464 = vld [vmem:[%s3 + $0x2c] sm:$0xf]
      %v465 = vld [vmem:[%s3 + $0x30] sm:$0xf]
      %v466 = vld [vmem:[%s3 + $0x34] sm:$0xf]
      %v467 = vld [vmem:[%s3 + $0x38] sm:$0xf]
      %v468 = vld [vmem:[%s3 + $0x3c] sm:$0xf]
      %v469 = vld [vmem:[%s3 + $0x40] sm:$0xf]
      %v470 = vld [vmem:[%s3 + $0x44] sm:$0xf]
      %v471 = vld [vmem:[%s3 + $0x48] sm:$0xf]
      %v472 = vld [vmem:[%s3 + $0x4c] sm:$0xf]
      %v473 = vld [vmem:[%s3 + $0x50] sm:$0xf]
      %v474 = vld [vmem:[%s3 + $0x54] sm:$0xf]
      %v475 = vld [vmem:[%s3 + $0x58] sm:$0xf]
      %v476 = vld [vmem:[%s3 + $0x5c] sm:$0xf]
      %v477 = vld [vmem:[%s3 + $0x60] sm:$0xf]
      %v478 = vld [vmem:[%s3 + $0x64] sm:$0xf]
      %v479 = vld [vmem:[%s3 + $0x68] sm:$0xf]
      %v480 = vld [vmem:[%s3 + $0x6c] sm:$0xf]
      %v481 = vld [vmem:[%s3 + $0x70] sm:$0xf]
      %v482 = vld [vmem:[%s3 + $0x74] sm:$0xf]
      %v483 = vld [vmem:[%s3 + $0x78] sm:$0xf]
      %v484 = vld [vmem:[%s3 + $0x7c] sm:$0xf]
      %s485 = scalar_lea.vmem %s3, 128
      %v486 = vld [vmem:[%s485] sm:$0xf]
      %v487 = vld [vmem:[%s485 + $0x4] sm:$0xf]
      %v488 = vld [vmem:[%s485 + $0x8] sm:$0xf]
      %v489 = vld [vmem:[%s485 + $0xc] sm:$0xf]
      %v490 = vld [vmem:[%s485 + $0x10] sm:$0xf]
      %v491 = vld [vmem:[%s485 + $0x14] sm:$0xf]
      %v492 = vld [vmem:[%s485 + $0x18] sm:$0xf]
      %v493 = vld [vmem:[%s485 + $0x1c] sm:$0xf]
      %v494 = vld [vmem:[%s485 + $0x20] sm:$0xf]
      %v495 = vld [vmem:[%s485 + $0x24] sm:$0xf]
      %v496 = vld [vmem:[%s485 + $0x28] sm:$0xf]
      %v497 = vld [vmem:[%s485 + $0x2c] sm:$0xf]
      %v498 = vld [vmem:[%s485 + $0x30] sm:$0xf]
      %v499 = vld [vmem:[%s485 + $0x34] sm:$0xf]
      %v500 = vld [vmem:[%s485 + $0x38] sm:$0xf]
      %v501 = vld [vmem:[%s485 + $0x3c] sm:$0xf]
      %v502 = vld [vmem:[%s485 + $0x40] sm:$0xf]
      %v503 = vld [vmem:[%s485 + $0x44] sm:$0xf]
      %v504 = vld [vmem:[%s485 + $0x48] sm:$0xf]
      %v505 = vld [vmem:[%s485 + $0x4c] sm:$0xf]
      %v506 = vld [vmem:[%s485 + $0x50] sm:$0xf]
      %v507 = vld [vmem:[%s485 + $0x54] sm:$0xf]
      %v508 = vld [vmem:[%s485 + $0x58] sm:$0xf]
      %v509 = vld [vmem:[%s485 + $0x5c] sm:$0xf]
      %v510 = vld [vmem:[%s485 + $0x60] sm:$0xf]
      %v511 = vld [vmem:[%s485 + $0x64] sm:$0xf]
      %v512 = vld [vmem:[%s485 + $0x68] sm:$0xf]
      %v513 = vld [vmem:[%s485 + $0x6c] sm:$0xf]
      %v514 = vld [vmem:[%s485 + $0x70] sm:$0xf]
      %v515 = vld [vmem:[%s485 + $0x74] sm:$0xf]
      %v516 = vld [vmem:[%s485 + $0x78] sm:$0xf]
      %v517 = vld [vmem:[%s485 + $0x7c] sm:$0xf]
      %vm518 = vsmask.f32 4352
      %v519 = vshrl.u32 %v443, 16
      %v521 = vrot.slane %v519, 3
      %v522 = vshll.u32 %v443, 16
      %v524 = vrot.slane %v522, 4
      %v525 = vor.u32 %v521, %v524
      %v527 = vshrl.u32 %v431, 16
      %v529 = vrot.slane %v527, 3
      %v530 = vshll.u32 %v431, 16
      %v532 = vrot.slane %v530, 4
      %v533 = vor.u32 %v529, %v532
      %v534 = vsel %vm518, %v525, %v533
      %v535 = vshrl.u32 %v446, 16
      %v537 = vrot.slane %v535, 3
      %v538 = vshll.u32 %v446, 16
      %v540 = vrot.slane %v538, 4
      %v541 = vor.u32 %v537, %v540
      %v543 = vshrl.u32 %v432, 16
      %v545 = vrot.slane %v543, 3
      %v546 = vshll.u32 %v432, 16
      %v548 = vrot.slane %v546, 4
      %v549 = vor.u32 %v545, %v548
      %v550 = vsel %vm518, %v541, %v549
      %v551 = vshrl.u32 %v449, 16
      %v553 = vrot.slane %v551, 3
      %v554 = vshll.u32 %v449, 16
      %v556 = vrot.slane %v554, 4
      %v557 = vor.u32 %v553, %v556
      %v558 = vsel %vm518, %v533, %v557
      %v559 = vshrl.u32 %v452, 16
      %v561 = vrot.slane %v559, 3
      %v562 = vshll.u32 %v452, 16
      %v564 = vrot.slane %v562, 4
      %v565 = vor.u32 %v561, %v564
      %v566 = vsel %vm518, %v549, %v565
      %v603 = vunpack.c.l.b16 %v486
      %v604 = vunpack.c.l.b16 %v487
      %v605 = vunpack.c.l.b16 %v488
      %v606 = vunpack.c.l.b16 %v489
      %v607 = vunpack.c.l.b16 %v490
      %v608 = vunpack.c.l.b16 %v491
      %v609 = vunpack.c.l.b16 %v492
      %v610 = vunpack.c.l.b16 %v493
      %v611 = vunpack.c.l.b16 %v494
      %v612 = vunpack.c.l.b16 %v495
      %v613 = vunpack.c.l.b16 %v496
      %v614 = vunpack.c.l.b16 %v497
      %v615 = vunpack.c.l.b16 %v498
      %v616 = vunpack.c.l.b16 %v499
      %v617 = vunpack.c.l.b16 %v500
      %v618 = vunpack.c.l.b16 %v501
      %v619 = vunpack.c.l.b16 %v502
      %v620 = vunpack.c.l.b16 %v503
      %v621 = vunpack.c.l.b16 %v504
      %v622 = vunpack.c.l.b16 %v505
      %v623 = vunpack.c.l.b16 %v506
      %v624 = vunpack.c.l.b16 %v507
      %v625 = vunpack.c.l.b16 %v508
      %v626 = vunpack.c.l.b16 %v509
      %v627 = vunpack.c.l.b16 %v510
      %v628 = vunpack.c.l.b16 %v511
      %v629 = vunpack.c.l.b16 %v512
      %v630 = vunpack.c.l.b16 %v513
      %v631 = vunpack.c.l.b16 %v514
      %v632 = vunpack.c.l.b16 %v515
      %v633 = vunpack.c.l.b16 %v516
      %v634 = vunpack.c.l.b16 %v517
      %v635 = vpack.c.b16 %v604, %v603
      %v636 = vpack.c.b16 %v606, %v605
      %v637 = vpack.c.b16 %v608, %v607
      %v638 = vpack.c.b16 %v610, %v609
      %v639 = vpack.c.b16 %v612, %v611
      %v640 = vpack.c.b16 %v614, %v613
      %v641 = vpack.c.b16 %v616, %v615
      %v642 = vpack.c.b16 %v618, %v617
      %v643 = vpack.c.b16 %v620, %v619
      %v644 = vpack.c.b16 %v622, %v621
      %v645 = vpack.c.b16 %v624, %v623
      %v646 = vpack.c.b16 %v626, %v625
      %v647 = vpack.c.b16 %v628, %v627
      %v648 = vpack.c.b16 %v630, %v629
      %v649 = vpack.c.b16 %v632, %v631
      %v650 = vpack.c.b16 %v634, %v633
      %667 = vmatprep.subr.bf16.mxu0 0
      %668 = vmatpush1.bf16.msra.mxu0 %v635
      %669 = vmatprep.subr.bf16.mxu0 0
      %670 = vmatpush1.bf16.msra.mxu0 %v636
      %671 = vmatprep.subr.bf16.mxu0 0
      %672 = vmatpush1.bf16.msra.mxu0 %v637
      %673 = vmatprep.subr.bf16.mxu0 0
      %674 = vmatpush1.bf16.msra.mxu0 %v638
      %675 = vmatprep.subr.bf16.mxu0 0
      %676 = vmatpush1.bf16.msra.mxu0 %v639
      %677 = vmatprep.subr.bf16.mxu0 0
      %678 = vmatpush1.bf16.msra.mxu0 %v640
      %679 = vmatprep.subr.bf16.mxu0 0
      %680 = vmatpush1.bf16.msra.mxu0 %v641
      %681 = vmatprep.subr.bf16.mxu0 0
      %682 = vmatpush1.bf16.msra.mxu0 %v642
      %683 = vmatprep.subr.bf16.mxu0 0
      %684 = vmatpush1.bf16.msra.mxu0 %v643
      %685 = vmatprep.subr.bf16.mxu0 0
      %686 = vmatpush1.bf16.msra.mxu0 %v644
      %687 = vmatprep.subr.bf16.mxu0 0
      %688 = vmatpush1.bf16.msra.mxu0 %v645
      %689 = vmatprep.subr.bf16.mxu0 0
      %690 = vmatpush1.bf16.msra.mxu0 %v646
      %691 = vmatprep.subr.bf16.mxu0 0
      %692 = vmatpush1.bf16.msra.mxu0 %v647
      %693 = vmatprep.subr.bf16.mxu0 0
      %694 = vmatpush1.bf16.msra.mxu0 %v648
      %695 = vmatprep.subr.bf16.mxu0 0
      %696 = vmatpush1.bf16.msra.mxu0 %v649
      %697 = vmatprep.subr.bf16.mxu0 0
      %698 = vmatpush1.bf16.msra.mxu0 %v650
      %699 = vmatprep.mubr.bf16.mxu0 %v550
      %700 = vmatmul.mubr.bf16.gmra.mrb[0].mxu0 %v534
      %v701 = vpop.f32.mrb[0].mxu0
      %v702 = vadd.f32 0.0, %v701
      %v703 = vpop.f32.mrb[0].mxu0
      %v704 = vpop.f32.mrb[0].mxu0
      %v705 = vadd.f32 0.0, %v704
      %v706 = vpop.f32.mrb[0].mxu0
      %707 = vmatprep.mubr.bf16.mxu0 %v566
      %708 = vmatmul.mubr.bf16.gmra.mrb[0].mxu0 %v558
      %v709 = vpop.f32.mrb[0].mxu0
      %v710 = vadd.f32 0.0, %v709
      %v711 = vpop.f32.mrb[0].mxu0
      %v712 = vpop.f32.mrb[0].mxu0
      %v713 = vadd.f32 0.0, %v712
      %v714 = vpop.f32.mrb[0].mxu0
      %715 = vdwg.mxu0
      %vm720 = vcmask 1044480
      %v721 = vrot.slane %v443, 3
      %v722 = vrot.slane %v431, 3
      %v723 = vsel %vm720, %v721, %v722
      %v724 = vrot.slane %v446, 3
      %v725 = vrot.slane %v432, 3
      %v726 = vsel %vm720, %v724, %v725
      %v727 = vrot.slane %v449, 3
      %v728 = vsel %vm720, %v722, %v727
      %v729 = vrot.slane %v452, 3
      %v730 = vsel %vm720, %v725, %v729
      %v767 = vunpack.c.l.b16 %v453
      %v768 = vunpack.c.l.b16 %v454
      %v769 = vunpack.c.l.b16 %v455
      %v770 = vunpack.c.l.b16 %v456
      %v771 = vunpack.c.l.b16 %v457
      %v772 = vunpack.c.l.b16 %v458
      %v773 = vunpack.c.l.b16 %v459
      %v774 = vunpack.c.l.b16 %v460
      %v775 = vunpack.c.l.b16 %v461
      %v776 = vunpack.c.l.b16 %v462
      %v777 = vunpack.c.l.b16 %v463
      %v778 = vunpack.c.l.b16 %v464
      %v779 = vunpack.c.l.b16 %v465
      %v780 = vunpack.c.l.b16 %v466
      %v781 = vunpack.c.l.b16 %v467
      %v782 = vunpack.c.l.b16 %v468
      %v783 = vunpack.c.l.b16 %v469
      %v784 = vunpack.c.l.b16 %v470
      %v785 = vunpack.c.l.b16 %v471
      %v786 = vunpack.c.l.b16 %v472
      %v787 = vunpack.c.l.b16 %v473
      %v788 = vunpack.c.l.b16 %v474
      %v789 = vunpack.c.l.b16 %v475
      %v790 = vunpack.c.l.b16 %v476
      %v791 = vunpack.c.l.b16 %v477
      %v792 = vunpack.c.l.b16 %v478
      %v793 = vunpack.c.l.b16 %v479
      %v794 = vunpack.c.l.b16 %v480
      %v795 = vunpack.c.l.b16 %v481
      %v796 = vunpack.c.l.b16 %v482
      %v797 = vunpack.c.l.b16 %v483
      %v798 = vunpack.c.l.b16 %v484
      %v799 = vpack.c.b16 %v768, %v767
      %v800 = vpack.c.b16 %v770, %v769
      %v801 = vpack.c.b16 %v772, %v771
      %v802 = vpack.c.b16 %v774, %v773
      %v803 = vpack.c.b16 %v776, %v775
      %v804 = vpack.c.b16 %v778, %v777
      %v805 = vpack.c.b16 %v780, %v779
      %v806 = vpack.c.b16 %v782, %v781
      %v807 = vpack.c.b16 %v784, %v783
      %v808 = vpack.c.b16 %v786, %v785
      %v809 = vpack.c.b16 %v788, %v787
      %v810 = vpack.c.b16 %v790, %v789
      %v811 = vpack.c.b16 %v792, %v791
      %v812 = vpack.c.b16 %v794, %v793
      %v813 = vpack.c.b16 %v796, %v795
      %v814 = vpack.c.b16 %v798, %v797
      %831 = vmatprep.subr.bf16.mxu0 0
      %832 = vmatpush1.bf16.msra.mxu0 %v799
      %833 = vmatprep.subr.bf16.mxu0 0
      %834 = vmatpush1.bf16.msra.mxu0 %v800
      %835 = vmatprep.subr.bf16.mxu0 0
      %836 = vmatpush1.bf16.msra.mxu0 %v801
      %837 = vmatprep.subr.bf16.mxu0 0
      %838 = vmatpush1.bf16.msra.mxu0 %v802
      %839 = vmatprep.subr.bf16.mxu0 0
      %840 = vmatpush1.bf16.msra.mxu0 %v803
      %841 = vmatprep.subr.bf16.mxu0 0
      %842 = vmatpush1.bf16.msra.mxu0 %v804
      %843 = vmatprep.subr.bf16.mxu0 0
      %844 = vmatpush1.bf16.msra.mxu0 %v805
      %845 = vmatprep.subr.bf16.mxu0 0
      %846 = vmatpush1.bf16.msra.mxu0 %v806
      %847 = vmatprep.subr.bf16.mxu0 0
      %848 = vmatpush1.bf16.msra.mxu0 %v807
      %849 = vmatprep.subr.bf16.mxu0 0
      %850 = vmatpush1.bf16.msra.mxu0 %v808
      %851 = vmatprep.subr.bf16.mxu0 0
      %852 = vmatpush1.bf16.msra.mxu0 %v809
      %853 = vmatprep.subr.bf16.mxu0 0
      %854 = vmatpush1.bf16.msra.mxu0 %v810
      %855 = vmatprep.subr.bf16.mxu0 0
      %856 = vmatpush1.bf16.msra.mxu0 %v811
      %857 = vmatprep.subr.bf16.mxu0 0
      %858 = vmatpush1.bf16.msra.mxu0 %v812
      %859 = vmatprep.subr.bf16.mxu0 0
      %860 = vmatpush1.bf16.msra.mxu0 %v813
      %861 = vmatprep.subr.bf16.mxu0 0
      %862 = vmatpush1.bf16.msra.mxu0 %v814
      %863 = vmatprep.mubr.bf16.mxu0 %v726
      %864 = vmatmul.mubr.bf16.gmra.mrb[0].mxu0 %v723
      %v865 = vpop.f32.mrb[0].mxu0
      %v866 = vadd.f32 %v702, %v865
      %v867 = vpop.f32.mrb[0].mxu0
      %v868 = vpop.f32.mrb[0].mxu0
      %v869 = vadd.f32 %v705, %v868
      %v870 = vpop.f32.mrb[0].mxu0
      %871 = vmatprep.mubr.bf16.mxu0 %v730
      %872 = vmatmul.mubr.bf16.gmra.mrb[0].mxu0 %v728
      %v873 = vpop.f32.mrb[0].mxu0
      %v874 = vadd.f32 %v710, %v873
      %v875 = vpop.f32.mrb[0].mxu0
      %v876 = vpop.f32.mrb[0].mxu0
      %v877 = vadd.f32 %v713, %v876
      %v878 = vpop.f32.mrb[0].mxu0
      %879 = vdwg.mxu0
      %s880 = scalar_lea.vmem %s3, 256
      %v881 = vld [vmem:[%s880] sm:$0xf]
      %v882 = vld [vmem:[%s880 + $0x4] sm:$0xf]
      %v883 = vld [vmem:[%s880 + $0x8] sm:$0xf]
      %v884 = vld [vmem:[%s880 + $0xc] sm:$0xf]
      %v885 = vld [vmem:[%s880 + $0x10] sm:$0xf]
      %v886 = vld [vmem:[%s880 + $0x14] sm:$0xf]
      %v887 = vld [vmem:[%s880 + $0x18] sm:$0xf]
      %v888 = vld [vmem:[%s880 + $0x1c] sm:$0xf]
      %v889 = vld [vmem:[%s880 + $0x20] sm:$0xf]
      %v890 = vld [vmem:[%s880 + $0x24] sm:$0xf]
      %v891 = vld [vmem:[%s880 + $0x28] sm:$0xf]
      %v892 = vld [vmem:[%s880 + $0x2c] sm:$0xf]
      %v893 = vld [vmem:[%s880 + $0x30] sm:$0xf]
      %v894 = vld [vmem:[%s880 + $0x34] sm:$0xf]
      %v895 = vld [vmem:[%s880 + $0x38] sm:$0xf]
      %v896 = vld [vmem:[%s880 + $0x3c] sm:$0xf]
      %v897 = vld [vmem:[%s880 + $0x40] sm:$0xf]
      %v898 = vld [vmem:[%s880 + $0x44] sm:$0xf]
      %v899 = vld [vmem:[%s880 + $0x48] sm:$0xf]
      %v900 = vld [vmem:[%s880 + $0x4c] sm:$0xf]
      %v901 = vld [vmem:[%s880 + $0x50] sm:$0xf]
      %v902 = vld [vmem:[%s880 + $0x54] sm:$0xf]
      %v903 = vld [vmem:[%s880 + $0x58] sm:$0xf]
      %v904 = vld [vmem:[%s880 + $0x5c] sm:$0xf]
      %v905 = vld [vmem:[%s880 + $0x60] sm:$0xf]
      %v906 = vld [vmem:[%s880 + $0x64] sm:$0xf]
      %v907 = vld [vmem:[%s880 + $0x68] sm:$0xf]
      %v908 = vld [vmem:[%s880 + $0x6c] sm:$0xf]
      %v909 = vld [vmem:[%s880 + $0x70] sm:$0xf]
      %v910 = vld [vmem:[%s880 + $0x74] sm:$0xf]
      %v911 = vld [vmem:[%s880 + $0x78] sm:$0xf]
      %v912 = vld [vmem:[%s880 + $0x7c] sm:$0xf]
      %vm913 = vcmask 1043456
      %v914 = vrot.slane %v443, 4
      %v915 = vrot.slane %v431, 4
      %v916 = vsel %vm913, %v914, %v915
      %v917 = vrot.slane %v446, 4
      %v918 = vrot.slane %v432, 4
      %v919 = vsel %vm913, %v917, %v918
      %v920 = vrot.slane %v449, 4
      %v921 = vsel %vm913, %v915, %v920
      %v922 = vrot.slane %v452, 4
      %v923 = vsel %vm913, %v918, %v922
      %v960 = vunpack.c.l.b16 %v881
      %v961 = vunpack.c.l.b16 %v882
      %v962 = vunpack.c.l.b16 %v883
      %v963 = vunpack.c.l.b16 %v884
      %v964 = vunpack.c.l.b16 %v885
      %v965 = vunpack.c.l.b16 %v886
      %v966 = vunpack.c.l.b16 %v887
      %v967 = vunpack.c.l.b16 %v888
      %v968 = vunpack.c.l.b16 %v889
      %v969 = vunpack.c.l.b16 %v890
      %v970 = vunpack.c.l.b16 %v891
      %v971 = vunpack.c.l.b16 %v892
      %v972 = vunpack.c.l.b16 %v893
      %v973 = vunpack.c.l.b16 %v894
      %v974 = vunpack.c.l.b16 %v895
      %v975 = vunpack.c.l.b16 %v896
      %v976 = vunpack.c.l.b16 %v897
      %v977 = vunpack.c.l.b16 %v898
      %v978 = vunpack.c.l.b16 %v899
      %v979 = vunpack.c.l.b16 %v900
      %v980 = vunpack.c.l.b16 %v901
      %v981 = vunpack.c.l.b16 %v902
      %v982 = vunpack.c.l.b16 %v903
      %v983 = vunpack.c.l.b16 %v904
      %v984 = vunpack.c.l.b16 %v905
      %v985 = vunpack.c.l.b16 %v906
      %v986 = vunpack.c.l.b16 %v907
      %v987 = vunpack.c.l.b16 %v908
      %v988 = vunpack.c.l.b16 %v909
      %v989 = vunpack.c.l.b16 %v910
      %v990 = vunpack.c.l.b16 %v911
      %v991 = vunpack.c.l.b16 %v912
      %v992 = vpack.c.b16 %v961, %v960
      %v993 = vpack.c.b16 %v963, %v962
      %v994 = vpack.c.b16 %v965, %v964
      %v995 = vpack.c.b16 %v967, %v966
      %v996 = vpack.c.b16 %v969, %v968
      %v997 = vpack.c.b16 %v971, %v970
      %v998 = vpack.c.b16 %v973, %v972
      %v999 = vpack.c.b16 %v975, %v974
      %v1000 = vpack.c.b16 %v977, %v976
      %v1001 = vpack.c.b16 %v979, %v978
      %v1002 = vpack.c.b16 %v981, %v980
      %v1003 = vpack.c.b16 %v983, %v982
      %v1004 = vpack.c.b16 %v985, %v984
      %v1005 = vpack.c.b16 %v987, %v986
      %v1006 = vpack.c.b16 %v989, %v988
      %v1007 = vpack.c.b16 %v991, %v990
      %1024 = vmatprep.subr.bf16.mxu0 0
      %1025 = vmatpush1.bf16.msra.mxu0 %v992
      %1026 = vmatprep.subr.bf16.mxu0 0
      %1027 = vmatpush1.bf16.msra.mxu0 %v993
      %1028 = vmatprep.subr.bf16.mxu0 0
      %1029 = vmatpush1.bf16.msra.mxu0 %v994
      %1030 = vmatprep.subr.bf16.mxu0 0
      %1031 = vmatpush1.bf16.msra.mxu0 %v995
      %1032 = vmatprep.subr.bf16.mxu0 0
      %1033 = vmatpush1.bf16.msra.mxu0 %v996
      %1034 = vmatprep.subr.bf16.mxu0 0
      %1035 = vmatpush1.bf16.msra.mxu0 %v997
      %1036 = vmatprep.subr.bf16.mxu0 0
      %1037 = vmatpush1.bf16.msra.mxu0 %v998
      %1038 = vmatprep.subr.bf16.mxu0 0
      %1039 = vmatpush1.bf16.msra.mxu0 %v999
      %1040 = vmatprep.subr.bf16.mxu0 0
      %1041 = vmatpush1.bf16.msra.mxu0 %v1000
      %1042 = vmatprep.subr.bf16.mxu0 0
      %1043 = vmatpush1.bf16.msra.mxu0 %v1001
      %1044 = vmatprep.subr.bf16.mxu0 0
      %1045 = vmatpush1.bf16.msra.mxu0 %v1002
      %1046 = vmatprep.subr.bf16.mxu0 0
      %1047 = vmatpush1.bf16.msra.mxu0 %v1003
      %1048 = vmatprep.subr.bf16.mxu0 0
      %1049 = vmatpush1.bf16.msra.mxu0 %v1004
      %1050 = vmatprep.subr.bf16.mxu0 0
      %1051 = vmatpush1.bf16.msra.mxu0 %v1005
      %1052 = vmatprep.subr.bf16.mxu0 0
      %1053 = vmatpush1.bf16.msra.mxu0 %v1006
      %1054 = vmatprep.subr.bf16.mxu0 0
      %1055 = vmatpush1.bf16.msra.mxu0 %v1007
      %1056 = vmatprep.mubr.bf16.mxu0 %v919
      %1057 = vmatmul.mubr.bf16.gmra.mrb[0].mxu0 %v916
      %v1058 = vpop.f32.mrb[0].mxu0
      %v1059 = vadd.f32 0.0, %v1058
      %v1060 = vpop.f32.mrb[0].mxu0
      %v1061 = vpop.f32.mrb[0].mxu0
      %v1062 = vadd.f32 0.0, %v1061
      %v1063 = vpop.f32.mrb[0].mxu0
      %1064 = vmatprep.mubr.bf16.mxu0 %v923
      %1065 = vmatmul.mubr.bf16.gmra.mrb[0].mxu0 %v921
      %v1066 = vpop.f32.mrb[0].mxu0
      %v1067 = vadd.f32 0.0, %v1066
      %v1068 = vpop.f32.mrb[0].mxu0
      %v1069 = vpop.f32.mrb[0].mxu0
      %v1070 = vadd.f32 0.0, %v1069
      %v1071 = vpop.f32.mrb[0].mxu0
      %1072 = vdwg.mxu0
      %v1073 = vadd.f32 %v866, %v1059
      %v1074 = vadd.f32 %v869, %v1062
      %v1075 = vadd.f32 %v874, %v1067
      %v1076 = vadd.f32 %v877, %v1070
      %s1077 = scalar_lea.vmem %s3, 384
      %v1078 = vld [vmem:[%s1077] sm:$0xf]
      %v1079 = vld [vmem:[%s1077 + $0x4] sm:$0xf]
      %v1080 = vld [vmem:[%s1077 + $0x8] sm:$0xf]
      %v1081 = vld [vmem:[%s1077 + $0xc] sm:$0xf]
      %v1082 = vld [vmem:[%s1077 + $0x10] sm:$0xf]
      %v1083 = vld [vmem:[%s1077 + $0x14] sm:$0xf]
      %v1084 = vld [vmem:[%s1077 + $0x18] sm:$0xf]
      %v1085 = vld [vmem:[%s1077 + $0x1c] sm:$0xf]
      %v1086 = vld [vmem:[%s1077 + $0x20] sm:$0xf]
      %v1087 = vld [vmem:[%s1077 + $0x24] sm:$0xf]
      %v1088 = vld [vmem:[%s1077 + $0x28] sm:$0xf]
      %v1089 = vld [vmem:[%s1077 + $0x2c] sm:$0xf]
      %v1090 = vld [vmem:[%s1077 + $0x30] sm:$0xf]
      %v1091 = vld [vmem:[%s1077 + $0x34] sm:$0xf]
      %v1092 = vld [vmem:[%s1077 + $0x38] sm:$0xf]
      %v1093 = vld [vmem:[%s1077 + $0x3c] sm:$0xf]
      %v1094 = vld [vmem:[%s1077 + $0x40] sm:$0xf]
      %v1095 = vld [vmem:[%s1077 + $0x44] sm:$0xf]
      %v1096 = vld [vmem:[%s1077 + $0x48] sm:$0xf]
      %v1097 = vld [vmem:[%s1077 + $0x4c] sm:$0xf]
      %v1098 = vld [vmem:[%s1077 + $0x50] sm:$0xf]
      %v1099 = vld [vmem:[%s1077 + $0x54] sm:$0xf]
      %v1100 = vld [vmem:[%s1077 + $0x58] sm:$0xf]
      %v1101 = vld [vmem:[%s1077 + $0x5c] sm:$0xf]
      %v1102 = vld [vmem:[%s1077 + $0x60] sm:$0xf]
      %v1103 = vld [vmem:[%s1077 + $0x64] sm:$0xf]
      %v1104 = vld [vmem:[%s1077 + $0x68] sm:$0xf]
      %v1105 = vld [vmem:[%s1077 + $0x6c] sm:$0xf]
      %v1106 = vld [vmem:[%s1077 + $0x70] sm:$0xf]
      %v1107 = vld [vmem:[%s1077 + $0x74] sm:$0xf]
      %v1108 = vld [vmem:[%s1077 + $0x78] sm:$0xf]
      %v1109 = vld [vmem:[%s1077 + $0x7c] sm:$0xf]
      %vm1110 = vsmask.f32 3328
      %v1111 = vrot.slane %v519, 4
      %v1112 = vrot.slane %v522, 5
      %v1113 = vor.u32 %v1111, %v1112
      %v1114 = vrot.slane %v527, 4
      %v1115 = vrot.slane %v530, 5
      %v1116 = vor.u32 %v1114, %v1115
      %v1117 = vsel %vm1110, %v1113, %v1116
      %v1118 = vrot.slane %v535, 4
      %v1119 = vrot.slane %v538, 5
      %v1120 = vor.u32 %v1118, %v1119
      %v1121 = vrot.slane %v543, 4
      %v1122 = vrot.slane %v546, 5
      %v1123 = vor.u32 %v1121, %v1122
      %v1124 = vsel %vm1110, %v1120, %v1123
      %v1125 = vrot.slane %v551, 4
      %v1126 = vrot.slane %v554, 5
      %v1127 = vor.u32 %v1125, %v1126
      %v1128 = vsel %vm1110, %v1116, %v1127
      %v1129 = vrot.slane %v559, 4
      %v1130 = vrot.slane %v562, 5
      %v1131 = vor.u32 %v1129, %v1130
      %v1132 = vsel %vm1110, %v1123, %v1131
      %v1169 = vunpack.c.l.b16 %v1078
      %v1170 = vunpack.c.l.b16 %v1079
      %v1171 = vunpack.c.l.b16 %v1080
      %v1172 = vunpack.c.l.b16 %v1081
      %v1173 = vunpack.c.l.b16 %v1082
      %v1174 = vunpack.c.l.b16 %v1083
      %v1175 = vunpack.c.l.b16 %v1084
      %v1176 = vunpack.c.l.b16 %v1085
      %v1177 = vunpack.c.l.b16 %v1086
      %v1178 = vunpack.c.l.b16 %v1087
      %v1179 = vunpack.c.l.b16 %v1088
      %v1180 = vunpack.c.l.b16 %v1089
      %v1181 = vunpack.c.l.b16 %v1090
      %v1182 = vunpack.c.l.b16 %v1091
      %v1183 = vunpack.c.l.b16 %v1092
      %v1184 = vunpack.c.l.b16 %v1093
      %v1185 = vunpack.c.l.b16 %v1094
      %v1186 = vunpack.c.l.b16 %v1095
      %v1187 = vunpack.c.l.b16 %v1096
      %v1188 = vunpack.c.l.b16 %v1097
      %v1189 = vunpack.c.l.b16 %v1098
      %v1190 = vunpack.c.l.b16 %v1099
      %v1191 = vunpack.c.l.b16 %v1100
      %v1192 = vunpack.c.l.b16 %v1101
      %v1193 = vunpack.c.l.b16 %v1102
      %v1194 = vunpack.c.l.b16 %v1103
      %v1195 = vunpack.c.l.b16 %v1104
      %v1196 = vunpack.c.l.b16 %v1105
      %v1197 = vunpack.c.l.b16 %v1106
      %v1198 = vunpack.c.l.b16 %v1107
      %v1199 = vunpack.c.l.b16 %v1108
      %v1200 = vunpack.c.l.b16 %v1109
      %v1201 = vpack.c.b16 %v1170, %v1169
      %v1202 = vpack.c.b16 %v1172, %v1171
      %v1203 = vpack.c.b16 %v1174, %v1173
      %v1204 = vpack.c.b16 %v1176, %v1175
      %v1205 = vpack.c.b16 %v1178, %v1177
      %v1206 = vpack.c.b16 %v1180, %v1179
      %v1207 = vpack.c.b16 %v1182, %v1181
      %v1208 = vpack.c.b16 %v1184, %v1183
      %v1209 = vpack.c.b16 %v1186, %v1185
      %v1210 = vpack.c.b16 %v1188, %v1187
      %v1211 = vpack.c.b16 %v1190, %v1189
      %v1212 = vpack.c.b16 %v1192, %v1191
      %v1213 = vpack.c.b16 %v1194, %v1193
      %v1214 = vpack.c.b16 %v1196, %v1195
      %v1215 = vpack.c.b16 %v1198, %v1197
      %v1216 = vpack.c.b16 %v1200, %v1199
      %1233 = vmatprep.subr.bf16.mxu0 0
      %1234 = vmatpush1.bf16.msra.mxu0 %v1201
      %1235 = vmatprep.subr.bf16.mxu0 0
      %1236 = vmatpush1.bf16.msra.mxu0 %v1202
      %1237 = vmatprep.subr.bf16.mxu0 0
      %1238 = vmatpush1.bf16.msra.mxu0 %v1203
      %1239 = vmatprep.subr.bf16.mxu0 0
      %1240 = vmatpush1.bf16.msra.mxu0 %v1204
      %1241 = vmatprep.subr.bf16.mxu0 0
      %1242 = vmatpush1.bf16.msra.mxu0 %v1205
      %1243 = vmatprep.subr.bf16.mxu0 0
      %1244 = vmatpush1.bf16.msra.mxu0 %v1206
      %1245 = vmatprep.subr.bf16.mxu0 0
      %1246 = vmatpush1.bf16.msra.mxu0 %v1207
      %1247 = vmatprep.subr.bf16.mxu0 0
      %1248 = vmatpush1.bf16.msra.mxu0 %v1208
      %1249 = vmatprep.subr.bf16.mxu0 0
      %1250 = vmatpush1.bf16.msra.mxu0 %v1209
      %1251 = vmatprep.subr.bf16.mxu0 0
      %1252 = vmatpush1.bf16.msra.mxu0 %v1210
      %1253 = vmatprep.subr.bf16.mxu0 0
      %1254 = vmatpush1.bf16.msra.mxu0 %v1211
      %1255 = vmatprep.subr.bf16.mxu0 0
      %1256 = vmatpush1.bf16.msra.mxu0 %v1212
      %1257 = vmatprep.subr.bf16.mxu0 0
      %1258 = vmatpush1.bf16.msra.mxu0 %v1213
      %1259 = vmatprep.subr.bf16.mxu0 0
      %1260 = vmatpush1.bf16.msra.mxu0 %v1214
      %1261 = vmatprep.subr.bf16.mxu0 0
      %1262 = vmatpush1.bf16.msra.mxu0 %v1215
      %1263 = vmatprep.subr.bf16.mxu0 0
      %1264 = vmatpush1.bf16.msra.mxu0 %v1216
      %1265 = vmatprep.mubr.bf16.mxu0 %v1124
      %1266 = vmatmul.mubr.bf16.gmra.mrb[0].mxu0 %v1117
      %v1267 = vpop.f32.mrb[0].mxu0
      %v1268 = vadd.f32 0.0, %v1267
      %v1269 = vpop.f32.mrb[0].mxu0
      %v1270 = vpop.f32.mrb[0].mxu0
      %v1271 = vadd.f32 0.0, %v1270
      %v1272 = vpop.f32.mrb[0].mxu0
      %1273 = vmatprep.mubr.bf16.mxu0 %v1132
      %1274 = vmatmul.mubr.bf16.gmra.mrb[0].mxu0 %v1128
      %v1275 = vpop.f32.mrb[0].mxu0
      %v1276 = vadd.f32 0.0, %v1275
      %v1277 = vpop.f32.mrb[0].mxu0
      %v1278 = vpop.f32.mrb[0].mxu0
      %v1279 = vadd.f32 0.0, %v1278
      %v1280 = vpop.f32.mrb[0].mxu0
      %1281 = vdwg.mxu0
      %v1282 = vadd.f32 %v1073, %v1268
      %v1283 = vadd.f32 %v1074, %v1271
      %v1284 = vadd.f32 %v1075, %v1276
      %v1285 = vadd.f32 %v1076, %v1279
      %s1286 = scalar_lea.vmem %s3, 512
      %v1287 = vld [vmem:[%s1286] sm:$0xf]
      %v1288 = vld [vmem:[%s1286 + $0x4] sm:$0xf]
      %v1289 = vld [vmem:[%s1286 + $0x8] sm:$0xf]
      %v1290 = vld [vmem:[%s1286 + $0xc] sm:$0xf]
      %v1291 = vld [vmem:[%s1286 + $0x10] sm:$0xf]
      %v1292 = vld [vmem:[%s1286 + $0x14] sm:$0xf]
      %v1293 = vld [vmem:[%s1286 + $0x18] sm:$0xf]
      %v1294 = vld [vmem:[%s1286 + $0x1c] sm:$0xf]
      %v1295 = vld [vmem:[%s1286 + $0x20] sm:$0xf]
      %v1296 = vld [vmem:[%s1286 + $0x24] sm:$0xf]
      %v1297 = vld [vmem:[%s1286 + $0x28] sm:$0xf]
      %v1298 = vld [vmem:[%s1286 + $0x2c] sm:$0xf]
      %v1299 = vld [vmem:[%s1286 + $0x30] sm:$0xf]
      %v1300 = vld [vmem:[%s1286 + $0x34] sm:$0xf]
      %v1301 = vld [vmem:[%s1286 + $0x38] sm:$0xf]
      %v1302 = vld [vmem:[%s1286 + $0x3c] sm:$0xf]
      %v1303 = vld [vmem:[%s1286 + $0x40] sm:$0xf]
      %v1304 = vld [vmem:[%s1286 + $0x44] sm:$0xf]
      %v1305 = vld [vmem:[%s1286 + $0x48] sm:$0xf]
      %v1306 = vld [vmem:[%s1286 + $0x4c] sm:$0xf]
      %v1307 = vld [vmem:[%s1286 + $0x50] sm:$0xf]
      %v1308 = vld [vmem:[%s1286 + $0x54] sm:$0xf]
      %v1309 = vld [vmem:[%s1286 + $0x58] sm:$0xf]
      %v1310 = vld [vmem:[%s1286 + $0x5c] sm:$0xf]
      %v1311 = vld [vmem:[%s1286 + $0x60] sm:$0xf]
      %v1312 = vld [vmem:[%s1286 + $0x64] sm:$0xf]
      %v1313 = vld [vmem:[%s1286 + $0x68] sm:$0xf]
      %v1314 = vld [vmem:[%s1286 + $0x6c] sm:$0xf]
      %v1315 = vld [vmem:[%s1286 + $0x70] sm:$0xf]
      %v1316 = vld [vmem:[%s1286 + $0x74] sm:$0xf]
      %v1317 = vld [vmem:[%s1286 + $0x78] sm:$0xf]
      %v1318 = vld [vmem:[%s1286 + $0x7c] sm:$0xf]
      %vm1319 = vcmask 1042432
      %v1320 = vrot.slane %v443, 5
      %v1321 = vrot.slane %v431, 5
      %v1322 = vsel %vm1319, %v1320, %v1321
      %v1323 = vrot.slane %v446, 5
      %v1324 = vrot.slane %v432, 5
      %v1325 = vsel %vm1319, %v1323, %v1324
      %v1326 = vrot.slane %v449, 5
      %v1327 = vsel %vm1319, %v1321, %v1326
      %v1328 = vrot.slane %v452, 5
      %v1329 = vsel %vm1319, %v1324, %v1328
      %v1366 = vunpack.c.l.b16 %v1287
      %v1367 = vunpack.c.l.b16 %v1288
      %v1368 = vunpack.c.l.b16 %v1289
      %v1369 = vunpack.c.l.b16 %v1290
      %v1370 = vunpack.c.l.b16 %v1291
      %v1371 = vunpack.c.l.b16 %v1292
      %v1372 = vunpack.c.l.b16 %v1293
      %v1373 = vunpack.c.l.b16 %v1294
      %v1374 = vunpack.c.l.b16 %v1295
      %v1375 = vunpack.c.l.b16 %v1296
      %v1376 = vunpack.c.l.b16 %v1297
      %v1377 = vunpack.c.l.b16 %v1298
      %v1378 = vunpack.c.l.b16 %v1299
      %v1379 = vunpack.c.l.b16 %v1300
      %v1380 = vunpack.c.l.b16 %v1301
      %v1381 = vunpack.c.l.b16 %v1302
      %v1382 = vunpack.c.l.b16 %v1303
      %v1383 = vunpack.c.l.b16 %v1304
      %v1384 = vunpack.c.l.b16 %v1305
      %v1385 = vunpack.c.l.b16 %v1306
      %v1386 = vunpack.c.l.b16 %v1307
      %v1387 = vunpack.c.l.b16 %v1308
      %v1388 = vunpack.c.l.b16 %v1309
      %v1389 = vunpack.c.l.b16 %v1310
      %v1390 = vunpack.c.l.b16 %v1311
      %v1391 = vunpack.c.l.b16 %v1312
      %v1392 = vunpack.c.l.b16 %v1313
      %v1393 = vunpack.c.l.b16 %v1314
      %v1394 = vunpack.c.l.b16 %v1315
      %v1395 = vunpack.c.l.b16 %v1316
      %v1396 = vunpack.c.l.b16 %v1317
      %v1397 = vunpack.c.l.b16 %v1318
      %v1398 = vpack.c.b16 %v1367, %v1366
      %v1399 = vpack.c.b16 %v1369, %v1368
      %v1400 = vpack.c.b16 %v1371, %v1370
      %v1401 = vpack.c.b16 %v1373, %v1372
      %v1402 = vpack.c.b16 %v1375, %v1374
      %v1403 = vpack.c.b16 %v1377, %v1376
      %v1404 = vpack.c.b16 %v1379, %v1378
      %v1405 = vpack.c.b16 %v1381, %v1380
      %v1406 = vpack.c.b16 %v1383, %v1382
      %v1407 = vpack.c.b16 %v1385, %v1384
      %v1408 = vpack.c.b16 %v1387, %v1386
      %v1409 = vpack.c.b16 %v1389, %v1388
      %v1410 = vpack.c.b16 %v1391, %v1390
      %v1411 = vpack.c.b16 %v1393, %v1392
      %v1412 = vpack.c.b16 %v1395, %v1394
      %v1413 = vpack.c.b16 %v1397, %v1396
      %1430 = vmatprep.subr.bf16.mxu0 0
      %1431 = vmatpush1.bf16.msra.mxu0 %v1398
      %1432 = vmatprep.subr.bf16.mxu0 0
      %1433 = vmatpush1.bf16.msra.mxu0 %v1399
      %1434 = vmatprep.subr.bf16.mxu0 0
      %1435 = vmatpush1.bf16.msra.mxu0 %v1400
      %1436 = vmatprep.subr.bf16.mxu0 0
      %1437 = vmatpush1.bf16.msra.mxu0 %v1401
      %1438 = vmatprep.subr.bf16.mxu0 0
      %1439 = vmatpush1.bf16.msra.mxu0 %v1402
      %1440 = vmatprep.subr.bf16.mxu0 0
      %1441 = vmatpush1.bf16.msra.mxu0 %v1403
      %1442 = vmatprep.subr.bf16.mxu0 0
      %1443 = vmatpush1.bf16.msra.mxu0 %v1404
      %1444 = vmatprep.subr.bf16.mxu0 0
      %1445 = vmatpush1.bf16.msra.mxu0 %v1405
      %1446 = vmatprep.subr.bf16.mxu0 0
      %1447 = vmatpush1.bf16.msra.mxu0 %v1406
      %1448 = vmatprep.subr.bf16.mxu0 0
      %1449 = vmatpush1.bf16.msra.mxu0 %v1407
      %1450 = vmatprep.subr.bf16.mxu0 0
      %1451 = vmatpush1.bf16.msra.mxu0 %v1408
      %1452 = vmatprep.subr.bf16.mxu0 0
      %1453 = vmatpush1.bf16.msra.mxu0 %v1409
      %1454 = vmatprep.subr.bf16.mxu0 0
      %1455 = vmatpush1.bf16.msra.mxu0 %v1410
      %1456 = vmatprep.subr.bf16.mxu0 0
      %1457 = vmatpush1.bf16.msra.mxu0 %v1411
      %1458 = vmatprep.subr.bf16.mxu0 0
      %1459 = vmatpush1.bf16.msra.mxu0 %v1412
      %1460 = vmatprep.subr.bf16.mxu0 0
      %1461 = vmatpush1.bf16.msra.mxu0 %v1413
      %1462 = vmatprep.mubr.bf16.mxu0 %v1325
      %1463 = vmatmul.mubr.bf16.gmra.mrb[0].mxu0 %v1322
      %v1464 = vpop.f32.mrb[0].mxu0
      %v1465 = vadd.f32 0.0, %v1464
      %v1466 = vpop.f32.mrb[0].mxu0
      %v1467 = vpop.f32.mrb[0].mxu0
      %v1468 = vadd.f32 0.0, %v1467
      %v1469 = vpop.f32.mrb[0].mxu0
      %1470 = vmatprep.mubr.bf16.mxu0 %v1329
      %1471 = vmatmul.mubr.bf16.gmra.mrb[0].mxu0 %v1327
      %v1472 = vpop.f32.mrb[0].mxu0
      %v1473 = vadd.f32 0.0, %v1472
      %v1474 = vpop.f32.mrb[0].mxu0
      %v1475 = vpop.f32.mrb[0].mxu0
      %v1476 = vadd.f32 0.0, %v1475
      %v1477 = vpop.f32.mrb[0].mxu0
      %1478 = vdwg.mxu0
      %v1479 = vadd.f32 %v1282, %v1465
      %v1480 = vadd.f32 %v1283, %v1468
      %v1481 = vadd.f32 %v1284, %v1473
      %v1482 = vadd.f32 %v1285, %v1476
      %v1483 = vld [vmem:[%s4] sm:$0x1]
      %v1485 = vlaneseq
      %v1486 = vshrl.u32 %v1485, 7
      %v1487 = vsub.s32 0, %v1486
      %v1488 = vrot.slane %v1483, %v1487
      %v1490 = vadd.f32 %v1479, %v1488
      %v1491 = vadd.f32 %v1480, %v1488
      %v1492 = vadd.f32 %v1481, %v1488
      %v1493 = vadd.f32 %v1482, %v1488
      %v1494 = vtanh.pop %v1490
      %v1495 = vtanh.pop %v1491
      %v1496 = vtanh.pop %v1492
      %v1497 = vtanh.pop %v1493
      %vm1498 = vcmask 785408
      %1499 = vst.msk [vmem:[%s389] sm:$0xff] %vm1498, %v1494
      %1500 = vst.msk [vmem:[%s389 + $0x8] sm:$0xff] %vm1498, %v1495
      %1501 = vst.msk [vmem:[%s389 + $0x10] sm:$0xff] %vm1498, %v1496
      %1502 = vst.msk [vmem:[%s389 + $0x18] sm:$0xff] %vm1498, %v1497
      %s1503 = smul.u32 4, %s21
      %p1504 = scmp.lt.s32.totalorder %s20, 1
      %s1505 = scalar_select %p1504, %s20, 1
      %p1506 = scmp.lt.s32.totalorder %s1503, 3
      %s1507 = scalar_select %p1506, %s1503, 3
      %s1508 = smul.addr %s1505, 4
      %s1509 = sadd.s32 %s1507, %s1508
      %s1510 = smul.addr %s1509, 8
      %s1511 = scalar_lea.vmem %s5, %s1510
      // Predicated region
      $region41: #{sr_resnet_forward.7} parent=39 // pred_check
        %p1512 = pneg %p190
      $region42: #{sr_resnet_forward.7} parent=39 // pred_check_branch
        %1514 = sbr.rel (%p1512) target = $region44
      $region43: #{sr_resnet_forward.7} parent=39 // pred_region
        %s1515 = smul.u32 4, %s21
      $region44: #{sr_resnet_forward.7} parent=39 // pred_fallthru
        _
    $region40: #{sr_resnet_forward.7} parent=5 // pred_fallthru
      _
    %p1516 = scmp.le.s32.totalorder 2, %s11
    // Predicated region
    $region45: #{sr_resnet_forward.7} parent=5 // pred_check
      %p1517 = pneg %p1516
    $region46: #{sr_resnet_forward.7} parent=5 // pred_check_branch
      %1519 = sbr.rel (%p1517) target = $region48
    $region47: #{sr_resnet_forward.7} parent=5 // pred_region
      %s1520 = ssub.s32 %s11, 2
      // Predicated region
      $region49: #{sr_resnet_forward.7} parent=47 // pred_check
        %p1521 = pneg %p196
      $region50: #{sr_resnet_forward.7} parent=47 // pred_check_branch
        %1523 = sbr.rel (%p1521) target = $region52
      $region51: #{sr_resnet_forward.7} parent=47 // pred_region
        %s1524 = smul.u32 4, %s23
        %p1525 = scmp.lt.s32.totalorder %s22, 1
        %s1526 = scalar_select %p1525, %s22, 1
        %p1527 = scmp.lt.s32.totalorder %s1524, 3
        %s1528 = scalar_select %p1527, %s1524, 3
        %s1529 = smul.addr %s1526, 4
        %s1530 = sadd.s32 %s1528, %s1529
        %s1531 = smul.addr %s1530, 8
        %s1532 = scalar_lea.vmem %s5, %s1531
      $region52: #{sr_resnet_forward.7} parent=47 // pred_fallthru
        _
    $region48: #{sr_resnet_forward.7} parent=5 // pred_fallthru
      _
  $region6: #{sr_resnet_forward.7} parent=0 // loop_footer
    %s15 = sadd.s32 1, %s11
  $region7: #{sr_resnet_forward.7} parent=0 // loop_footer_branch
    %10 = sbr.rel target = $region3
  $region8: #{sr_resnet_forward.7} parent=0 // loop_exit
    _

</llo_original>
